<compile_context>
chip_gen: v5e
topology: v5e:2x2
jax: 0.10.0
libtpu: 0.0.40
codegen_flags: <defaults>
</compile_context>

<pallas_src>
import functools
import math
import numpy as np
import jax
import jax.numpy as jnp
from jax.experimental import pallas as pl
from jax.experimental.pallas import tpu as pltpu

FF = 256          # ff_dim in the PyTorch module
MULT = 2          # MLPBlock multiplier
NUM_FREQS = 5     # Embedder(num_freqs=5) for position
MIN_FREQ_EXP = 0.0
MAX_FREQ_EXP = 4.0
LN_EPS = 1e-5
Q_PAD = 128       # lane-dense Q head width (real output is column 0)
MAX_TILE_B = 512  # max batch tile (working set stays well under VMEM everywhere)
K_ALIGN = 128     # packed-input lane alignment


def _ceil_to(x, m):
    return ((x + m - 1) // m) * m


# ------------------------- in-kernel helpers -------------------------------

def _gelu(x, approx):
    if approx:
        # tanh approximation: transcendental lands in the EUP slot (v6e/v7x win).
        # NOTE: slightly different numerics than torch.nn.GELU() default (erf).
        inner = 0.7978845608028654 * x * (1.0 + 0.044715 * x * x)
        return 0.5 * x * (1.0 + jnp.tanh(inner))
    # exact (erf) GELU, matching torch.nn.GELU() default (approximate='none')
    return 0.5 * x * (1.0 + jax.lax.erf(x * 0.7071067811865475))


def _layernorm(x, gamma, beta):
    # centered variance E[(x-mean)^2]: matches torch.nn.LayerNorm and avoids the
    # E[x^2]-mean^2 cancellation concern. Both reductions read the same tile.
    m = jnp.mean(x, axis=-1, keepdims=True)
    d = x - m
    var = jnp.mean(d * d, axis=-1, keepdims=True)
    return d * jax.lax.rsqrt(var + LN_EPS) * gamma + beta


# ------------------------------ kernel --------------------------------------

def softq_kernel(x_ref,
                 w0_ref, b0_ref,
                 w1a_ref, w1b_ref, g1_ref, be1_ref,
                 w2a_ref, w2b_ref, g2_ref, be2_ref,
                 wa0_ref, ba0_ref, wa1_ref, ba1_ref,
                 wch_ref, wca_ref, bc_ref,
                 wf_ref, bf_ref,
                 q_ref, *, approx, gelu_dt):
    f32 = jnp.float32
    mxu_dt = w1a_ref.dtype   # bf16 (or f32) matmul input dtype

    def gelu(v):
        return _gelu(v.astype(gelu_dt), approx)

    # Packed input block: [channel_angle | pos_embed | action | zero pad] (tb, Kp).
    x = x_ref[...]

    # connect_network input Linear(Kp->256) + GELU (padded w0 rows are zero, so
    # this equals Linear(channel_angle ++ pos_embed)).
    h = gelu(jnp.dot(x, w0_ref[...], preferred_element_type=f32) + b0_ref[...])
    h = h.astype(f32)        # residual stream / LayerNorm stats kept in f32

    # MLPBlock 1: Linear(256->512, no bias) -> GELU -> Linear(512->256, no bias)
    #             -> residual add -> LayerNorm(256)
    t = gelu(jnp.dot(h.astype(mxu_dt), w1a_ref[...], preferred_element_type=f32))
    t = jnp.dot(t.astype(mxu_dt), w1b_ref[...], preferred_element_type=f32)
    h = _layernorm(t + h, g1_ref[...], be1_ref[...])

    # MLPBlock 2
    t = gelu(jnp.dot(h.astype(mxu_dt), w2a_ref[...], preferred_element_type=f32))
    t = jnp.dot(t.astype(mxu_dt), w2b_ref[...], preferred_element_type=f32)
    h = _layernorm(t + h, g2_ref[...], be2_ref[...])

    # action_network: Linear(ac->256) + GELU + Linear(256->256) + GELU
    # (reads the same packed input tile; padded wa0 rows are zero).
    a = gelu(jnp.dot(x, wa0_ref[...], preferred_element_type=f32) + ba0_ref[...])
    a = gelu(jnp.dot(a.astype(mxu_dt), wa1_ref[...], preferred_element_type=f32)
             + ba1_ref[...])

    # combine_network: Linear(512->256) + GELU, concat replaced by split weights
    c = jnp.dot(h.astype(mxu_dt), wch_ref[...], preferred_element_type=f32)
    c = c + jnp.dot(a.astype(mxu_dt), wca_ref[...], preferred_element_type=f32)
    c = gelu(c + bc_ref[...])

    # combine_layer: Linear(256->1), lane-padded to 128 cols (col 0 is the Q value)
    q = jnp.dot(c.astype(mxu_dt), wf_ref[...], preferred_element_type=f32) + bf_ref[...]
    q_ref[...] = q.astype(q_ref.dtype)


WEIGHT_ORDER = ["w0", "b0",
                "w1a", "w1b", "g1", "be1",
                "w2a", "w2b", "g2", "be2",
                "wa0", "ba0", "wa1", "ba1",
                "wch", "wca", "bc",
                "wf", "bf"]


# ------------------------------ glue ----------------------------------------

def pos_embed(pos):
    """Embedder forward (num_freqs=5, exps 0..4, include_input=False)."""
    scaled = 2.0 * jnp.pi * pos
    freqs = 2.0 ** jnp.linspace(MIN_FREQ_EXP, MAX_FREQ_EXP, NUM_FREQS)
    si = (scaled[..., None] * freqs).reshape(*scaled.shape[:-1], -1)
    return jnp.sin(jnp.concatenate([si, si + jnp.pi / 2.0], axis=-1))


def prep_params(params, ob_dim, ac_dim, k_pad, mxu_dtype):
    """Split / cast / pad the canonical f32 params into kernel layout."""
    wd = mxu_dtype
    f32 = jnp.float32
    # First-layer weights lifted to the packed-input K (zero rows for padding /
    # the other network's feature columns).
    w0 = jnp.zeros((k_pad, FF), f32).at[:ob_dim].set(params["w0"])
    wa0 = jnp.zeros((k_pad, FF), f32).at[ob_dim:ob_dim + ac_dim].set(params["wa0"])
    return {
        "w0": w0.astype(wd),
        "b0": params["b0"].astype(f32),
        "w1a": params["w1a"].astype(wd),
        "w1b": params["w1b"].astype(wd),
        "g1": params["g1"].astype(f32),
        "be1": params["be1"].astype(f32),
        "w2a": params["w2a"].astype(wd),
        "w2b": params["w2b"].astype(wd),
        "g2": params["g2"].astype(f32),
        "be2": params["be2"].astype(f32),
        "wa0": wa0.astype(wd),
        "ba0": params["ba0"].astype(f32),
        "wa1": params["wa1"].astype(wd),
        "ba1": params["ba1"].astype(f32),
        "wch": params["wc"][:FF].astype(wd),
        "wca": params["wc"][FF:].astype(wd),
        "bc": params["bc"].astype(f32),
        "wf": jnp.pad(params["wf"], ((0, 0), (0, Q_PAD - 1))).astype(wd),
        "bf": jnp.pad(params["bf"], ((0, 0), (0, Q_PAD - 1))).astype(f32),
    }


def _select_tile(B, max_tile=MAX_TILE_B):
    if B <= 256:
        # small batch: one grid step, rows padded to a sublane multiple
        return max(16, _ceil_to(B, 16))
    # large batch: biggest tile <= max_tile that keeps >= 2 grid steps
    # (amortizes per-step overhead; >=2 parallel steps keeps both v7x TCs busy)
    steps = max(2, (B + max_tile - 1) // max_tile)
    return _ceil_to((B + steps - 1) // steps, 128)


def soft_q_forward(obs, acs, params, pos_dim, mxu_dtype=jnp.bfloat16,
                   max_tile=MAX_TILE_B, fast_gelu=None, gelu_dtype=None):
    """SoftQNetwork forward. Defaults target v6e/v7x (bf16 MXU + bf16 tanh GELU).
    On v5e (no bf16 VALU/EUP) pass gelu_dtype=jnp.float32; fast_gelu=True still
    helps there by moving the transcendental to the EUP slot."""
    if fast_gelu is None:
        fast_gelu = (mxu_dtype == jnp.bfloat16)   # f32 path keeps exact erf GELU
    if gelu_dtype is None:
        gelu_dtype = mxu_dtype

    # feature construction (glue): positional embedding in the wrapper; all
    # features + action packed into ONE lane-aligned input (single DMA stream).
    ca = obs[..., :-pos_dim].astype(jnp.float32)
    pe = pos_embed(obs[..., -pos_dim:]).astype(jnp.float32)
    ac = acs.astype(jnp.float32)
    B = obs.shape[0]
    ob_dim = ca.shape[-1] + pe.shape[-1]
    ac_dim = ac.shape[-1]

    feat = jnp.concatenate([ca, pe, ac], axis=-1)           # (B, ob_dim + ac_dim)
    k_pad = _ceil_to(feat.shape[-1], K_ALIGN)

    tb = _select_tile(B, max_tile)
    Bp = _ceil_to(B, tb)
    feat = jnp.pad(feat, ((0, Bp - B), (0, k_pad - feat.shape[-1]))).astype(mxu_dtype)

    p = prep_params(params, ob_dim, ac_dim, k_pad, mxu_dtype)
    weights = [p[k] for k in WEIGHT_ORDER]

    # Weights stay VMEM-resident across the grid (constant index_map).
    # (pipeline_mode=pl.Buffered(1) would drop their duplicated buffers, ~1.6 MB
    #  bf16; omitted for portability — VMEM headroom is ample on all generations.)
    resident = lambda a: pl.BlockSpec(a.shape, lambda i: (0, 0))

    kernel = functools.partial(softq_kernel, approx=fast_gelu, gelu_dt=gelu_dtype)

    q = pl.pallas_call(
        kernel,
        out_shape=jax.ShapeDtypeStruct((Bp, Q_PAD), jnp.float32),
        grid=(Bp // tb,),
        in_specs=[pl.BlockSpec((tb, k_pad), lambda i: (i, 0))]
                 + [resident(w) for w in weights],
        out_specs=pl.BlockSpec((tb, Q_PAD), lambda i: (i, 0)),
        compiler_params=pltpu.CompilerParams(
            dimension_semantics=("parallel",),      # v7x: shard batch across 2 TCs
            vmem_limit_bytes=32 * 1024 * 1024,      # working set is only a few MB
        ),
    )(feat, *weights)
    return q[:B, :1]


def soft_q_reference(obs, acs, params, pos_dim):
    """Pure-JAX f32 reference of the same forward pass (exact erf GELU)."""
    pos = obs[..., -pos_dim:]
    ob = jnp.concatenate([obs[..., :-pos_dim], pos_embed(pos)], axis=-1)
    g = lambda x: _gelu(x, approx=False)
    h = g(ob @ params["w0"] + params["b0"])
    t = g(h @ params["w1a"]) @ params["w1b"]
    h = _layernorm(t + h, params["g1"], params["be1"])
    t = g(h @ params["w2a"]) @ params["w2b"]
    h = _layernorm(t + h, params["g2"], params["be2"])
    a = g(acs @ params["wa0"] + params["ba0"])
    a = g(a @ params["wa1"] + params["ba1"])
    c = g(jnp.concatenate([h, a], axis=-1) @ params["wc"] + params["bc"])
    return c @ params["wf"] + params["bf"]


def init_params(key, in_dim, ac_dim, ff=FF):
    """Deterministic synthetic init (PyTorch-Linear-style uniform fan-in), f32."""
    ks = jax.random.split(key, 32)
    it = iter(ks)

    def lin_w(i, o):
        s = 1.0 / math.sqrt(i)
        return jax.random.uniform(next(it), (i, o), jnp.float32, -s, s)

    def lin_b(i, o):
        s = 1.0 / math.sqrt(i)
        return jax.random.uniform(next(it), (1, o), jnp.float32, -s, s)

    p = {}
    p["w0"], p["b0"] = lin_w(in_dim, ff), lin_b(in_dim, ff)
    # MLPBlock 1 (no biases in block linears), LayerNorm affine = ones/zeros
    p["w1a"], p["w1b"] = lin_w(ff, ff * MULT), lin_w(ff * MULT, ff)
    p["g1"], p["be1"] = jnp.ones((1, ff), jnp.float32), jnp.zeros((1, ff), jnp.float32)
    # MLPBlock 2
    p["w2a"], p["w2b"] = lin_w(ff, ff * MULT), lin_w(ff * MULT, ff)
    p["g2"], p["be2"] = jnp.ones((1, ff), jnp.float32), jnp.zeros((1, ff), jnp.float32)
    # action_network
    p["wa0"], p["ba0"] = lin_w(ac_dim, ff), lin_b(ac_dim, ff)
    p["wa1"], p["ba1"] = lin_w(ff, ff), lin_b(ff, ff)
    # combine_network + combine_layer
    p["wc"], p["bc"] = lin_w(ff * 2, ff), lin_b(ff * 2, ff)
    p["wf"], p["bf"] = lin_w(ff, 1), lin_b(ff, 1)
    return p


if __name__ == "__main__":
    # small env-like shapes: channel (4,4)=16, angle (4,)=4, position (3,)=3
    channel_dim, angle_dim, pos_dim = 16, 4, 3
    ac_dim = 4
    obs_dim = channel_dim + angle_dim + pos_dim            # 23
    pos_out_dim = pos_dim * NUM_FREQS * 2                  # 30
    in_dim = channel_dim + angle_dim + pos_out_dim         # 50

    key = jax.random.PRNGKey(0)
    k_obs, k_acs, k_par, k_obs_b, k_acs_b = jax.random.split(key, 5)
    params = init_params(k_par, in_dim, ac_dim)

    # 1) tiny-batch check, f32 MXU path + exact erf GELU: tight match vs reference.
    obs = jax.random.normal(k_obs, (2, obs_dim), jnp.float32)
    acs = jax.random.uniform(k_acs, (2, ac_dim), jnp.float32, -1.0, 1.0)
    q32 = jax.block_until_ready(
        soft_q_forward(obs, acs, params, pos_dim, mxu_dtype=jnp.float32))
    q_ref = jax.block_until_ready(soft_q_reference(obs, acs, params, pos_dim))
    assert q32.shape == (2, 1)
    np.testing.assert_allclose(np.asarray(q32), np.asarray(q_ref),
                               rtol=1e-4, atol=1e-4)

    # 2) batched check, bf16 MXU + bf16 tanh-approx GELU (v6e/v7x perf path):
    #    B=512 -> tile 256, grid=(2,) so the pipelined grid / megacore path runs.
    obs_b = jax.random.normal(k_obs_b, (512, obs_dim), jnp.float32)
    acs_b = jax.random.uniform(k_acs_b, (512, ac_dim), jnp.float32, -1.0, 1.0)
    q16 = jax.block_until_ready(
        soft_q_forward(obs_b, acs_b, params, pos_dim, mxu_dtype=jnp.bfloat16))
    q16_ref = jax.block_until_ready(soft_q_reference(obs_b, acs_b, params, pos_dim))
    assert q16.shape == (512, 1)
    np.testing.assert_allclose(np.asarray(q16), np.asarray(q16_ref),
                               rtol=5e-2, atol=5e-2)

    print("KERNEL_OK")
</pallas_src>

<mosaic_0001>
module attributes {stable_mosaic.version = 11 : i64} {
  func.func @softq_kernel(%arg0: i32, %arg1: memref<16x128xf32, #tpu.memory_space<vmem>>, %arg2: memref<128x256xf32, #tpu.memory_space<vmem>>, %arg3: memref<1x256xf32, #tpu.memory_space<vmem>>, %arg4: memref<256x512xf32, #tpu.memory_space<vmem>>, %arg5: memref<512x256xf32, #tpu.memory_space<vmem>>, %arg6: memref<1x256xf32, #tpu.memory_space<vmem>>, %arg7: memref<1x256xf32, #tpu.memory_space<vmem>>, %arg8: memref<256x512xf32, #tpu.memory_space<vmem>>, %arg9: memref<512x256xf32, #tpu.memory_space<vmem>>, %arg10: memref<1x256xf32, #tpu.memory_space<vmem>>, %arg11: memref<1x256xf32, #tpu.memory_space<vmem>>, %arg12: memref<128x256xf32, #tpu.memory_space<vmem>>, %arg13: memref<1x256xf32, #tpu.memory_space<vmem>>, %arg14: memref<256x256xf32, #tpu.memory_space<vmem>>, %arg15: memref<1x256xf32, #tpu.memory_space<vmem>>, %arg16: memref<256x256xf32, #tpu.memory_space<vmem>>, %arg17: memref<256x256xf32, #tpu.memory_space<vmem>>, %arg18: memref<1x256xf32, #tpu.memory_space<vmem>>, %arg19: memref<256x128xf32, #tpu.memory_space<vmem>>, %arg20: memref<1x128xf32, #tpu.memory_space<vmem>>, %arg21: memref<16x128xf32, #tpu.memory_space<vmem>>) attributes {dimension_semantics = [#tpu.dimension_semantics<parallel>], iteration_bounds = array<i64: 1>, scalar_prefetch = 0 : i64, scratch_operands = 0 : i64, tpu.core_type = #tpu.core_type<tc>, window_params = [{transform_indices = @transform_0, window_bounds = array<i64: 16, 128>}, {pipeline_mode = #tpu.pipeline_mode<synchronous>, transform_indices = @transform_1, window_bounds = array<i64: 128, 256>}, {pipeline_mode = #tpu.pipeline_mode<synchronous>, transform_indices = @transform_2, window_bounds = array<i64: 1, 256>}, {pipeline_mode = #tpu.pipeline_mode<synchronous>, transform_indices = @transform_3, window_bounds = array<i64: 256, 512>}, {pipeline_mode = #tpu.pipeline_mode<synchronous>, transform_indices = @transform_4, window_bounds = array<i64: 512, 256>}, {pipeline_mode = #tpu.pipeline_mode<synchronous>, transform_indices = @transform_5, window_bounds = array<i64: 1, 256>}, {pipeline_mode = #tpu.pipeline_mode<synchronous>, transform_indices = @transform_6, window_bounds = array<i64: 1, 256>}, {pipeline_mode = #tpu.pipeline_mode<synchronous>, transform_indices = @transform_7, window_bounds = array<i64: 256, 512>}, {pipeline_mode = #tpu.pipeline_mode<synchronous>, transform_indices = @transform_8, window_bounds = array<i64: 512, 256>}, {pipeline_mode = #tpu.pipeline_mode<synchronous>, transform_indices = @transform_9, window_bounds = array<i64: 1, 256>}, {pipeline_mode = #tpu.pipeline_mode<synchronous>, transform_indices = @transform_10, window_bounds = array<i64: 1, 256>}, {pipeline_mode = #tpu.pipeline_mode<synchronous>, transform_indices = @transform_11, window_bounds = array<i64: 128, 256>}, {pipeline_mode = #tpu.pipeline_mode<synchronous>, transform_indices = @transform_12, window_bounds = array<i64: 1, 256>}, {pipeline_mode = #tpu.pipeline_mode<synchronous>, transform_indices = @transform_13, window_bounds = array<i64: 256, 256>}, {pipeline_mode = #tpu.pipeline_mode<synchronous>, transform_indices = @transform_14, window_bounds = array<i64: 1, 256>}, {pipeline_mode = #tpu.pipeline_mode<synchronous>, transform_indices = @transform_15, window_bounds = array<i64: 256, 256>}, {pipeline_mode = #tpu.pipeline_mode<synchronous>, transform_indices = @transform_16, window_bounds = array<i64: 256, 256>}, {pipeline_mode = #tpu.pipeline_mode<synchronous>, transform_indices = @transform_17, window_bounds = array<i64: 1, 256>}, {pipeline_mode = #tpu.pipeline_mode<synchronous>, transform_indices = @transform_18, window_bounds = array<i64: 256, 128>}, {pipeline_mode = #tpu.pipeline_mode<synchronous>, transform_indices = @transform_19, window_bounds = array<i64: 1, 128>}, {transform_indices = @transform_20, window_bounds = array<i64: 16, 128>}]} {
    %c0 = arith.constant 0 : index
    %c0_0 = arith.constant 0 : index
    %0 = vector.load %arg1[%c0, %c0_0] : memref<16x128xf32, #tpu.memory_space<vmem>>, vector<16x128xf32>
    %c0_1 = arith.constant 0 : index
    %c0_2 = arith.constant 0 : index
    %1 = vector.load %arg2[%c0_1, %c0_2] : memref<128x256xf32, #tpu.memory_space<vmem>>, vector<128x256xf32>
    %cst = arith.constant dense<0.000000e+00> : vector<16x256xf32>
    %2 = tpu.matmul %0, %1, %cst {dimension_numbers = #tpu.dot_dimension_numbers<[1], [0], [0], [1], [0, 0, 1, 1], [], []>} : vector<16x128xf32>, vector<128x256xf32>, vector<16x256xf32> -> vector<16x256xf32>
    %c0_3 = arith.constant 0 : index
    %c0_4 = arith.constant 0 : index
    %3 = vector.load %arg3[%c0_3, %c0_4] : memref<1x256xf32, #tpu.memory_space<vmem>>, vector<1x256xf32>
    %4 = vector.broadcast %3 : vector<1x256xf32> to vector<16x256xf32>
    %5 = arith.addf %2, %4 : vector<16x256xf32>
    %cst_5 = arith.constant 5.000000e-01 : f32
    %6 = vector.broadcast %cst_5 : f32 to vector<16x256xf32>
    %7 = arith.mulf %6, %5 : vector<16x256xf32>
    %cst_6 = arith.constant 0.707106769 : f32
    %8 = vector.broadcast %cst_6 : f32 to vector<16x256xf32>
    %9 = arith.mulf %5, %8 : vector<16x256xf32>
    %10 = math.erf %9 : vector<16x256xf32>
    %cst_7 = arith.constant 1.000000e+00 : f32
    %11 = vector.broadcast %cst_7 : f32 to vector<16x256xf32>
    %12 = arith.addf %11, %10 : vector<16x256xf32>
    %13 = arith.mulf %7, %12 : vector<16x256xf32>
    %c0_8 = arith.constant 0 : index
    %c0_9 = arith.constant 0 : index
    %14 = vector.load %arg4[%c0_8, %c0_9] : memref<256x512xf32, #tpu.memory_space<vmem>>, vector<256x512xf32>
    %cst_10 = arith.constant dense<0.000000e+00> : vector<16x512xf32>
    %15 = tpu.matmul %13, %14, %cst_10 {dimension_numbers = #tpu.dot_dimension_numbers<[1], [0], [0], [1], [0, 0, 1, 1], [], []>} : vector<16x256xf32>, vector<256x512xf32>, vector<16x512xf32> -> vector<16x512xf32>
    %cst_11 = arith.constant 5.000000e-01 : f32
    %16 = vector.broadcast %cst_11 : f32 to vector<16x512xf32>
    %17 = arith.mulf %16, %15 : vector<16x512xf32>
    %cst_12 = arith.constant 0.707106769 : f32
    %18 = vector.broadcast %cst_12 : f32 to vector<16x512xf32>
    %19 = arith.mulf %15, %18 : vector<16x512xf32>
    %20 = math.erf %19 : vector<16x512xf32>
    %cst_13 = arith.constant 1.000000e+00 : f32
    %21 = vector.broadcast %cst_13 : f32 to vector<16x512xf32>
    %22 = arith.addf %21, %20 : vector<16x512xf32>
    %23 = arith.mulf %17, %22 : vector<16x512xf32>
    %c0_14 = arith.constant 0 : index
    %c0_15 = arith.constant 0 : index
    %24 = vector.load %arg5[%c0_14, %c0_15] : memref<512x256xf32, #tpu.memory_space<vmem>>, vector<512x256xf32>
    %cst_16 = arith.constant dense<0.000000e+00> : vector<16x256xf32>
    %25 = tpu.matmul %23, %24, %cst_16 {dimension_numbers = #tpu.dot_dimension_numbers<[1], [0], [0], [1], [0, 0, 1, 1], [], []>} : vector<16x512xf32>, vector<512x256xf32>, vector<16x256xf32> -> vector<16x256xf32>
    %26 = arith.addf %25, %13 : vector<16x256xf32>
    %c0_17 = arith.constant 0 : index
    %c0_18 = arith.constant 0 : index
    %27 = vector.load %arg6[%c0_17, %c0_18] : memref<1x256xf32, #tpu.memory_space<vmem>>, vector<1x256xf32>
    %c0_19 = arith.constant 0 : index
    %c0_20 = arith.constant 0 : index
    %28 = vector.load %arg7[%c0_19, %c0_20] : memref<1x256xf32, #tpu.memory_space<vmem>>, vector<1x256xf32>
    %cst_21 = arith.constant dense<0.000000e+00> : vector<16xf32>
    %29 = vector.multi_reduction <add>, %26, %cst_21 [1] : vector<16x256xf32> to vector<16xf32>
    %30 = vector.shape_cast %29 : vector<16xf32> to vector<16x1xf32>
    %cst_22 = arith.constant 2.560000e+02 : f32
    %31 = vector.broadcast %cst_22 : f32 to vector<16x1xf32>
    %32 = arith.divf %30, %31 : vector<16x1xf32>
    %33 = vector.broadcast %32 : vector<16x1xf32> to vector<16x256xf32>
    %34 = arith.subf %26, %33 : vector<16x256xf32>
    %35 = arith.mulf %34, %34 : vector<16x256xf32>
    %cst_23 = arith.constant dense<0.000000e+00> : vector<16xf32>
    %36 = vector.multi_reduction <add>, %35, %cst_23 [1] : vector<16x256xf32> to vector<16xf32>
    %37 = vector.shape_cast %36 : vector<16xf32> to vector<16x1xf32>
    %cst_24 = arith.constant 2.560000e+02 : f32
    %38 = vector.broadcast %cst_24 : f32 to vector<16x1xf32>
    %39 = arith.divf %37, %38 : vector<16x1xf32>
    %cst_25 = arith.constant 9.99999974E-6 : f32
    %40 = vector.broadcast %cst_25 : f32 to vector<16x1xf32>
    %41 = arith.addf %39, %40 : vector<16x1xf32>
    %42 = math.rsqrt %41 : vector<16x1xf32>
    %43 = vector.broadcast %42 : vector<16x1xf32> to vector<16x256xf32>
    %44 = arith.mulf %34, %43 : vector<16x256xf32>
    %45 = vector.broadcast %27 : vector<1x256xf32> to vector<16x256xf32>
    %46 = arith.mulf %44, %45 : vector<16x256xf32>
    %47 = vector.broadcast %28 : vector<1x256xf32> to vector<16x256xf32>
    %48 = arith.addf %46, %47 : vector<16x256xf32>
    %c0_26 = arith.constant 0 : index
    %c0_27 = arith.constant 0 : index
    %49 = vector.load %arg8[%c0_26, %c0_27] : memref<256x512xf32, #tpu.memory_space<vmem>>, vector<256x512xf32>
    %cst_28 = arith.constant dense<0.000000e+00> : vector<16x512xf32>
    %50 = tpu.matmul %48, %49, %cst_28 {dimension_numbers = #tpu.dot_dimension_numbers<[1], [0], [0], [1], [0, 0, 1, 1], [], []>} : vector<16x256xf32>, vector<256x512xf32>, vector<16x512xf32> -> vector<16x512xf32>
    %cst_29 = arith.constant 5.000000e-01 : f32
    %51 = vector.broadcast %cst_29 : f32 to vector<16x512xf32>
    %52 = arith.mulf %51, %50 : vector<16x512xf32>
    %cst_30 = arith.constant 0.707106769 : f32
    %53 = vector.broadcast %cst_30 : f32 to vector<16x512xf32>
    %54 = arith.mulf %50, %53 : vector<16x512xf32>
    %55 = math.erf %54 : vector<16x512xf32>
    %cst_31 = arith.constant 1.000000e+00 : f32
    %56 = vector.broadcast %cst_31 : f32 to vector<16x512xf32>
    %57 = arith.addf %56, %55 : vector<16x512xf32>
    %58 = arith.mulf %52, %57 : vector<16x512xf32>
    %c0_32 = arith.constant 0 : index
    %c0_33 = arith.constant 0 : index
    %59 = vector.load %arg9[%c0_32, %c0_33] : memref<512x256xf32, #tpu.memory_space<vmem>>, vector<512x256xf32>
    %cst_34 = arith.constant dense<0.000000e+00> : vector<16x256xf32>
    %60 = tpu.matmul %58, %59, %cst_34 {dimension_numbers = #tpu.dot_dimension_numbers<[1], [0], [0], [1], [0, 0, 1, 1], [], []>} : vector<16x512xf32>, vector<512x256xf32>, vector<16x256xf32> -> vector<16x256xf32>
    %61 = arith.addf %60, %48 : vector<16x256xf32>
    %c0_35 = arith.constant 0 : index
    %c0_36 = arith.constant 0 : index
    %62 = vector.load %arg10[%c0_35, %c0_36] : memref<1x256xf32, #tpu.memory_space<vmem>>, vector<1x256xf32>
    %c0_37 = arith.constant 0 : index
    %c0_38 = arith.constant 0 : index
    %63 = vector.load %arg11[%c0_37, %c0_38] : memref<1x256xf32, #tpu.memory_space<vmem>>, vector<1x256xf32>
    %cst_39 = arith.constant dense<0.000000e+00> : vector<16xf32>
    %64 = vector.multi_reduction <add>, %61, %cst_39 [1] : vector<16x256xf32> to vector<16xf32>
    %65 = vector.shape_cast %64 : vector<16xf32> to vector<16x1xf32>
    %cst_40 = arith.constant 2.560000e+02 : f32
    %66 = vector.broadcast %cst_40 : f32 to vector<16x1xf32>
    %67 = arith.divf %65, %66 : vector<16x1xf32>
    %68 = vector.broadcast %67 : vector<16x1xf32> to vector<16x256xf32>
    %69 = arith.subf %61, %68 : vector<16x256xf32>
    %70 = arith.mulf %69, %69 : vector<16x256xf32>
    %cst_41 = arith.constant dense<0.000000e+00> : vector<16xf32>
    %71 = vector.multi_reduction <add>, %70, %cst_41 [1] : vector<16x256xf32> to vector<16xf32>
    %72 = vector.shape_cast %71 : vector<16xf32> to vector<16x1xf32>
    %cst_42 = arith.constant 2.560000e+02 : f32
    %73 = vector.broadcast %cst_42 : f32 to vector<16x1xf32>
    %74 = arith.divf %72, %73 : vector<16x1xf32>
    %cst_43 = arith.constant 9.99999974E-6 : f32
    %75 = vector.broadcast %cst_43 : f32 to vector<16x1xf32>
    %76 = arith.addf %74, %75 : vector<16x1xf32>
    %77 = math.rsqrt %76 : vector<16x1xf32>
    %78 = vector.broadcast %77 : vector<16x1xf32> to vector<16x256xf32>
    %79 = arith.mulf %69, %78 : vector<16x256xf32>
    %80 = vector.broadcast %62 : vector<1x256xf32> to vector<16x256xf32>
    %81 = arith.mulf %79, %80 : vector<16x256xf32>
    %82 = vector.broadcast %63 : vector<1x256xf32> to vector<16x256xf32>
    %83 = arith.addf %81, %82 : vector<16x256xf32>
    %c0_44 = arith.constant 0 : index
    %c0_45 = arith.constant 0 : index
    %84 = vector.load %arg12[%c0_44, %c0_45] : memref<128x256xf32, #tpu.memory_space<vmem>>, vector<128x256xf32>
    %cst_46 = arith.constant dense<0.000000e+00> : vector<16x256xf32>
    %85 = tpu.matmul %0, %84, %cst_46 {dimension_numbers = #tpu.dot_dimension_numbers<[1], [0], [0], [1], [0, 0, 1, 1], [], []>} : vector<16x128xf32>, vector<128x256xf32>, vector<16x256xf32> -> vector<16x256xf32>
    %c0_47 = arith.constant 0 : index
    %c0_48 = arith.constant 0 : index
    %86 = vector.load %arg13[%c0_47, %c0_48] : memref<1x256xf32, #tpu.memory_space<vmem>>, vector<1x256xf32>
    %87 = vector.broadcast %86 : vector<1x256xf32> to vector<16x256xf32>
    %88 = arith.addf %85, %87 : vector<16x256xf32>
    %cst_49 = arith.constant 5.000000e-01 : f32
    %89 = vector.broadcast %cst_49 : f32 to vector<16x256xf32>
    %90 = arith.mulf %89, %88 : vector<16x256xf32>
    %cst_50 = arith.constant 0.707106769 : f32
    %91 = vector.broadcast %cst_50 : f32 to vector<16x256xf32>
    %92 = arith.mulf %88, %91 : vector<16x256xf32>
    %93 = math.erf %92 : vector<16x256xf32>
    %cst_51 = arith.constant 1.000000e+00 : f32
    %94 = vector.broadcast %cst_51 : f32 to vector<16x256xf32>
    %95 = arith.addf %94, %93 : vector<16x256xf32>
    %96 = arith.mulf %90, %95 : vector<16x256xf32>
    %c0_52 = arith.constant 0 : index
    %c0_53 = arith.constant 0 : index
    %97 = vector.load %arg14[%c0_52, %c0_53] : memref<256x256xf32, #tpu.memory_space<vmem>>, vector<256x256xf32>
    %cst_54 = arith.constant dense<0.000000e+00> : vector<16x256xf32>
    %98 = tpu.matmul %96, %97, %cst_54 {dimension_numbers = #tpu.dot_dimension_numbers<[1], [0], [0], [1], [0, 0, 1, 1], [], []>} : vector<16x256xf32>, vector<256x256xf32>, vector<16x256xf32> -> vector<16x256xf32>
    %c0_55 = arith.constant 0 : index
    %c0_56 = arith.constant 0 : index
    %99 = vector.load %arg15[%c0_55, %c0_56] : memref<1x256xf32, #tpu.memory_space<vmem>>, vector<1x256xf32>
    %100 = vector.broadcast %99 : vector<1x256xf32> to vector<16x256xf32>
    %101 = arith.addf %98, %100 : vector<16x256xf32>
    %cst_57 = arith.constant 5.000000e-01 : f32
    %102 = vector.broadcast %cst_57 : f32 to vector<16x256xf32>
    %103 = arith.mulf %102, %101 : vector<16x256xf32>
    %cst_58 = arith.constant 0.707106769 : f32
    %104 = vector.broadcast %cst_58 : f32 to vector<16x256xf32>
    %105 = arith.mulf %101, %104 : vector<16x256xf32>
    %106 = math.erf %105 : vector<16x256xf32>
    %cst_59 = arith.constant 1.000000e+00 : f32
    %107 = vector.broadcast %cst_59 : f32 to vector<16x256xf32>
    %108 = arith.addf %107, %106 : vector<16x256xf32>
    %109 = arith.mulf %103, %108 : vector<16x256xf32>
    %c0_60 = arith.constant 0 : index
    %c0_61 = arith.constant 0 : index
    %110 = vector.load %arg16[%c0_60, %c0_61] : memref<256x256xf32, #tpu.memory_space<vmem>>, vector<256x256xf32>
    %cst_62 = arith.constant dense<0.000000e+00> : vector<16x256xf32>
    %111 = tpu.matmul %83, %110, %cst_62 {dimension_numbers = #tpu.dot_dimension_numbers<[1], [0], [0], [1], [0, 0, 1, 1], [], []>} : vector<16x256xf32>, vector<256x256xf32>, vector<16x256xf32> -> vector<16x256xf32>
    %c0_63 = arith.constant 0 : index
    %c0_64 = arith.constant 0 : index
    %112 = vector.load %arg17[%c0_63, %c0_64] : memref<256x256xf32, #tpu.memory_space<vmem>>, vector<256x256xf32>
    %cst_65 = arith.constant dense<0.000000e+00> : vector<16x256xf32>
    %113 = tpu.matmul %109, %112, %cst_65 {dimension_numbers = #tpu.dot_dimension_numbers<[1], [0], [0], [1], [0, 0, 1, 1], [], []>} : vector<16x256xf32>, vector<256x256xf32>, vector<16x256xf32> -> vector<16x256xf32>
    %114 = arith.addf %111, %113 : vector<16x256xf32>
    %c0_66 = arith.constant 0 : index
    %c0_67 = arith.constant 0 : index
    %115 = vector.load %arg18[%c0_66, %c0_67] : memref<1x256xf32, #tpu.memory_space<vmem>>, vector<1x256xf32>
    %116 = vector.broadcast %115 : vector<1x256xf32> to vector<16x256xf32>
    %117 = arith.addf %114, %116 : vector<16x256xf32>
    %cst_68 = arith.constant 5.000000e-01 : f32
    %118 = vector.broadcast %cst_68 : f32 to vector<16x256xf32>
    %119 = arith.mulf %118, %117 : vector<16x256xf32>
    %cst_69 = arith.constant 0.707106769 : f32
    %120 = vector.broadcast %cst_69 : f32 to vector<16x256xf32>
    %121 = arith.mulf %117, %120 : vector<16x256xf32>
    %122 = math.erf %121 : vector<16x256xf32>
    %cst_70 = arith.constant 1.000000e+00 : f32
    %123 = vector.broadcast %cst_70 : f32 to vector<16x256xf32>
    %124 = arith.addf %123, %122 : vector<16x256xf32>
    %125 = arith.mulf %119, %124 : vector<16x256xf32>
    %c0_71 = arith.constant 0 : index
    %c0_72 = arith.constant 0 : index
    %126 = vector.load %arg19[%c0_71, %c0_72] : memref<256x128xf32, #tpu.memory_space<vmem>>, vector<256x128xf32>
    %cst_73 = arith.constant dense<0.000000e+00> : vector<16x128xf32>
    %127 = tpu.matmul %125, %126, %cst_73 {dimension_numbers = #tpu.dot_dimension_numbers<[1], [0], [0], [1], [0, 0, 1, 1], [], []>} : vector<16x256xf32>, vector<256x128xf32>, vector<16x128xf32> -> vector<16x128xf32>
    %c0_74 = arith.constant 0 : index
    %c0_75 = arith.constant 0 : index
    %128 = vector.load %arg20[%c0_74, %c0_75] : memref<1x128xf32, #tpu.memory_space<vmem>>, vector<1x128xf32>
    %129 = vector.broadcast %128 : vector<1x128xf32> to vector<16x128xf32>
    %130 = arith.addf %127, %129 : vector<16x128xf32>
    %c0_76 = arith.constant 0 : index
    %c0_77 = arith.constant 0 : index
    %131 = vector.load %arg21[%c0_76, %c0_77] : memref<16x128xf32, #tpu.memory_space<vmem>>, vector<16x128xf32>
    tpu.vector_store %arg21[%c0_76, %c0_77], %130 {strides = array<i32>} : memref<16x128xf32, #tpu.memory_space<vmem>>, vector<16x128xf32>,
    return
  }
  func.func @transform_0(%arg0: i32) -> (i32, i32) {
    %c0_i32 = arith.constant 0 : i32
    %c0_i32_0 = arith.constant 0 : i32
    return %arg0, %c0_i32 : i32, i32
  }
  func.func @transform_1(%arg0: i32) -> (i32, i32) {
    %c0_i32 = arith.constant 0 : i32
    %c0_i32_0 = arith.constant 0 : i32
    %c0_i32_1 = arith.constant 0 : i32
    return %c0_i32, %c0_i32_0 : i32, i32
  }
  func.func @transform_2(%arg0: i32) -> (i32, i32) {
    %c0_i32 = arith.constant 0 : i32
    %c0_i32_0 = arith.constant 0 : i32
    %c0_i32_1 = arith.constant 0 : i32
    return %c0_i32, %c0_i32_0 : i32, i32
  }
  func.func @transform_3(%arg0: i32) -> (i32, i32) {
    %c0_i32 = arith.constant 0 : i32
    %c0_i32_0 = arith.constant 0 : i32
    %c0_i32_1 = arith.constant 0 : i32
    return %c0_i32, %c0_i32_0 : i32, i32
  }
  func.func @transform_4(%arg0: i32) -> (i32, i32) {
    %c0_i32 = arith.constant 0 : i32
    %c0_i32_0 = arith.constant 0 : i32
    %c0_i32_1 = arith.constant 0 : i32
    return %c0_i32, %c0_i32_0 : i32, i32
  }
  func.func @transform_5(%arg0: i32) -> (i32, i32) {
    %c0_i32 = arith.constant 0 : i32
    %c0_i32_0 = arith.constant 0 : i32
    %c0_i32_1 = arith.constant 0 : i32
    return %c0_i32, %c0_i32_0 : i32, i32
  }
  func.func @transform_6(%arg0: i32) -> (i32, i32) {
    %c0_i32 = arith.constant 0 : i32
    %c0_i32_0 = arith.constant 0 : i32
    %c0_i32_1 = arith.constant 0 : i32
    return %c0_i32, %c0_i32_0 : i32, i32
  }
  func.func @transform_7(%arg0: i32) -> (i32, i32) {
    %c0_i32 = arith.constant 0 : i32
    %c0_i32_0 = arith.constant 0 : i32
    %c0_i32_1 = arith.constant 0 : i32
    return %c0_i32, %c0_i32_0 : i32, i32
  }
  func.func @transform_8(%arg0: i32) -> (i32, i32) {
    %c0_i32 = arith.constant 0 : i32
    %c0_i32_0 = arith.constant 0 : i32
    %c0_i32_1 = arith.constant 0 : i32
    return %c0_i32, %c0_i32_0 : i32, i32
  }
  func.func @transform_9(%arg0: i32) -> (i32, i32) {
    %c0_i32 = arith.constant 0 : i32
    %c0_i32_0 = arith.constant 0 : i32
    %c0_i32_1 = arith.constant 0 : i32
    return %c0_i32, %c0_i32_0 : i32, i32
  }
  func.func @transform_10(%arg0: i32) -> (i32, i32) {
    %c0_i32 = arith.constant 0 : i32
    %c0_i32_0 = arith.constant 0 : i32
    %c0_i32_1 = arith.constant 0 : i32
    return %c0_i32, %c0_i32_0 : i32, i32
  }
  func.func @transform_11(%arg0: i32) -> (i32, i32) {
    %c0_i32 = arith.constant 0 : i32
    %c0_i32_0 = arith.constant 0 : i32
    %c0_i32_1 = arith.constant 0 : i32
    return %c0_i32, %c0_i32_0 : i32, i32
  }
  func.func @transform_12(%arg0: i32) -> (i32, i32) {
    %c0_i32 = arith.constant 0 : i32
    %c0_i32_0 = arith.constant 0 : i32
    %c0_i32_1 = arith.constant 0 : i32
    return %c0_i32, %c0_i32_0 : i32, i32
  }
  func.func @transform_13(%arg0: i32) -> (i32, i32) {
    %c0_i32 = arith.constant 0 : i32
    %c0_i32_0 = arith.constant 0 : i32
    %c0_i32_1 = arith.constant 0 : i32
    return %c0_i32, %c0_i32_0 : i32, i32
  }
  func.func @transform_14(%arg0: i32) -> (i32, i32) {
    %c0_i32 = arith.constant 0 : i32
    %c0_i32_0 = arith.constant 0 : i32
    %c0_i32_1 = arith.constant 0 : i32
    return %c0_i32, %c0_i32_0 : i32, i32
  }
  func.func @transform_15(%arg0: i32) -> (i32, i32) {
    %c0_i32 = arith.constant 0 : i32
    %c0_i32_0 = arith.constant 0 : i32
    %c0_i32_1 = arith.constant 0 : i32
    return %c0_i32, %c0_i32_0 : i32, i32
  }
  func.func @transform_16(%arg0: i32) -> (i32, i32) {
    %c0_i32 = arith.constant 0 : i32
    %c0_i32_0 = arith.constant 0 : i32
    %c0_i32_1 = arith.constant 0 : i32
    return %c0_i32, %c0_i32_0 : i32, i32
  }
  func.func @transform_17(%arg0: i32) -> (i32, i32) {
    %c0_i32 = arith.constant 0 : i32
    %c0_i32_0 = arith.constant 0 : i32
    %c0_i32_1 = arith.constant 0 : i32
    return %c0_i32, %c0_i32_0 : i32, i32
  }
  func.func @transform_18(%arg0: i32) -> (i32, i32) {
    %c0_i32 = arith.constant 0 : i32
    %c0_i32_0 = arith.constant 0 : i32
    %c0_i32_1 = arith.constant 0 : i32
    return %c0_i32, %c0_i32_0 : i32, i32
  }
  func.func @transform_19(%arg0: i32) -> (i32, i32) {
    %c0_i32 = arith.constant 0 : i32
    %c0_i32_0 = arith.constant 0 : i32
    %c0_i32_1 = arith.constant 0 : i32
    return %c0_i32, %c0_i32_0 : i32, i32
  }
  func.func @transform_20(%arg0: i32) -> (i32, i32) {
    %c0_i32 = arith.constant 0 : i32
    %c0_i32_0 = arith.constant 0 : i32
    return %arg0, %c0_i32 : i32, i32
  }
}

</mosaic_0001>

<llo_original>
// kernel: tpu_custom_call.1
$region0: #{tpu_custom_call.1}
  #allocation0 [shape = 'u32[]', space=smem, size = 0x4, offset = 0x4, fixed_abs, tag = 'smem constant byte address 0x4 - core index']
  #allocation1 [shape = 'u32[72,128]{1,0:T(1,128)}', space=vmem, size = 0x9000, scoped, tag = 'internal scratch']
  %s0 = inlined_call_operand.hbm [shape: f32[16,128], index: 0, kind: input, shape index: {}]
  %s1 = inlined_call_operand.hbm [shape: f32[128,256], index: 1, kind: input, shape index: {}]
  %s2 = inlined_call_operand.hbm [shape: f32[1,256], index: 2, kind: input, shape index: {}]
  %s3 = inlined_call_operand.hbm [shape: f32[256,512], index: 3, kind: input, shape index: {}]
  %s4 = inlined_call_operand.hbm [shape: f32[512,256], index: 4, kind: input, shape index: {}]
  %s5 = inlined_call_operand.vmem [shape: f32[1,256], index: 5, kind: input, shape index: {}]
  %s6 = inlined_call_operand.vmem [shape: f32[1,256], index: 6, kind: input, shape index: {}]
  %s7 = inlined_call_operand.hbm [shape: f32[256,512], index: 7, kind: input, shape index: {}]
  %s8 = inlined_call_operand.hbm [shape: f32[512,256], index: 8, kind: input, shape index: {}]
  %s9 = inlined_call_operand.vmem [shape: f32[1,256], index: 9, kind: input, shape index: {}]
  %s10 = inlined_call_operand.vmem [shape: f32[1,256], index: 10, kind: input, shape index: {}]
  %s11 = inlined_call_operand.hbm [shape: f32[128,256], index: 11, kind: input, shape index: {}]
  %s12 = inlined_call_operand.vmem [shape: f32[1,256], index: 12, kind: input, shape index: {}]
  %s13 = inlined_call_operand.hbm [shape: f32[256,256], index: 13, kind: input, shape index: {}]
  %s14 = inlined_call_operand.vmem [shape: f32[1,256], index: 14, kind: input, shape index: {}]
  %s15 = inlined_call_operand.hbm [shape: f32[256,256], index: 15, kind: input, shape index: {}]
  %s16 = inlined_call_operand.hbm [shape: f32[256,256], index: 16, kind: input, shape index: {}]
  %s17 = inlined_call_operand.vmem [shape: f32[1,256], index: 17, kind: input, shape index: {}]
  %s18 = inlined_call_operand.hbm [shape: f32[256,128], index: 18, kind: input, shape index: {}]
  %s19 = inlined_call_operand.vmem [shape: f32[1,128], index: 19, kind: input, shape index: {}]
  %s20 = inlined_call_operand.hbm [shape: f32[16,128], index: 20, kind: output, shape index: {}]
  %s21 = sld [smem:[#allocation0]]
  $region138: #{tpu_custom_call.1} parent=0
    _
  %s23 = ssub.s32 1, %s21
  %s24 = scalar_select 0, %s23, %s21
  $region1: #{tpu_custom_call.1} parent=0
    #allocation2 [shape = 'u8[8192]{0}', space=vmem, size = 0x2000, scoped, tag = 'input window, operand 0, single buffered']
    #allocation3 [shape = 's32[1]{0}', space=sflag, size = 0x4, scoped, tag = 'scoped memory for tpu_custom_call.1']
    #allocation4 [shape = 's32[1]{0}', space=sflag, size = 0x4, scoped, tag = 'scoped memory for tpu_custom_call.1']
    #allocation5 [shape = 'u8[131072]{0}', space=vmem, size = 0x20000, scoped, tag = 'input window, operand 1, single buffered']
    #allocation6 [shape = 's32[1]{0}', space=sflag, size = 0x4, scoped, tag = 'scoped memory for tpu_custom_call.1']
    #allocation7 [shape = 'u8[1024]{0}', space=vmem, size = 0x400, scoped, tag = 'input window, operand 2, single buffered']
    #allocation8 [shape = 'u8[524288]{0}', space=vmem, size = 0x80000, scoped, tag = 'input window, operand 3, single buffered']
    #allocation9 [shape = 's32[1]{0}', space=sflag, size = 0x4, scoped, tag = 'scoped memory for tpu_custom_call.1']
    #allocation10 [shape = 'u8[524288]{0}', space=vmem, size = 0x80000, scoped, tag = 'input window, operand 4, single buffered']
    #allocation11 [shape = 'u8[524288]{0}', space=vmem, size = 0x80000, scoped, tag = 'input window, operand 7, single buffered']
    #allocation12 [shape = 's32[1]{0}', space=sflag, size = 0x4, scoped, tag = 'scoped memory for tpu_custom_call.1']
    #allocation13 [shape = 'u8[524288]{0}', space=vmem, size = 0x80000, scoped, tag = 'input window, operand 8, single buffered']
    #allocation14 [shape = 'u8[131072]{0}', space=vmem, size = 0x20000, scoped, tag = 'input window, operand 11, single buffered']
    #allocation15 [shape = 's32[1]{0}', space=sflag, size = 0x4, scoped, tag = 'scoped memory for tpu_custom_call.1']
    #allocation16 [shape = 'u8[262144]{0}', space=vmem, size = 0x40000, scoped, tag = 'input window, operand 13, single buffered']
    #allocation17 [shape = 'u8[262144]{0}', space=vmem, size = 0x40000, scoped, tag = 'input window, operand 15, single buffered']
    #allocation18 [shape = 's32[1]{0}', space=sflag, size = 0x4, scoped, tag = 'scoped memory for tpu_custom_call.1']
    #allocation19 [shape = 'u8[262144]{0}', space=vmem, size = 0x40000, scoped, tag = 'input window, operand 16, single buffered']
    #allocation20 [shape = 'u8[131072]{0}', space=vmem, size = 0x20000, scoped, tag = 'input window, operand 18, single buffered']
    #allocation21 [shape = 's32[1]{0}', space=sflag, size = 0x4, scoped, tag = 'scoped memory for tpu_custom_call.1']
    #allocation22 [shape = 'u8[8192]{0}', space=vmem, size = 0x2000, scoped, tag = 'output window, operand 0, single buffered']
    %25 = vsyncpa [#allocation3], 0
    %26 = vsyncpa [#allocation6], 0
    %27 = vsyncpa [#allocation9], 0
    %28 = vsyncpa [#allocation12], 0
    %29 = vsyncpa [#allocation15], 0
    %30 = vsyncpa [#allocation18], 0
    %31 = vsyncpa [#allocation21], 0
    %32 = vsyncpa [#allocation4], 0
    // Predicated region
    $region2: #{tpu_custom_call.1} parent=1 // pred_check
      _
    $region3: #{tpu_custom_call.1} parent=1 // pred_check_branch
      %34 = sbr.rel (0) target = $region5
    $region4: #{tpu_custom_call.1} parent=1 // pred_region
      %36 = vsyncadd [#allocation3], 0
      %s37 = sshll.u32 %s0, 4
      %s38 = int_to_ptr.hbm [resolvable:$true] %s37
      %s39 = sshll.u32 [#allocation2], 4
      %s40 = int_to_ptr.vmem [resolvable:$true] %s39
      %45 = dma.hbm_to_vmem [thread:$0]  %s38, 256, %s40, [#allocation3], 128, 128, 8
    $region5: #{tpu_custom_call.1} parent=1 // pred_fallthru
      _
    // Predicated region
    $region6: #{tpu_custom_call.1} parent=1 // pred_check
      _
    $region7: #{tpu_custom_call.1} parent=1 // pred_check_branch
      %47 = sbr.rel (0) target = $region9
    $region8: #{tpu_custom_call.1} parent=1 // pred_region
      %49 = vsyncadd [#allocation6], 0
      %s50 = sshll.u32 %s1, 4
      %s51 = int_to_ptr.hbm [resolvable:$true] %s50
      %s52 = sshll.u32 [#allocation5], 4
      %s53 = int_to_ptr.vmem [resolvable:$true] %s52
      %58 = dma.hbm_to_vmem [thread:$0]  %s51, 4096, %s53, [#allocation6], 256, 256, 16
    $region9: #{tpu_custom_call.1} parent=1 // pred_fallthru
      _
    // Predicated region
    $region10: #{tpu_custom_call.1} parent=1 // pred_check
      _
    $region11: #{tpu_custom_call.1} parent=1 // pred_check_branch
      %60 = sbr.rel (0) target = $region13
    $region12: #{tpu_custom_call.1} parent=1 // pred_region
      %62 = vsyncadd [#allocation6], 0
      %s64 = sshll.u32 %s2, 4
      %s65 = int_to_ptr.hbm [resolvable:$true] %s64
      %s66 = sshll.u32 [#allocation7], 4
      %s67 = int_to_ptr.vmem [resolvable:$true] %s66
      %69 = dma.hbm_to_vmem [thread:$0]  %s65, 32, %s67, [#allocation6]
    $region13: #{tpu_custom_call.1} parent=1 // pred_fallthru
      _
    // Predicated region
    $region14: #{tpu_custom_call.1} parent=1 // pred_check
      _
    $region15: #{tpu_custom_call.1} parent=1 // pred_check_branch
      %71 = sbr.rel (0) target = $region17
    $region16: #{tpu_custom_call.1} parent=1 // pred_region
      %73 = vsyncadd [#allocation9], 0
      %s74 = sshll.u32 %s3, 4
      %s75 = int_to_ptr.hbm [resolvable:$true] %s74
      %s76 = sshll.u32 [#allocation8], 4
      %s77 = int_to_ptr.vmem [resolvable:$true] %s76
      %82 = dma.hbm_to_vmem [thread:$0]  %s75, 16384, %s77, [#allocation9], 512, 512, 32
    $region17: #{tpu_custom_call.1} parent=1 // pred_fallthru
      _
    // Predicated region
    $region18: #{tpu_custom_call.1} parent=1 // pred_check
      _
    $region19: #{tpu_custom_call.1} parent=1 // pred_check_branch
      %84 = sbr.rel (0) target = $region21
    $region20: #{tpu_custom_call.1} parent=1 // pred_region
      %86 = vsyncadd [#allocation9], 0
      %s87 = sshll.u32 %s4, 4
      %s88 = int_to_ptr.hbm [resolvable:$true] %s87
      %s89 = sshll.u32 [#allocation10], 4
      %s90 = int_to_ptr.vmem [resolvable:$true] %s89
      %95 = dma.hbm_to_vmem [thread:$0]  %s88, 16384, %s90, [#allocation9], 256, 256, 16
    $region21: #{tpu_custom_call.1} parent=1 // pred_fallthru
      _
    // Predicated region
    $region22: #{tpu_custom_call.1} parent=1 // pred_check
      _
    $region23: #{tpu_custom_call.1} parent=1 // pred_check_branch
      %97 = sbr.rel (0) target = $region25
    $region24: #{tpu_custom_call.1} parent=1 // pred_region
      _
    $region25: #{tpu_custom_call.1} parent=1 // pred_fallthru
      _
    // Predicated region
    $region26: #{tpu_custom_call.1} parent=1 // pred_check
      _
    $region27: #{tpu_custom_call.1} parent=1 // pred_check_branch
      %99 = sbr.rel (0) target = $region29
    $region28: #{tpu_custom_call.1} parent=1 // pred_region
      _
    $region29: #{tpu_custom_call.1} parent=1 // pred_fallthru
      _
    // Predicated region
    $region30: #{tpu_custom_call.1} parent=1 // pred_check
      _
    $region31: #{tpu_custom_call.1} parent=1 // pred_check_branch
      %101 = sbr.rel (0) target = $region33
    $region32: #{tpu_custom_call.1} parent=1 // pred_region
      %103 = vsyncadd [#allocation12], 0
      %s104 = sshll.u32 %s7, 4
      %s105 = int_to_ptr.hbm [resolvable:$true] %s104
      %s106 = sshll.u32 [#allocation11], 4
      %s107 = int_to_ptr.vmem [resolvable:$true] %s106
      %112 = dma.hbm_to_vmem [thread:$0]  %s105, 16384, %s107, [#allocation12], 512, 512, 32
    $region33: #{tpu_custom_call.1} parent=1 // pred_fallthru
      _
    // Predicated region
    $region34: #{tpu_custom_call.1} parent=1 // pred_check
      _
    $region35: #{tpu_custom_call.1} parent=1 // pred_check_branch
      %114 = sbr.rel (0) target = $region37
    $region36: #{tpu_custom_call.1} parent=1 // pred_region
      %116 = vsyncadd [#allocation12], 0
      %s117 = sshll.u32 %s8, 4
      %s118 = int_to_ptr.hbm [resolvable:$true] %s117
      %s119 = sshll.u32 [#allocation13], 4
      %s120 = int_to_ptr.vmem [resolvable:$true] %s119
      %125 = dma.hbm_to_vmem [thread:$0]  %s118, 16384, %s120, [#allocation12], 256, 256, 16
    $region37: #{tpu_custom_call.1} parent=1 // pred_fallthru
      _
    // Predicated region
    $region38: #{tpu_custom_call.1} parent=1 // pred_check
      _
    $region39: #{tpu_custom_call.1} parent=1 // pred_check_branch
      %127 = sbr.rel (0) target = $region41
    $region40: #{tpu_custom_call.1} parent=1 // pred_region
      _
    $region41: #{tpu_custom_call.1} parent=1 // pred_fallthru
      _
    // Predicated region
    $region42: #{tpu_custom_call.1} parent=1 // pred_check
      _
    $region43: #{tpu_custom_call.1} parent=1 // pred_check_branch
      %129 = sbr.rel (0) target = $region45
    $region44: #{tpu_custom_call.1} parent=1 // pred_region
      _
    $region45: #{tpu_custom_call.1} parent=1 // pred_fallthru
      _
    // Predicated region
    $region46: #{tpu_custom_call.1} parent=1 // pred_check
      _
    $region47: #{tpu_custom_call.1} parent=1 // pred_check_branch
      %131 = sbr.rel (0) target = $region49
    $region48: #{tpu_custom_call.1} parent=1 // pred_region
      %133 = vsyncadd [#allocation15], 0
      %s134 = sshll.u32 %s11, 4
      %s135 = int_to_ptr.hbm [resolvable:$true] %s134
      %s136 = sshll.u32 [#allocation14], 4
      %s137 = int_to_ptr.vmem [resolvable:$true] %s136
      %142 = dma.hbm_to_vmem [thread:$0]  %s135, 4096, %s137, [#allocation15], 256, 256, 16
    $region49: #{tpu_custom_call.1} parent=1 // pred_fallthru
      _
    // Predicated region
    $region50: #{tpu_custom_call.1} parent=1 // pred_check
      _
    $region51: #{tpu_custom_call.1} parent=1 // pred_check_branch
      %144 = sbr.rel (0) target = $region53
    $region52: #{tpu_custom_call.1} parent=1 // pred_region
      _
    $region53: #{tpu_custom_call.1} parent=1 // pred_fallthru
      _
    // Predicated region
    $region54: #{tpu_custom_call.1} parent=1 // pred_check
      _
    $region55: #{tpu_custom_call.1} parent=1 // pred_check_branch
      %146 = sbr.rel (0) target = $region57
    $region56: #{tpu_custom_call.1} parent=1 // pred_region
      %148 = vsyncadd [#allocation15], 0
      %s149 = sshll.u32 %s13, 4
      %s150 = int_to_ptr.hbm [resolvable:$true] %s149
      %s151 = sshll.u32 [#allocation16], 4
      %s152 = int_to_ptr.vmem [resolvable:$true] %s151
      %157 = dma.hbm_to_vmem [thread:$0]  %s150, 8192, %s152, [#allocation15], 256, 256, 16
    $region57: #{tpu_custom_call.1} parent=1 // pred_fallthru
      _
    // Predicated region
    $region58: #{tpu_custom_call.1} parent=1 // pred_check
      _
    $region59: #{tpu_custom_call.1} parent=1 // pred_check_branch
      %159 = sbr.rel (0) target = $region61
    $region60: #{tpu_custom_call.1} parent=1 // pred_region
      _
    $region61: #{tpu_custom_call.1} parent=1 // pred_fallthru
      _
    // Predicated region
    $region62: #{tpu_custom_call.1} parent=1 // pred_check
      _
    $region63: #{tpu_custom_call.1} parent=1 // pred_check_branch
      %161 = sbr.rel (0) target = $region65
    $region64: #{tpu_custom_call.1} parent=1 // pred_region
      %163 = vsyncadd [#allocation18], 0
      %s164 = sshll.u32 %s15, 4
      %s165 = int_to_ptr.hbm [resolvable:$true] %s164
      %s166 = sshll.u32 [#allocation17], 4
      %s167 = int_to_ptr.vmem [resolvable:$true] %s166
      %172 = dma.hbm_to_vmem [thread:$0]  %s165, 8192, %s167, [#allocation18], 256, 256, 16
    $region65: #{tpu_custom_call.1} parent=1 // pred_fallthru
      _
    // Predicated region
    $region66: #{tpu_custom_call.1} parent=1 // pred_check
      _
    $region67: #{tpu_custom_call.1} parent=1 // pred_check_branch
      %174 = sbr.rel (0) target = $region69
    $region68: #{tpu_custom_call.1} parent=1 // pred_region
      %176 = vsyncadd [#allocation18], 0
      %s177 = sshll.u32 %s16, 4
      %s178 = int_to_ptr.hbm [resolvable:$true] %s177
      %s179 = sshll.u32 [#allocation19], 4
      %s180 = int_to_ptr.vmem [resolvable:$true] %s179
      %185 = dma.hbm_to_vmem [thread:$0]  %s178, 8192, %s180, [#allocation18], 256, 256, 16
    $region69: #{tpu_custom_call.1} parent=1 // pred_fallthru
      _
    // Predicated region
    $region70: #{tpu_custom_call.1} parent=1 // pred_check
      _
    $region71: #{tpu_custom_call.1} parent=1 // pred_check_branch
      %187 = sbr.rel (0) target = $region73
    $region72: #{tpu_custom_call.1} parent=1 // pred_region
      _
    $region73: #{tpu_custom_call.1} parent=1 // pred_fallthru
      _
    // Predicated region
    $region74: #{tpu_custom_call.1} parent=1 // pred_check
      _
    $region75: #{tpu_custom_call.1} parent=1 // pred_check_branch
      %189 = sbr.rel (0) target = $region77
    $region76: #{tpu_custom_call.1} parent=1 // pred_region
      %191 = vsyncadd [#allocation21], 0
      %s192 = sshll.u32 %s18, 4
      %s193 = int_to_ptr.hbm [resolvable:$true] %s192
      %s194 = sshll.u32 [#allocation20], 4
      %s195 = int_to_ptr.vmem [resolvable:$true] %s194
      %200 = dma.hbm_to_vmem [thread:$0]  %s193, 4096, %s195, [#allocation21], 128, 128, 8
    $region77: #{tpu_custom_call.1} parent=1 // pred_fallthru
      _
    // Predicated region
    $region78: #{tpu_custom_call.1} parent=1 // pred_check
      _
    $region79: #{tpu_custom_call.1} parent=1 // pred_check_branch
      %202 = sbr.rel (0) target = $region81
    $region80: #{tpu_custom_call.1} parent=1 // pred_region
      _
    $region81: #{tpu_custom_call.1} parent=1 // pred_fallthru
      _
    // Predicated region
    $region82: #{tpu_custom_call.1} parent=1 // pred_check
      _
    $region83: #{tpu_custom_call.1} parent=1 // pred_check_branch
      %204 = sbr.rel (0) target = $region85
    $region84: #{tpu_custom_call.1} parent=1 // pred_region
      %206 = dma.done [#allocation3], 256
    $region85: #{tpu_custom_call.1} parent=1 // pred_fallthru
      _
    // Predicated region
    $region86: #{tpu_custom_call.1} parent=1 // pred_check
      _
    $region87: #{tpu_custom_call.1} parent=1 // pred_check_branch
      %208 = sbr.rel (0) target = $region89
    $region88: #{tpu_custom_call.1} parent=1 // pred_region
      %210 = dma.done [#allocation6], 4096
    $region89: #{tpu_custom_call.1} parent=1 // pred_fallthru
      _
    // Predicated region
    $region90: #{tpu_custom_call.1} parent=1 // pred_check
      _
    $region91: #{tpu_custom_call.1} parent=1 // pred_check_branch
      %212 = sbr.rel (0) target = $region93
    $region92: #{tpu_custom_call.1} parent=1 // pred_region
      %214 = dma.done [#allocation6], 32
    $region93: #{tpu_custom_call.1} parent=1 // pred_fallthru
      _
    // Predicated region
    $region94: #{tpu_custom_call.1} parent=1 // pred_check
      _
    $region95: #{tpu_custom_call.1} parent=1 // pred_check_branch
      %216 = sbr.rel (0) target = $region97
    $region96: #{tpu_custom_call.1} parent=1 // pred_region
      %218 = dma.done [#allocation9], 16384
    $region97: #{tpu_custom_call.1} parent=1 // pred_fallthru
      _
    // Predicated region
    $region98: #{tpu_custom_call.1} parent=1 // pred_check
      _
    $region99: #{tpu_custom_call.1} parent=1 // pred_check_branch
      %220 = sbr.rel (0) target = $region101
    $region100: #{tpu_custom_call.1} parent=1 // pred_region
      %222 = dma.done [#allocation9], 16384
    $region101: #{tpu_custom_call.1} parent=1 // pred_fallthru
      _
    // Predicated region
    $region102: #{tpu_custom_call.1} parent=1 // pred_check
      _
    $region103: #{tpu_custom_call.1} parent=1 // pred_check_branch
      %224 = sbr.rel (0) target = $region105
    $region104: #{tpu_custom_call.1} parent=1 // pred_region
      %226 = dma.done [#allocation12], 16384
    $region105: #{tpu_custom_call.1} parent=1 // pred_fallthru
      _
    // Predicated region
    $region106: #{tpu_custom_call.1} parent=1 // pred_check
      _
    $region107: #{tpu_custom_call.1} parent=1 // pred_check_branch
      %228 = sbr.rel (0) target = $region109
    $region108: #{tpu_custom_call.1} parent=1 // pred_region
      %230 = dma.done [#allocation12], 16384
    $region109: #{tpu_custom_call.1} parent=1 // pred_fallthru
      _
    // Predicated region
    $region110: #{tpu_custom_call.1} parent=1 // pred_check
      _
    $region111: #{tpu_custom_call.1} parent=1 // pred_check_branch
      %232 = sbr.rel (0) target = $region113
    $region112: #{tpu_custom_call.1} parent=1 // pred_region
      %234 = dma.done [#allocation15], 4096
    $region113: #{tpu_custom_call.1} parent=1 // pred_fallthru
      _
    // Predicated region
    $region114: #{tpu_custom_call.1} parent=1 // pred_check
      _
    $region115: #{tpu_custom_call.1} parent=1 // pred_check_branch
      %236 = sbr.rel (0) target = $region117
    $region116: #{tpu_custom_call.1} parent=1 // pred_region
      %238 = dma.done [#allocation15], 8192
    $region117: #{tpu_custom_call.1} parent=1 // pred_fallthru
      _
    // Predicated region
    $region118: #{tpu_custom_call.1} parent=1 // pred_check
      _
    $region119: #{tpu_custom_call.1} parent=1 // pred_check_branch
      %240 = sbr.rel (0) target = $region121
    $region120: #{tpu_custom_call.1} parent=1 // pred_region
      %242 = dma.done [#allocation18], 8192
    $region121: #{tpu_custom_call.1} parent=1 // pred_fallthru
      _
    // Predicated region
    $region122: #{tpu_custom_call.1} parent=1 // pred_check
      _
    $region123: #{tpu_custom_call.1} parent=1 // pred_check_branch
      %244 = sbr.rel (0) target = $region125
    $region124: #{tpu_custom_call.1} parent=1 // pred_region
      %246 = dma.done [#allocation18], 8192
    $region125: #{tpu_custom_call.1} parent=1 // pred_fallthru
      _
    // Predicated region
    $region126: #{tpu_custom_call.1} parent=1 // pred_check
      _
    $region127: #{tpu_custom_call.1} parent=1 // pred_check_branch
      %248 = sbr.rel (0) target = $region129
    $region128: #{tpu_custom_call.1} parent=1 // pred_region
      %250 = dma.done [#allocation21], 4096
    $region129: #{tpu_custom_call.1} parent=1 // pred_fallthru
      _
    %v251 = vld [vmem:[#allocation2] sm:$0xff]
    %v252 = vld [vmem:[#allocation2 + $0x8] sm:$0xff]
    %v253 = vld [vmem:[#allocation5] sm:$0xff]
    %v254 = vld [vmem:[#allocation5 + $0x8] sm:$0xff]
    %v255 = vld [vmem:[#allocation5 + $0x10] sm:$0xff]
    %v256 = vld [vmem:[#allocation5 + $0x18] sm:$0xff]
    %v257 = vld [vmem:[#allocation5 + $0x20] sm:$0xff]
    %v258 = vld [vmem:[#allocation5 + $0x28] sm:$0xff]
    %v259 = vld [vmem:[#allocation5 + $0x30] sm:$0xff]
    %v260 = vld [vmem:[#allocation5 + $0x38] sm:$0xff]
    %v261 = vld [vmem:[#allocation5 + $0x40] sm:$0xff]
    %v262 = vld [vmem:[#allocation5 + $0x48] sm:$0xff]
    %v263 = vld [vmem:[#allocation5 + $0x50] sm:$0xff]
    %v264 = vld [vmem:[#allocation5 + $0x58] sm:$0xff]
    %v265 = vld [vmem:[#allocation5 + $0x60] sm:$0xff]
    %v266 = vld [vmem:[#allocation5 + $0x68] sm:$0xff]
    %v267 = vld [vmem:[#allocation5 + $0x70] sm:$0xff]
    %v268 = vld [vmem:[#allocation5 + $0x78] sm:$0xff]
    %v269 = vld [vmem:[#allocation5 + $0x80] sm:$0xff]
    %v270 = vld [vmem:[#allocation5 + $0x88] sm:$0xff]
    %v271 = vld [vmem:[#allocation5 + $0x90] sm:$0xff]
    %v272 = vld [vmem:[#allocation5 + $0x98] sm:$0xff]
    %v273 = vld [vmem:[#allocation5 + $0xa0] sm:$0xff]
    %v274 = vld [vmem:[#allocation5 + $0xa8] sm:$0xff]
    %v275 = vld [vmem:[#allocation5 + $0xb0] sm:$0xff]
    %v276 = vld [vmem:[#allocation5 + $0xb8] sm:$0xff]
    %v277 = vld [vmem:[#allocation5 + $0xc0] sm:$0xff]
    %v278 = vld [vmem:[#allocation5 + $0xc8] sm:$0xff]
    %v279 = vld [vmem:[#allocation5 + $0xd0] sm:$0xff]
    %v280 = vld [vmem:[#allocation5 + $0xd8] sm:$0xff]
    %v281 = vld [vmem:[#allocation5 + $0xe0] sm:$0xff]
    %v282 = vld [vmem:[#allocation5 + $0xe8] sm:$0xff]
    %v283 = vld [vmem:[#allocation5 + $0xf0] sm:$0xff]
    %v284 = vld [vmem:[#allocation5 + $0xf8] sm:$0xff]
    %v285 = vld [vmem:[#allocation7] sm:$0x3]
    %v287 = vperm.slane %v285, 0
    %v288 = vperm.slane %v285, 1
    %291 = vmatpush.msra.mxu0 %v283
    %292 = vmatpush.msra.mxu0 %v281
    %293 = vmatpush.msra.mxu0 %v279
    %294 = vmatpush.msra.mxu0 %v277
    %295 = vmatpush.msra.mxu0 %v275
    %296 = vmatpush.msra.mxu0 %v273
    %297 = vmatpush.msra.mxu0 %v271
    %298 = vmatpush.msra.mxu0 %v269
    %299 = vmatpush.msra.mxu0 %v267
    %300 = vmatpush.msra.mxu0 %v265
    %301 = vmatpush.msra.mxu0 %v263
    %302 = vmatpush.msra.mxu0 %v261
    %303 = vmatpush.msra.mxu0 %v259
    %304 = vmatpush.msra.mxu0 %v257
    %305 = vmatpush.msra.mxu0 %v255
    %306 = vmatpush.msra.mxu0 %v253
    %307 = vmatmul.f32.gmra.mxu0 %v251
    %v308 = vpop.f32.mrf.mxu0
    %v309 = vadd.f32 %v287, %v308
    %310 = vmatmul.f32.gmra.mxu0 %v252
    %v311 = vpop.f32.mrf.mxu0
    %v312 = vadd.f32 %v287, %v311
    %313 = vdwg.mxu0
    %314 = vmatpush.msra.mxu0 %v284
    %315 = vmatpush.msra.mxu0 %v282
    %316 = vmatpush.msra.mxu0 %v280
    %317 = vmatpush.msra.mxu0 %v278
    %318 = vmatpush.msra.mxu0 %v276
    %319 = vmatpush.msra.mxu0 %v274
    %320 = vmatpush.msra.mxu0 %v272
    %321 = vmatpush.msra.mxu0 %v270
    %322 = vmatpush.msra.mxu0 %v268
    %323 = vmatpush.msra.mxu0 %v266
    %324 = vmatpush.msra.mxu0 %v264
    %325 = vmatpush.msra.mxu0 %v262
    %326 = vmatpush.msra.mxu0 %v260
    %327 = vmatpush.msra.mxu0 %v258
    %328 = vmatpush.msra.mxu0 %v256
    %329 = vmatpush.msra.mxu0 %v254
    %330 = vmatmul.f32.gmra.mxu0 %v251
    %v331 = vpop.f32.mrf.mxu0
    %v332 = vadd.f32 %v288, %v331
    %333 = vmatmul.f32.gmra.mxu0 %v252
    %v334 = vpop.f32.mrf.mxu0
    %v335 = vadd.f32 %v288, %v334
    %336 = vdwg.mxu0
    %v337 = vmul.f32 %v309, 0.5
    %v338 = vmul.f32 %v332, 0.5
    %v339 = vmul.f32 %v312, 0.5
    %v340 = vmul.f32 %v335, 0.5
    %v341 = vmul.f32 %v309, 0.70710677
    %v342 = vmul.f32 %v332, 0.70710677
    %v343 = vmul.f32 %v312, 0.70710677
    %v344 = vmul.f32 %v335, 0.70710677
    %v345 = vmul.f32 %v341, %v341
    %v346 = vmin.f32 16.0, %v345
    %v347 = vmul.f32 %v346, 2.1237322e-06
    %v348 = vadd.f32 %v347, 0.00028619796
    %v349 = vmul.f32 %v346, %v348
    %v350 = vadd.f32 %v349, 0.0036580483
    %v351 = vmul.f32 %v346, %v350
    %v352 = vadd.f32 %v351, 0.05243302
    %v353 = vmul.f32 %v346, %v352
    %v354 = vadd.f32 %v353, 0.18741608
    %v355 = vmul.f32 %v346, %v354
    %v356 = vadd.f32 %v355, 1.1283791
    %v357 = vmul.f32 %v341, %v356
    %v358 = vmul.f32 %v346, 3.8918573e-05
    %v359 = vadd.f32 %v358, 0.001143296
    %v360 = vmul.f32 %v346, %v359
    %v361 = vadd.f32 %v360, 0.014752088
    %v362 = vmul.f32 %v346, %v361
    %v363 = vadd.f32 %v362, 0.112945676
    %v364 = vmul.f32 %v346, %v363
    %v365 = vadd.f32 %v364, 0.4994258
    %v366 = vmul.f32 %v346, %v365
    %v367 = vadd.f32 %v366, 1.0
    %v368 = vrcp.pop %v367
    %v369 = vmul.f32 %v367, %v368
    %v370 = vsub.f32 1.0, %v369
    %v371 = vmul.f32 %v368, %v370
    %v372 = vadd.f32 %v368, %v371
    %vm373 = vweird.f32 %v367
    %vm374 = vweird.f32 %v368
    %vm375 = vmor %vm373, %vm374
    %v376 = vsel %vm375, %v368, %v372
    %v377 = vand.u32 2147483647, %v367
    %vm378 = vcmp.eq.f32.partialorder %v377, 8.507059e+37
    %v379 = vand.u32 %v367, 2147483648
    %v380 = vor.u32 1.1754944e-38, %v379
    %v381 = vsel %vm378, %v380, %v376
    %v382 = vmul.f32 %v357, %v381
    %v383 = vmin.f32 %v382, 1.0
    %v384 = vmax.f32 %v383, -1.0
    %v385 = vmul.f32 %v342, %v342
    %v386 = vmin.f32 16.0, %v385
    %v387 = vmul.f32 %v386, 2.1237322e-06
    %v388 = vadd.f32 %v387, 0.00028619796
    %v389 = vmul.f32 %v386, %v388
    %v390 = vadd.f32 %v389, 0.0036580483
    %v391 = vmul.f32 %v386, %v390
    %v392 = vadd.f32 %v391, 0.05243302
    %v393 = vmul.f32 %v386, %v392
    %v394 = vadd.f32 %v393, 0.18741608
    %v395 = vmul.f32 %v386, %v394
    %v396 = vadd.f32 %v395, 1.1283791
    %v397 = vmul.f32 %v342, %v396
    %v398 = vmul.f32 %v386, 3.8918573e-05
    %v399 = vadd.f32 %v398, 0.001143296
    %v400 = vmul.f32 %v386, %v399
    %v401 = vadd.f32 %v400, 0.014752088
    %v402 = vmul.f32 %v386, %v401
    %v403 = vadd.f32 %v402, 0.112945676
    %v404 = vmul.f32 %v386, %v403
    %v405 = vadd.f32 %v404, 0.4994258
    %v406 = vmul.f32 %v386, %v405
    %v407 = vadd.f32 %v406, 1.0
    %v408 = vrcp.pop %v407
    %v409 = vmul.f32 %v407, %v408
    %v410 = vsub.f32 1.0, %v409
    %v411 = vmul.f32 %v408, %v410
    %v412 = vadd.f32 %v408, %v411
    %vm413 = vweird.f32 %v407
    %vm414 = vweird.f32 %v408
    %vm415 = vmor %vm413, %vm414
    %v416 = vsel %vm415, %v408, %v412
    %v417 = vand.u32 2147483647, %v407
    %vm418 = vcmp.eq.f32.partialorder %v417, 8.507059e+37
    %v419 = vand.u32 %v407, 2147483648
    %v420 = vor.u32 1.1754944e-38, %v419
    %v421 = vsel %vm418, %v420, %v416
    %v422 = vmul.f32 %v397, %v421
    %v423 = vmin.f32 %v422, 1.0
    %v424 = vmax.f32 %v423, -1.0
    %v425 = vmul.f32 %v343, %v343
    %v426 = vmin.f32 16.0, %v425
    %v427 = vmul.f32 %v426, 2.1237322e-06
    %v428 = vadd.f32 %v427, 0.00028619796
    %v429 = vmul.f32 %v426, %v428
    %v430 = vadd.f32 %v429, 0.0036580483
    %v431 = vmul.f32 %v426, %v430
    %v432 = vadd.f32 %v431, 0.05243302
    %v433 = vmul.f32 %v426, %v432
    %v434 = vadd.f32 %v433, 0.18741608
    %v435 = vmul.f32 %v426, %v434
    %v436 = vadd.f32 %v435, 1.1283791
    %v437 = vmul.f32 %v343, %v436
    %v438 = vmul.f32 %v426, 3.8918573e-05
    %v439 = vadd.f32 %v438, 0.001143296
    %v440 = vmul.f32 %v426, %v439
    %v441 = vadd.f32 %v440, 0.014752088
    %v442 = vmul.f32 %v426, %v441
    %v443 = vadd.f32 %v442, 0.112945676
    %v444 = vmul.f32 %v426, %v443
    %v445 = vadd.f32 %v444, 0.4994258
    %v446 = vmul.f32 %v426, %v445
    %v447 = vadd.f32 %v446, 1.0
    %v448 = vrcp.pop %v447
    %v449 = vmul.f32 %v447, %v448
    %v450 = vsub.f32 1.0, %v449
    %v451 = vmul.f32 %v448, %v450
    %v452 = vadd.f32 %v448, %v451
    %vm453 = vweird.f32 %v447
    %vm454 = vweird.f32 %v448
    %vm455 = vmor %vm453, %vm454
    %v456 = vsel %vm455, %v448, %v452
    %v457 = vand.u32 2147483647, %v447
    %vm458 = vcmp.eq.f32.partialorder %v457, 8.507059e+37
    %v459 = vand.u32 %v447, 2147483648
    %v460 = vor.u32 1.1754944e-38, %v459
    %v461 = vsel %vm458, %v460, %v456
    %v462 = vmul.f32 %v437, %v461
    %v463 = vmin.f32 %v462, 1.0
    %v464 = vmax.f32 %v463, -1.0
    %v465 = vmul.f32 %v344, %v344
    %v466 = vmin.f32 16.0, %v465
    %v467 = vmul.f32 %v466, 2.1237322e-06
    %v468 = vadd.f32 %v467, 0.00028619796
    %v469 = vmul.f32 %v466, %v468
    %v470 = vadd.f32 %v469, 0.0036580483
    %v471 = vmul.f32 %v466, %v470
    %v472 = vadd.f32 %v471, 0.05243302
    %v473 = vmul.f32 %v466, %v472
    %v474 = vadd.f32 %v473, 0.18741608
    %v475 = vmul.f32 %v466, %v474
    %v476 = vadd.f32 %v475, 1.1283791
    %v477 = vmul.f32 %v344, %v476
    %v478 = vmul.f32 %v466, 3.8918573e-05
    %v479 = vadd.f32 %v478, 0.001143296
    %v480 = vmul.f32 %v466, %v479
    %v481 = vadd.f32 %v480, 0.014752088
    %v482 = vmul.f32 %v466, %v481
    %v483 = vadd.f32 %v482, 0.112945676
    %v484 = vmul.f32 %v466, %v483
    %v485 = vadd.f32 %v484, 0.4994258
    %v486 = vmul.f32 %v466, %v485
    %v487 = vadd.f32 %v486, 1.0
    %v488 = vrcp.pop %v487
    %v489 = vmul.f32 %v487, %v488
    %v490 = vsub.f32 1.0, %v489
    %v491 = vmul.f32 %v488, %v490
    %v492 = vadd.f32 %v488, %v491
    %vm493 = vweird.f32 %v487
    %vm494 = vweird.f32 %v488
    %vm495 = vmor %vm493, %vm494
    %v496 = vsel %vm495, %v488, %v492
    %v497 = vand.u32 2147483647, %v487
    %vm498 = vcmp.eq.f32.partialorder %v497, 8.507059e+37
    %v499 = vand.u32 %v487, 2147483648
    %v500 = vor.u32 1.1754944e-38, %v499
    %v501 = vsel %vm498, %v500, %v496
    %v502 = vmul.f32 %v477, %v501
    %v503 = vmin.f32 %v502, 1.0
    %v504 = vmax.f32 %v503, -1.0
    %v505 = vadd.f32 %v384, 1.0
    %v506 = vadd.f32 %v424, 1.0
    %v507 = vadd.f32 %v464, 1.0
    %v508 = vadd.f32 %v504, 1.0
    %v509 = vmul.f32 %v337, %v505
    %v510 = vmul.f32 %v338, %v506
    %v511 = vmul.f32 %v339, %v507
    %v512 = vmul.f32 %v340, %v508
    %v513 = vld [vmem:[#allocation8] sm:$0xff]
    %v514 = vld [vmem:[#allocation8 + $0x8] sm:$0xff]
    %v515 = vld [vmem:[#allocation8 + $0x10] sm:$0xff]
    %v516 = vld [vmem:[#allocation8 + $0x18] sm:$0xff]
    %v517 = vld [vmem:[#allocation8 + $0x20] sm:$0xff]
    %v518 = vld [vmem:[#allocation8 + $0x28] sm:$0xff]
    %v519 = vld [vmem:[#allocation8 + $0x30] sm:$0xff]
    %v520 = vld [vmem:[#allocation8 + $0x38] sm:$0xff]
    %v521 = vld [vmem:[#allocation8 + $0x40] sm:$0xff]
    %v522 = vld [vmem:[#allocation8 + $0x48] sm:$0xff]
    %v523 = vld [vmem:[#allocation8 + $0x50] sm:$0xff]
    %v524 = vld [vmem:[#allocation8 + $0x58] sm:$0xff]
    %v525 = vld [vmem:[#allocation8 + $0x60] sm:$0xff]
    %v526 = vld [vmem:[#allocation8 + $0x68] sm:$0xff]
    %v527 = vld [vmem:[#allocation8 + $0x70] sm:$0xff]
    %v528 = vld [vmem:[#allocation8 + $0x78] sm:$0xff]
    %v529 = vld [vmem:[#allocation8 + $0x80] sm:$0xff]
    %v530 = vld [vmem:[#allocation8 + $0x88] sm:$0xff]
    %v531 = vld [vmem:[#allocation8 + $0x90] sm:$0xff]
    %v532 = vld [vmem:[#allocation8 + $0x98] sm:$0xff]
    %v533 = vld [vmem:[#allocation8 + $0xa0] sm:$0xff]
    %v534 = vld [vmem:[#allocation8 + $0xa8] sm:$0xff]
    %v535 = vld [vmem:[#allocation8 + $0xb0] sm:$0xff]
    %v536 = vld [vmem:[#allocation8 + $0xb8] sm:$0xff]
    %v537 = vld [vmem:[#allocation8 + $0xc0] sm:$0xff]
    %v538 = vld [vmem:[#allocation8 + $0xc8] sm:$0xff]
    %v539 = vld [vmem:[#allocation8 + $0xd0] sm:$0xff]
    %v540 = vld [vmem:[#allocation8 + $0xd8] sm:$0xff]
    %v541 = vld [vmem:[#allocation8 + $0xe0] sm:$0xff]
    %v542 = vld [vmem:[#allocation8 + $0xe8] sm:$0xff]
    %v543 = vld [vmem:[#allocation8 + $0xf0] sm:$0xff]
    %v544 = vld [vmem:[#allocation8 + $0xf8] sm:$0xff]
    %v545 = vld [vmem:[#allocation8 + $0x100] sm:$0xff]
    %v546 = vld [vmem:[#allocation8 + $0x108] sm:$0xff]
    %v547 = vld [vmem:[#allocation8 + $0x110] sm:$0xff]
    %v548 = vld [vmem:[#allocation8 + $0x118] sm:$0xff]
    %v549 = vld [vmem:[#allocation8 + $0x120] sm:$0xff]
    %v550 = vld [vmem:[#allocation8 + $0x128] sm:$0xff]
    %v551 = vld [vmem:[#allocation8 + $0x130] sm:$0xff]
    %v552 = vld [vmem:[#allocation8 + $0x138] sm:$0xff]
    %v553 = vld [vmem:[#allocation8 + $0x140] sm:$0xff]
    %v554 = vld [vmem:[#allocation8 + $0x148] sm:$0xff]
    %v555 = vld [vmem:[#allocation8 + $0x150] sm:$0xff]
    %v556 = vld [vmem:[#allocation8 + $0x158] sm:$0xff]
    %v557 = vld [vmem:[#allocation8 + $0x160] sm:$0xff]
    %v558 = vld [vmem:[#allocation8 + $0x168] sm:$0xff]
    %v559 = vld [vmem:[#allocation8 + $0x170] sm:$0xff]
    %v560 = vld [vmem:[#allocation8 + $0x178] sm:$0xff]
    %v561 = vld [vmem:[#allocation8 + $0x180] sm:$0xff]
    %v562 = vld [vmem:[#allocation8 + $0x188] sm:$0xff]
    %v563 = vld [vmem:[#allocation8 + $0x190] sm:$0xff]
    %v564 = vld [vmem:[#allocation8 + $0x198] sm:$0xff]
    %v565 = vld [vmem:[#allocation8 + $0x1a0] sm:$0xff]
    %v566 = vld [vmem:[#allocation8 + $0x1a8] sm:$0xff]
    %v567 = vld [vmem:[#allocation8 + $0x1b0] sm:$0xff]
    %v568 = vld [vmem:[#allocation8 + $0x1b8] sm:$0xff]
    %v569 = vld [vmem:[#allocation8 + $0x1c0] sm:$0xff]
    %v570 = vld [vmem:[#allocation8 + $0x1c8] sm:$0xff]
    %v571 = vld [vmem:[#allocation8 + $0x1d0] sm:$0xff]
    %v572 = vld [vmem:[#allocation8 + $0x1d8] sm:$0xff]
    %v573 = vld [vmem:[#allocation8 + $0x1e0] sm:$0xff]
    %v574 = vld [vmem:[#allocation8 + $0x1e8] sm:$0xff]
    %v575 = vld [vmem:[#allocation8 + $0x1f0] sm:$0xff]
    %v576 = vld [vmem:[#allocation8 + $0x1f8] sm:$0xff]
    %v577 = vld [vmem:[#allocation8 + $0x200] sm:$0xff]
    %v578 = vld [vmem:[#allocation8 + $0x208] sm:$0xff]
    %v579 = vld [vmem:[#allocation8 + $0x210] sm:$0xff]
    %v580 = vld [vmem:[#allocation8 + $0x218] sm:$0xff]
    %v581 = vld [vmem:[#allocation8 + $0x220] sm:$0xff]
    %v582 = vld [vmem:[#allocation8 + $0x228] sm:$0xff]
    %v583 = vld [vmem:[#allocation8 + $0x230] sm:$0xff]
    %v584 = vld [vmem:[#allocation8 + $0x238] sm:$0xff]
    %v585 = vld [vmem:[#allocation8 + $0x240] sm:$0xff]
    %v586 = vld [vmem:[#allocation8 + $0x248] sm:$0xff]
    %v587 = vld [vmem:[#allocation8 + $0x250] sm:$0xff]
    %v588 = vld [vmem:[#allocation8 + $0x258] sm:$0xff]
    %v589 = vld [vmem:[#allocation8 + $0x260] sm:$0xff]
    %v590 = vld [vmem:[#allocation8 + $0x268] sm:$0xff]
    %v591 = vld [vmem:[#allocation8 + $0x270] sm:$0xff]
    %v592 = vld [vmem:[#allocation8 + $0x278] sm:$0xff]
    %v593 = vld [vmem:[#allocation8 + $0x280] sm:$0xff]
    %v594 = vld [vmem:[#allocation8 + $0x288] sm:$0xff]
    %v595 = vld [vmem:[#allocation8 + $0x290] sm:$0xff]
    %v596 = vld [vmem:[#allocation8 + $0x298] sm:$0xff]
    %v597 = vld [vmem:[#allocation8 + $0x2a0] sm:$0xff]
    %v598 = vld [vmem:[#allocation8 + $0x2a8] sm:$0xff]
    %v599 = vld [vmem:[#allocation8 + $0x2b0] sm:$0xff]
    %v600 = vld [vmem:[#allocation8 + $0x2b8] sm:$0xff]
    %v601 = vld [vmem:[#allocation8 + $0x2c0] sm:$0xff]
    %v602 = vld [vmem:[#allocation8 + $0x2c8] sm:$0xff]
    %v603 = vld [vmem:[#allocation8 + $0x2d0] sm:$0xff]
    %v604 = vld [vmem:[#allocation8 + $0x2d8] sm:$0xff]
    %v605 = vld [vmem:[#allocation8 + $0x2e0] sm:$0xff]
    %v606 = vld [vmem:[#allocation8 + $0x2e8] sm:$0xff]
    %v607 = vld [vmem:[#allocation8 + $0x2f0] sm:$0xff]
    %v608 = vld [vmem:[#allocation8 + $0x2f8] sm:$0xff]
    %v609 = vld [vmem:[#allocation8 + $0x300] sm:$0xff]
    %v610 = vld [vmem:[#allocation8 + $0x308] sm:$0xff]
    %v611 = vld [vmem:[#allocation8 + $0x310] sm:$0xff]
    %v612 = vld [vmem:[#allocation8 + $0x318] sm:$0xff]
    %v613 = vld [vmem:[#allocation8 + $0x320] sm:$0xff]
    %v614 = vld [vmem:[#allocation8 + $0x328] sm:$0xff]
    %v615 = vld [vmem:[#allocation8 + $0x330] sm:$0xff]
    %v616 = vld [vmem:[#allocation8 + $0x338] sm:$0xff]
    %v617 = vld [vmem:[#allocation8 + $0x340] sm:$0xff]
    %v618 = vld [vmem:[#allocation8 + $0x348] sm:$0xff]
    %v619 = vld [vmem:[#allocation8 + $0x350] sm:$0xff]
    %v620 = vld [vmem:[#allocation8 + $0x358] sm:$0xff]
    %v621 = vld [vmem:[#allocation8 + $0x360] sm:$0xff]
    %v622 = vld [vmem:[#allocation8 + $0x368] sm:$0xff]
    %v623 = vld [vmem:[#allocation8 + $0x370] sm:$0xff]
    %v624 = vld [vmem:[#allocation8 + $0x378] sm:$0xff]
    %v625 = vld [vmem:[#allocation8 + $0x380] sm:$0xff]
    %v626 = vld [vmem:[#allocation8 + $0x388] sm:$0xff]
    %v627 = vld [vmem:[#allocation8 + $0x390] sm:$0xff]
    %v628 = vld [vmem:[#allocation8 + $0x398] sm:$0xff]
    %v629 = vld [vmem:[#allocation8 + $0x3a0] sm:$0xff]
    %v630 = vld [vmem:[#allocation8 + $0x3a8] sm:$0xff]
    %v631 = vld [vmem:[#allocation8 + $0x3b0] sm:$0xff]
    %v632 = vld [vmem:[#allocation8 + $0x3b8] sm:$0xff]
    %v633 = vld [vmem:[#allocation8 + $0x3c0] sm:$0xff]
    %v634 = vld [vmem:[#allocation8 + $0x3c8] sm:$0xff]
    %v635 = vld [vmem:[#allocation8 + $0x3d0] sm:$0xff]
    %v636 = vld [vmem:[#allocation8 + $0x3d8] sm:$0xff]
    %v637 = vld [vmem:[#allocation8 + $0x3e0] sm:$0xff]
    %v638 = vld [vmem:[#allocation8 + $0x3e8] sm:$0xff]
    %v639 = vld [vmem:[#allocation8 + $0x3f0] sm:$0xff]
    %v640 = vld [vmem:[#allocation8 + $0x3f8] sm:$0xff]
    %641 = vmatpush.msra.mxu0 %v573
    %642 = vmatpush.msra.mxu0 %v569
    %643 = vmatpush.msra.mxu0 %v565
    %644 = vmatpush.msra.mxu0 %v561
    %645 = vmatpush.msra.mxu0 %v557
    %646 = vmatpush.msra.mxu0 %v553
    %647 = vmatpush.msra.mxu0 %v549
    %648 = vmatpush.msra.mxu0 %v545
    %649 = vmatpush.msra.mxu0 %v541
    %650 = vmatpush.msra.mxu0 %v537
    %651 = vmatpush.msra.mxu0 %v533
    %652 = vmatpush.msra.mxu0 %v529
    %653 = vmatpush.msra.mxu0 %v525
    %654 = vmatpush.msra.mxu0 %v521
    %655 = vmatpush.msra.mxu0 %v517
    %656 = vmatpush.msra.mxu0 %v513
    %657 = vmatmul.f32.gmra.mxu0 %v509
    %v658 = vpop.f32.mrf.mxu0
    %v659 = vadd.f32 0.0, %v658
    %660 = vmatmul.f32.gmra.mxu0 %v511
    %v661 = vpop.f32.mrf.mxu0
    %v662 = vadd.f32 0.0, %v661
    %663 = vdwg.mxu0
    %664 = vmatpush.msra.mxu0 %v637
    %665 = vmatpush.msra.mxu0 %v633
    %666 = vmatpush.msra.mxu0 %v629
    %667 = vmatpush.msra.mxu0 %v625
    %668 = vmatpush.msra.mxu0 %v621
    %669 = vmatpush.msra.mxu0 %v617
    %670 = vmatpush.msra.mxu0 %v613
    %671 = vmatpush.msra.mxu0 %v609
    %672 = vmatpush.msra.mxu0 %v605
    %673 = vmatpush.msra.mxu0 %v601
    %674 = vmatpush.msra.mxu0 %v597
    %675 = vmatpush.msra.mxu0 %v593
    %676 = vmatpush.msra.mxu0 %v589
    %677 = vmatpush.msra.mxu0 %v585
    %678 = vmatpush.msra.mxu0 %v581
    %679 = vmatpush.msra.mxu0 %v577
    %680 = vmatmul.f32.gmra.mxu0 %v510
    %v681 = vpop.f32.mrf.mxu0
    %v682 = vadd.f32 %v659, %v681
    %683 = vmatmul.f32.gmra.mxu0 %v512
    %v684 = vpop.f32.mrf.mxu0
    %v685 = vadd.f32 %v662, %v684
    %686 = vdwg.mxu0
    %687 = vmatpush.msra.mxu0 %v574
    %688 = vmatpush.msra.mxu0 %v570
    %689 = vmatpush.msra.mxu0 %v566
    %690 = vmatpush.msra.mxu0 %v562
    %691 = vmatpush.msra.mxu0 %v558
    %692 = vmatpush.msra.mxu0 %v554
    %693 = vmatpush.msra.mxu0 %v550
    %694 = vmatpush.msra.mxu0 %v546
    %695 = vmatpush.msra.mxu0 %v542
    %696 = vmatpush.msra.mxu0 %v538
    %697 = vmatpush.msra.mxu0 %v534
    %698 = vmatpush.msra.mxu0 %v530
    %699 = vmatpush.msra.mxu0 %v526
    %700 = vmatpush.msra.mxu0 %v522
    %701 = vmatpush.msra.mxu0 %v518
    %702 = vmatpush.msra.mxu0 %v514
    %703 = vmatmul.f32.gmra.mxu0 %v509
    %v704 = vpop.f32.mrf.mxu0
    %v705 = vadd.f32 0.0, %v704
    %706 = vmatmul.f32.gmra.mxu0 %v511
    %v707 = vpop.f32.mrf.mxu0
    %v708 = vadd.f32 0.0, %v707
    %709 = vdwg.mxu0
    %710 = vmatpush.msra.mxu0 %v638
    %711 = vmatpush.msra.mxu0 %v634
    %712 = vmatpush.msra.mxu0 %v630
    %713 = vmatpush.msra.mxu0 %v626
    %714 = vmatpush.msra.mxu0 %v622
    %715 = vmatpush.msra.mxu0 %v618
    %716 = vmatpush.msra.mxu0 %v614
    %717 = vmatpush.msra.mxu0 %v610
    %718 = vmatpush.msra.mxu0 %v606
    %719 = vmatpush.msra.mxu0 %v602
    %720 = vmatpush.msra.mxu0 %v598
    %721 = vmatpush.msra.mxu0 %v594
    %722 = vmatpush.msra.mxu0 %v590
    %723 = vmatpush.msra.mxu0 %v586
    %724 = vmatpush.msra.mxu0 %v582
    %725 = vmatpush.msra.mxu0 %v578
    %726 = vmatmul.f32.gmra.mxu0 %v510
    %v727 = vpop.f32.mrf.mxu0
    %v728 = vadd.f32 %v705, %v727
    %729 = vmatmul.f32.gmra.mxu0 %v512
    %v730 = vpop.f32.mrf.mxu0
    %v731 = vadd.f32 %v708, %v730
    %732 = vdwg.mxu0
    %733 = vmatpush.msra.mxu0 %v575
    %734 = vmatpush.msra.mxu0 %v571
    %735 = vmatpush.msra.mxu0 %v567
    %736 = vmatpush.msra.mxu0 %v563
    %737 = vmatpush.msra.mxu0 %v559
    %738 = vmatpush.msra.mxu0 %v555
    %739 = vmatpush.msra.mxu0 %v551
    %740 = vmatpush.msra.mxu0 %v547
    %741 = vmatpush.msra.mxu0 %v543
    %742 = vmatpush.msra.mxu0 %v539
    %743 = vmatpush.msra.mxu0 %v535
    %744 = vmatpush.msra.mxu0 %v531
    %745 = vmatpush.msra.mxu0 %v527
    %746 = vmatpush.msra.mxu0 %v523
    %747 = vmatpush.msra.mxu0 %v519
    %748 = vmatpush.msra.mxu0 %v515
    %749 = vmatmul.f32.gmra.mxu0 %v509
    %v750 = vpop.f32.mrf.mxu0
    %v751 = vadd.f32 0.0, %v750
    %752 = vmatmul.f32.gmra.mxu0 %v511
    %v753 = vpop.f32.mrf.mxu0
    %v754 = vadd.f32 0.0, %v753
    %755 = vdwg.mxu0
    %756 = vmatpush.msra.mxu0 %v639
    %757 = vmatpush.msra.mxu0 %v635
    %758 = vmatpush.msra.mxu0 %v631
    %759 = vmatpush.msra.mxu0 %v627
    %760 = vmatpush.msra.mxu0 %v623
    %761 = vmatpush.msra.mxu0 %v619
    %762 = vmatpush.msra.mxu0 %v615
    %763 = vmatpush.msra.mxu0 %v611
    %764 = vmatpush.msra.mxu0 %v607
    %765 = vmatpush.msra.mxu0 %v603
    %766 = vmatpush.msra.mxu0 %v599
    %767 = vmatpush.msra.mxu0 %v595
    %768 = vmatpush.msra.mxu0 %v591
    %769 = vmatpush.msra.mxu0 %v587
    %770 = vmatpush.msra.mxu0 %v583
    %771 = vmatpush.msra.mxu0 %v579
    %772 = vmatmul.f32.gmra.mxu0 %v510
    %v773 = vpop.f32.mrf.mxu0
    %v774 = vadd.f32 %v751, %v773
    %775 = vmatmul.f32.gmra.mxu0 %v512
    %v776 = vpop.f32.mrf.mxu0
    %v777 = vadd.f32 %v754, %v776
    %778 = vdwg.mxu0
    %779 = vmatpush.msra.mxu0 %v576
    %780 = vmatpush.msra.mxu0 %v572
    %781 = vmatpush.msra.mxu0 %v568
    %782 = vmatpush.msra.mxu0 %v564
    %783 = vmatpush.msra.mxu0 %v560
    %784 = vmatpush.msra.mxu0 %v556
    %785 = vmatpush.msra.mxu0 %v552
    %786 = vmatpush.msra.mxu0 %v548
    %787 = vmatpush.msra.mxu0 %v544
    %788 = vmatpush.msra.mxu0 %v540
    %789 = vmatpush.msra.mxu0 %v536
    %790 = vmatpush.msra.mxu0 %v532
    %791 = vmatpush.msra.mxu0 %v528
    %792 = vmatpush.msra.mxu0 %v524
    %793 = vmatpush.msra.mxu0 %v520
    %794 = vmatpush.msra.mxu0 %v516
    %795 = vmatmul.f32.gmra.mxu0 %v509
    %v796 = vpop.f32.mrf.mxu0
    %v797 = vadd.f32 0.0, %v796
    %798 = vmatmul.f32.gmra.mxu0 %v511
    %v799 = vpop.f32.mrf.mxu0
    %v800 = vadd.f32 0.0, %v799
    %801 = vdwg.mxu0
    %802 = vmatpush.msra.mxu0 %v640
    %803 = vmatpush.msra.mxu0 %v636
    %804 = vmatpush.msra.mxu0 %v632
    %805 = vmatpush.msra.mxu0 %v628
    %806 = vmatpush.msra.mxu0 %v624
    %807 = vmatpush.msra.mxu0 %v620
    %808 = vmatpush.msra.mxu0 %v616
    %809 = vmatpush.msra.mxu0 %v612
    %810 = vmatpush.msra.mxu0 %v608
    %811 = vmatpush.msra.mxu0 %v604
    %812 = vmatpush.msra.mxu0 %v600
    %813 = vmatpush.msra.mxu0 %v596
    %814 = vmatpush.msra.mxu0 %v592
    %815 = vmatpush.msra.mxu0 %v588
    %816 = vmatpush.msra.mxu0 %v584
    %817 = vmatpush.msra.mxu0 %v580
    %818 = vmatmul.f32.gmra.mxu0 %v510
    %v819 = vpop.f32.mrf.mxu0
    %v820 = vadd.f32 %v797, %v819
    %821 = vmatmul.f32.gmra.mxu0 %v512
    %v822 = vpop.f32.mrf.mxu0
    %v823 = vadd.f32 %v800, %v822
    %824 = vdwg.mxu0
    %v825 = vmul.f32 %v682, 0.5
    %v826 = vmul.f32 %v728, 0.5
    %v827 = vmul.f32 %v774, 0.5
    %v828 = vmul.f32 %v820, 0.5
    %v829 = vmul.f32 %v685, 0.5
    %v830 = vmul.f32 %v731, 0.5
    %v831 = vmul.f32 %v777, 0.5
    %v832 = vmul.f32 %v823, 0.5
    %v833 = vmul.f32 %v682, 0.70710677
    %v834 = vmul.f32 %v728, 0.70710677
    %v835 = vmul.f32 %v774, 0.70710677
    %v836 = vmul.f32 %v820, 0.70710677
    %v837 = vmul.f32 %v685, 0.70710677
    %v838 = vmul.f32 %v731, 0.70710677
    %v839 = vmul.f32 %v777, 0.70710677
    %v840 = vmul.f32 %v823, 0.70710677
    %v841 = vmul.f32 %v833, %v833
    %v842 = vmin.f32 16.0, %v841
    %v843 = vmul.f32 %v842, 2.1237322e-06
    %v844 = vadd.f32 %v843, 0.00028619796
    %v845 = vmul.f32 %v842, %v844
    %v846 = vadd.f32 %v845, 0.0036580483
    %v847 = vmul.f32 %v842, %v846
    %v848 = vadd.f32 %v847, 0.05243302
    %v849 = vmul.f32 %v842, %v848
    %v850 = vadd.f32 %v849, 0.18741608
    %v851 = vmul.f32 %v842, %v850
    %v852 = vadd.f32 %v851, 1.1283791
    %v853 = vmul.f32 %v833, %v852
    %v854 = vmul.f32 %v842, 3.8918573e-05
    %v855 = vadd.f32 %v854, 0.001143296
    %v856 = vmul.f32 %v842, %v855
    %v857 = vadd.f32 %v856, 0.014752088
    %v858 = vmul.f32 %v842, %v857
    %v859 = vadd.f32 %v858, 0.112945676
    %v860 = vmul.f32 %v842, %v859
    %v861 = vadd.f32 %v860, 0.4994258
    %v862 = vmul.f32 %v842, %v861
    %v863 = vadd.f32 %v862, 1.0
    %v864 = vrcp.pop %v863
    %v865 = vmul.f32 %v863, %v864
    %v866 = vsub.f32 1.0, %v865
    %v867 = vmul.f32 %v864, %v866
    %v868 = vadd.f32 %v864, %v867
    %vm869 = vweird.f32 %v863
    %vm870 = vweird.f32 %v864
    %vm871 = vmor %vm869, %vm870
    %v872 = vsel %vm871, %v864, %v868
    %v873 = vand.u32 2147483647, %v863
    %vm874 = vcmp.eq.f32.partialorder %v873, 8.507059e+37
    %v875 = vand.u32 %v863, 2147483648
    %v876 = vor.u32 1.1754944e-38, %v875
    %v877 = vsel %vm874, %v876, %v872
    %v878 = vmul.f32 %v853, %v877
    %v879 = vmin.f32 %v878, 1.0
    %v880 = vmax.f32 %v879, -1.0
    %v881 = vmul.f32 %v834, %v834
    %v882 = vmin.f32 16.0, %v881
    %v883 = vmul.f32 %v882, 2.1237322e-06
    %v884 = vadd.f32 %v883, 0.00028619796
    %v885 = vmul.f32 %v882, %v884
    %v886 = vadd.f32 %v885, 0.0036580483
    %v887 = vmul.f32 %v882, %v886
    %v888 = vadd.f32 %v887, 0.05243302
    %v889 = vmul.f32 %v882, %v888
    %v890 = vadd.f32 %v889, 0.18741608
    %v891 = vmul.f32 %v882, %v890
    %v892 = vadd.f32 %v891, 1.1283791
    %v893 = vmul.f32 %v834, %v892
    %v894 = vmul.f32 %v882, 3.8918573e-05
    %v895 = vadd.f32 %v894, 0.001143296
    %v896 = vmul.f32 %v882, %v895
    %v897 = vadd.f32 %v896, 0.014752088
    %v898 = vmul.f32 %v882, %v897
    %v899 = vadd.f32 %v898, 0.112945676
    %v900 = vmul.f32 %v882, %v899
    %v901 = vadd.f32 %v900, 0.4994258
    %v902 = vmul.f32 %v882, %v901
    %v903 = vadd.f32 %v902, 1.0
    %v904 = vrcp.pop %v903
    %v905 = vmul.f32 %v903, %v904
    %v906 = vsub.f32 1.0, %v905
    %v907 = vmul.f32 %v904, %v906
    %v908 = vadd.f32 %v904, %v907
    %vm909 = vweird.f32 %v903
    %vm910 = vweird.f32 %v904
    %vm911 = vmor %vm909, %vm910
    %v912 = vsel %vm911, %v904, %v908
    %v913 = vand.u32 2147483647, %v903
    %vm914 = vcmp.eq.f32.partialorder %v913, 8.507059e+37
    %v915 = vand.u32 %v903, 2147483648
    %v916 = vor.u32 1.1754944e-38, %v915
    %v917 = vsel %vm914, %v916, %v912
    %v918 = vmul.f32 %v893, %v917
    %v919 = vmin.f32 %v918, 1.0
    %v920 = vmax.f32 %v919, -1.0
    %v921 = vmul.f32 %v835, %v835
    %v922 = vmin.f32 16.0, %v921
    %v923 = vmul.f32 %v922, 2.1237322e-06
    %v924 = vadd.f32 %v923, 0.00028619796
    %v925 = vmul.f32 %v922, %v924
    %v926 = vadd.f32 %v925, 0.0036580483
    %v927 = vmul.f32 %v922, %v926
    %v928 = vadd.f32 %v927, 0.05243302
    %v929 = vmul.f32 %v922, %v928
    %v930 = vadd.f32 %v929, 0.18741608
    %v931 = vmul.f32 %v922, %v930
    %v932 = vadd.f32 %v931, 1.1283791
    %v933 = vmul.f32 %v835, %v932
    %v934 = vmul.f32 %v922, 3.8918573e-05
    %v935 = vadd.f32 %v934, 0.001143296
    %v936 = vmul.f32 %v922, %v935
    %v937 = vadd.f32 %v936, 0.014752088
    %v938 = vmul.f32 %v922, %v937
    %v939 = vadd.f32 %v938, 0.112945676
    %v940 = vmul.f32 %v922, %v939
    %v941 = vadd.f32 %v940, 0.4994258
    %v942 = vmul.f32 %v922, %v941
    %v943 = vadd.f32 %v942, 1.0
    %v944 = vrcp.pop %v943
    %v945 = vmul.f32 %v943, %v944
    %v946 = vsub.f32 1.0, %v945
    %v947 = vmul.f32 %v944, %v946
    %v948 = vadd.f32 %v944, %v947
    %vm949 = vweird.f32 %v943
    %vm950 = vweird.f32 %v944
    %vm951 = vmor %vm949, %vm950
    %v952 = vsel %vm951, %v944, %v948
    %v953 = vand.u32 2147483647, %v943
    %vm954 = vcmp.eq.f32.partialorder %v953, 8.507059e+37
    %v955 = vand.u32 %v943, 2147483648
    %v956 = vor.u32 1.1754944e-38, %v955
    %v957 = vsel %vm954, %v956, %v952
    %v958 = vmul.f32 %v933, %v957
    %v959 = vmin.f32 %v958, 1.0
    %v960 = vmax.f32 %v959, -1.0
    %v961 = vmul.f32 %v836, %v836
    %v962 = vmin.f32 16.0, %v961
    %v963 = vmul.f32 %v962, 2.1237322e-06
    %v964 = vadd.f32 %v963, 0.00028619796
    %v965 = vmul.f32 %v962, %v964
    %v966 = vadd.f32 %v965, 0.0036580483
    %v967 = vmul.f32 %v962, %v966
    %v968 = vadd.f32 %v967, 0.05243302
    %v969 = vmul.f32 %v962, %v968
    %v970 = vadd.f32 %v969, 0.18741608
    %v971 = vmul.f32 %v962, %v970
    %v972 = vadd.f32 %v971, 1.1283791
    %v973 = vmul.f32 %v836, %v972
    %v974 = vmul.f32 %v962, 3.8918573e-05
    %v975 = vadd.f32 %v974, 0.001143296
    %v976 = vmul.f32 %v962, %v975
    %v977 = vadd.f32 %v976, 0.014752088
    %v978 = vmul.f32 %v962, %v977
    %v979 = vadd.f32 %v978, 0.112945676
    %v980 = vmul.f32 %v962, %v979
    %v981 = vadd.f32 %v980, 0.4994258
    %v982 = vmul.f32 %v962, %v981
    %v983 = vadd.f32 %v982, 1.0
    %v984 = vrcp.pop %v983
    %v985 = vmul.f32 %v983, %v984
    %v986 = vsub.f32 1.0, %v985
    %v987 = vmul.f32 %v984, %v986
    %v988 = vadd.f32 %v984, %v987
    %vm989 = vweird.f32 %v983
    %vm990 = vweird.f32 %v984
    %vm991 = vmor %vm989, %vm990
    %v992 = vsel %vm991, %v984, %v988
    %v993 = vand.u32 2147483647, %v983
    %vm994 = vcmp.eq.f32.partialorder %v993, 8.507059e+37
    %v995 = vand.u32 %v983, 2147483648
    %v996 = vor.u32 1.1754944e-38, %v995
    %v997 = vsel %vm994, %v996, %v992
    %v998 = vmul.f32 %v973, %v997
    %v999 = vmin.f32 %v998, 1.0
    %v1000 = vmax.f32 %v999, -1.0
    %v1001 = vmul.f32 %v837, %v837
    %v1002 = vmin.f32 16.0, %v1001
    %v1003 = vmul.f32 %v1002, 2.1237322e-06
    %v1004 = vadd.f32 %v1003, 0.00028619796
    %v1005 = vmul.f32 %v1002, %v1004
    %v1006 = vadd.f32 %v1005, 0.0036580483
    %v1007 = vmul.f32 %v1002, %v1006
    %v1008 = vadd.f32 %v1007, 0.05243302
    %v1009 = vmul.f32 %v1002, %v1008
    %v1010 = vadd.f32 %v1009, 0.18741608
    %v1011 = vmul.f32 %v1002, %v1010
    %v1012 = vadd.f32 %v1011, 1.1283791
    %v1013 = vmul.f32 %v837, %v1012
    %v1014 = vmul.f32 %v1002, 3.8918573e-05
    %v1015 = vadd.f32 %v1014, 0.001143296
    %v1016 = vmul.f32 %v1002, %v1015
    %v1017 = vadd.f32 %v1016, 0.014752088
    %v1018 = vmul.f32 %v1002, %v1017
    %v1019 = vadd.f32 %v1018, 0.112945676
    %v1020 = vmul.f32 %v1002, %v1019
    %v1021 = vadd.f32 %v1020, 0.4994258
    %v1022 = vmul.f32 %v1002, %v1021
    %v1023 = vadd.f32 %v1022, 1.0
    %v1024 = vrcp.pop %v1023
    %v1025 = vmul.f32 %v1023, %v1024
    %v1026 = vsub.f32 1.0, %v1025
    %v1027 = vmul.f32 %v1024, %v1026
    %v1028 = vadd.f32 %v1024, %v1027
    %vm1029 = vweird.f32 %v1023
    %vm1030 = vweird.f32 %v1024
    %vm1031 = vmor %vm1029, %vm1030
    %v1032 = vsel %vm1031, %v1024, %v1028
    %v1033 = vand.u32 2147483647, %v1023
    %vm1034 = vcmp.eq.f32.partialorder %v1033, 8.507059e+37
    %v1035 = vand.u32 %v1023, 2147483648
    %v1036 = vor.u32 1.1754944e-38, %v1035
    %v1037 = vsel %vm1034, %v1036, %v1032
    %v1038 = vmul.f32 %v1013, %v1037
    %v1039 = vmin.f32 %v1038, 1.0
    %v1040 = vmax.f32 %v1039, -1.0
    %v1041 = vmul.f32 %v838, %v838
    %v1042 = vmin.f32 16.0, %v1041
    %v1043 = vmul.f32 %v1042, 2.1237322e-06
    %v1044 = vadd.f32 %v1043, 0.00028619796
    %v1045 = vmul.f32 %v1042, %v1044
    %v1046 = vadd.f32 %v1045, 0.0036580483
    %v1047 = vmul.f32 %v1042, %v1046
    %v1048 = vadd.f32 %v1047, 0.05243302
    %v1049 = vmul.f32 %v1042, %v1048
    %v1050 = vadd.f32 %v1049, 0.18741608
    %v1051 = vmul.f32 %v1042, %v1050
    %v1052 = vadd.f32 %v1051, 1.1283791
    %v1053 = vmul.f32 %v838, %v1052
    %v1054 = vmul.f32 %v1042, 3.8918573e-05
    %v1055 = vadd.f32 %v1054, 0.001143296
    %v1056 = vmul.f32 %v1042, %v1055
    %v1057 = vadd.f32 %v1056, 0.014752088
    %v1058 = vmul.f32 %v1042, %v1057
    %v1059 = vadd.f32 %v1058, 0.112945676
    %v1060 = vmul.f32 %v1042, %v1059
    %v1061 = vadd.f32 %v1060, 0.4994258
    %v1062 = vmul.f32 %v1042, %v1061
    %v1063 = vadd.f32 %v1062, 1.0
    %v1064 = vrcp.pop %v1063
    %v1065 = vmul.f32 %v1063, %v1064
    %v1066 = vsub.f32 1.0, %v1065
    %v1067 = vmul.f32 %v1064, %v1066
    %v1068 = vadd.f32 %v1064, %v1067
    %vm1069 = vweird.f32 %v1063
    %vm1070 = vweird.f32 %v1064
    %vm1071 = vmor %vm1069, %vm1070
    %v1072 = vsel %vm1071, %v1064, %v1068
    %v1073 = vand.u32 2147483647, %v1063
    %vm1074 = vcmp.eq.f32.partialorder %v1073, 8.507059e+37
    %v1075 = vand.u32 %v1063, 2147483648
    %v1076 = vor.u32 1.1754944e-38, %v1075
    %v1077 = vsel %vm1074, %v1076, %v1072
    %v1078 = vmul.f32 %v1053, %v1077
    %v1079 = vmin.f32 %v1078, 1.0
    %v1080 = vmax.f32 %v1079, -1.0
    %v1081 = vmul.f32 %v839, %v839
    %v1082 = vmin.f32 16.0, %v1081
    %v1083 = vmul.f32 %v1082, 2.1237322e-06
    %v1084 = vadd.f32 %v1083, 0.00028619796
    %v1085 = vmul.f32 %v1082, %v1084
    %v1086 = vadd.f32 %v1085, 0.0036580483
    %v1087 = vmul.f32 %v1082, %v1086
    %v1088 = vadd.f32 %v1087, 0.05243302
    %v1089 = vmul.f32 %v1082, %v1088
    %v1090 = vadd.f32 %v1089, 0.18741608
    %v1091 = vmul.f32 %v1082, %v1090
    %v1092 = vadd.f32 %v1091, 1.1283791
    %v1093 = vmul.f32 %v839, %v1092
    %v1094 = vmul.f32 %v1082, 3.8918573e-05
    %v1095 = vadd.f32 %v1094, 0.001143296
    %v1096 = vmul.f32 %v1082, %v1095
    %v1097 = vadd.f32 %v1096, 0.014752088
    %v1098 = vmul.f32 %v1082, %v1097
    %v1099 = vadd.f32 %v1098, 0.112945676
    %v1100 = vmul.f32 %v1082, %v1099
    %v1101 = vadd.f32 %v1100, 0.4994258
    %v1102 = vmul.f32 %v1082, %v1101
    %v1103 = vadd.f32 %v1102, 1.0
    %v1104 = vrcp.pop %v1103
    %v1105 = vmul.f32 %v1103, %v1104
    %v1106 = vsub.f32 1.0, %v1105
    %v1107 = vmul.f32 %v1104, %v1106
    %v1108 = vadd.f32 %v1104, %v1107
    %vm1109 = vweird.f32 %v1103
    %vm1110 = vweird.f32 %v1104
    %vm1111 = vmor %vm1109, %vm1110
    %v1112 = vsel %vm1111, %v1104, %v1108
    %v1113 = vand.u32 2147483647, %v1103
    %vm1114 = vcmp.eq.f32.partialorder %v1113, 8.507059e+37
    %v1115 = vand.u32 %v1103, 2147483648
    %v1116 = vor.u32 1.1754944e-38, %v1115
    %v1117 = vsel %vm1114, %v1116, %v1112
    %v1118 = vmul.f32 %v1093, %v1117
    %v1119 = vmin.f32 %v1118, 1.0
    %v1120 = vmax.f32 %v1119, -1.0
    %v1121 = vmul.f32 %v840, %v840
    %v1122 = vmin.f32 16.0, %v1121
    %v1123 = vmul.f32 %v1122, 2.1237322e-06
    %v1124 = vadd.f32 %v1123, 0.00028619796
    %v1125 = vmul.f32 %v1122, %v1124
    %v1126 = vadd.f32 %v1125, 0.0036580483
    %v1127 = vmul.f32 %v1122, %v1126
    %v1128 = vadd.f32 %v1127, 0.05243302
    %v1129 = vmul.f32 %v1122, %v1128
    %v1130 = vadd.f32 %v1129, 0.18741608
    %v1131 = vmul.f32 %v1122, %v1130
    %v1132 = vadd.f32 %v1131, 1.1283791
    %v1133 = vmul.f32 %v840, %v1132
    %v1134 = vmul.f32 %v1122, 3.8918573e-05
    %v1135 = vadd.f32 %v1134, 0.001143296
    %v1136 = vmul.f32 %v1122, %v1135
    %v1137 = vadd.f32 %v1136, 0.014752088
    %v1138 = vmul.f32 %v1122, %v1137
    %v1139 = vadd.f32 %v1138, 0.112945676
    %v1140 = vmul.f32 %v1122, %v1139
    %v1141 = vadd.f32 %v1140, 0.4994258
    %v1142 = vmul.f32 %v1122, %v1141
    %v1143 = vadd.f32 %v1142, 1.0
    %v1144 = vrcp.pop %v1143
    %v1145 = vmul.f32 %v1143, %v1144
    %v1146 = vsub.f32 1.0, %v1145
    %v1147 = vmul.f32 %v1144, %v1146
    %v1148 = vadd.f32 %v1144, %v1147
    %vm1149 = vweird.f32 %v1143
    %vm1150 = vweird.f32 %v1144
    %vm1151 = vmor %vm1149, %vm1150
    %v1152 = vsel %vm1151, %v1144, %v1148
    %v1153 = vand.u32 2147483647, %v1143
    %vm1154 = vcmp.eq.f32.partialorder %v1153, 8.507059e+37
    %v1155 = vand.u32 %v1143, 2147483648
    %v1156 = vor.u32 1.1754944e-38, %v1155
    %v1157 = vsel %vm1154, %v1156, %v1152
    %v1158 = vmul.f32 %v1133, %v1157
    %v1159 = vmin.f32 %v1158, 1.0
    %v1160 = vmax.f32 %v1159, -1.0
    %v1161 = vadd.f32 %v880, 1.0
    %v1162 = vadd.f32 %v920, 1.0
    %v1163 = vadd.f32 %v960, 1.0
    %v1164 = vadd.f32 %v1000, 1.0
    %v1165 = vadd.f32 %v1040, 1.0
    %v1166 = vadd.f32 %v1080, 1.0
    %v1167 = vadd.f32 %v1120, 1.0
    %v1168 = vadd.f32 %v1160, 1.0
    %v1169 = vmul.f32 %v825, %v1161
    %v1170 = vmul.f32 %v826, %v1162
    %v1171 = vmul.f32 %v827, %v1163
    %v1172 = vmul.f32 %v828, %v1164
    %v1173 = vmul.f32 %v829, %v1165
    %v1174 = vmul.f32 %v830, %v1166
    %v1175 = vmul.f32 %v831, %v1167
    %v1176 = vmul.f32 %v832, %v1168
    %v1177 = vld [vmem:[#allocation10] sm:$0xff]
    %v1178 = vld [vmem:[#allocation10 + $0x8] sm:$0xff]
    %v1179 = vld [vmem:[#allocation10 + $0x10] sm:$0xff]
    %v1180 = vld [vmem:[#allocation10 + $0x18] sm:$0xff]
    %v1181 = vld [vmem:[#allocation10 + $0x20] sm:$0xff]
    %v1182 = vld [vmem:[#allocation10 + $0x28] sm:$0xff]
    %v1183 = vld [vmem:[#allocation10 + $0x30] sm:$0xff]
    %v1184 = vld [vmem:[#allocation10 + $0x38] sm:$0xff]
    %v1185 = vld [vmem:[#allocation10 + $0x40] sm:$0xff]
    %v1186 = vld [vmem:[#allocation10 + $0x48] sm:$0xff]
    %v1187 = vld [vmem:[#allocation10 + $0x50] sm:$0xff]
    %v1188 = vld [vmem:[#allocation10 + $0x58] sm:$0xff]
    %v1189 = vld [vmem:[#allocation10 + $0x60] sm:$0xff]
    %v1190 = vld [vmem:[#allocation10 + $0x68] sm:$0xff]
    %v1191 = vld [vmem:[#allocation10 + $0x70] sm:$0xff]
    %v1192 = vld [vmem:[#allocation10 + $0x78] sm:$0xff]
    %v1193 = vld [vmem:[#allocation10 + $0x80] sm:$0xff]
    %v1194 = vld [vmem:[#allocation10 + $0x88] sm:$0xff]
    %v1195 = vld [vmem:[#allocation10 + $0x90] sm:$0xff]
    %v1196 = vld [vmem:[#allocation10 + $0x98] sm:$0xff]
    %v1197 = vld [vmem:[#allocation10 + $0xa0] sm:$0xff]
    %v1198 = vld [vmem:[#allocation10 + $0xa8] sm:$0xff]
    %v1199 = vld [vmem:[#allocation10 + $0xb0] sm:$0xff]
    %v1200 = vld [vmem:[#allocation10 + $0xb8] sm:$0xff]
    %v1201 = vld [vmem:[#allocation10 + $0xc0] sm:$0xff]
    %v1202 = vld [vmem:[#allocation10 + $0xc8] sm:$0xff]
    %v1203 = vld [vmem:[#allocation10 + $0xd0] sm:$0xff]
    %v1204 = vld [vmem:[#allocation10 + $0xd8] sm:$0xff]
    %v1205 = vld [vmem:[#allocation10 + $0xe0] sm:$0xff]
    %v1206 = vld [vmem:[#allocation10 + $0xe8] sm:$0xff]
    %v1207 = vld [vmem:[#allocation10 + $0xf0] sm:$0xff]
    %v1208 = vld [vmem:[#allocation10 + $0xf8] sm:$0xff]
    %v1209 = vld [vmem:[#allocation10 + $0x100] sm:$0xff]
    %v1210 = vld [vmem:[#allocation10 + $0x108] sm:$0xff]
    %v1211 = vld [vmem:[#allocation10 + $0x110] sm:$0xff]
    %v1212 = vld [vmem:[#allocation10 + $0x118] sm:$0xff]
    %v1213 = vld [vmem:[#allocation10 + $0x120] sm:$0xff]
    %v1214 = vld [vmem:[#allocation10 + $0x128] sm:$0xff]
    %v1215 = vld [vmem:[#allocation10 + $0x130] sm:$0xff]
    %v1216 = vld [vmem:[#allocation10 + $0x138] sm:$0xff]
    %v1217 = vld [vmem:[#allocation10 + $0x140] sm:$0xff]
    %v1218 = vld [vmem:[#allocation10 + $0x148] sm:$0xff]
    %v1219 = vld [vmem:[#allocation10 + $0x150] sm:$0xff]
    %v1220 = vld [vmem:[#allocation10 + $0x158] sm:$0xff]
    %v1221 = vld [vmem:[#allocation10 + $0x160] sm:$0xff]
    %v1222 = vld [vmem:[#allocation10 + $0x168] sm:$0xff]
    %v1223 = vld [vmem:[#allocation10 + $0x170] sm:$0xff]
    %v1224 = vld [vmem:[#allocation10 + $0x178] sm:$0xff]
    %v1225 = vld [vmem:[#allocation10 + $0x180] sm:$0xff]
    %v1226 = vld [vmem:[#allocation10 + $0x188] sm:$0xff]
    %v1227 = vld [vmem:[#allocation10 + $0x190] sm:$0xff]
    %v1228 = vld [vmem:[#allocation10 + $0x198] sm:$0xff]
    %v1229 = vld [vmem:[#allocation10 + $0x1a0] sm:$0xff]
    %v1230 = vld [vmem:[#allocation10 + $0x1a8] sm:$0xff]
    %v1231 = vld [vmem:[#allocation10 + $0x1b0] sm:$0xff]
    %v1232 = vld [vmem:[#allocation10 + $0x1b8] sm:$0xff]
    %v1233 = vld [vmem:[#allocation10 + $0x1c0] sm:$0xff]
    %v1234 = vld [vmem:[#allocation10 + $0x1c8] sm:$0xff]
    %v1235 = vld [vmem:[#allocation10 + $0x1d0] sm:$0xff]
    %v1236 = vld [vmem:[#allocation10 + $0x1d8] sm:$0xff]
    %v1237 = vld [vmem:[#allocation10 + $0x1e0] sm:$0xff]
    %v1238 = vld [vmem:[#allocation10 + $0x1e8] sm:$0xff]
    %v1239 = vld [vmem:[#allocation10 + $0x1f0] sm:$0xff]
    %v1240 = vld [vmem:[#allocation10 + $0x1f8] sm:$0xff]
    %v1241 = vld [vmem:[#allocation10 + $0x200] sm:$0xff]
    %v1242 = vld [vmem:[#allocation10 + $0x208] sm:$0xff]
    %v1243 = vld [vmem:[#allocation10 + $0x210] sm:$0xff]
    %v1244 = vld [vmem:[#allocation10 + $0x218] sm:$0xff]
    %v1245 = vld [vmem:[#allocation10 + $0x220] sm:$0xff]
    %v1246 = vld [vmem:[#allocation10 + $0x228] sm:$0xff]
    %v1247 = vld [vmem:[#allocation10 + $0x230] sm:$0xff]
    %v1248 = vld [vmem:[#allocation10 + $0x238] sm:$0xff]
    %v1249 = vld [vmem:[#allocation10 + $0x240] sm:$0xff]
    %v1250 = vld [vmem:[#allocation10 + $0x248] sm:$0xff]
    %v1251 = vld [vmem:[#allocation10 + $0x250] sm:$0xff]
    %v1252 = vld [vmem:[#allocation10 + $0x258] sm:$0xff]
    %v1253 = vld [vmem:[#allocation10 + $0x260] sm:$0xff]
    %v1254 = vld [vmem:[#allocation10 + $0x268] sm:$0xff]
    %v1255 = vld [vmem:[#allocation10 + $0x270] sm:$0xff]
    %v1256 = vld [vmem:[#allocation10 + $0x278] sm:$0xff]
    %v1257 = vld [vmem:[#allocation10 + $0x280] sm:$0xff]
    %v1258 = vld [vmem:[#allocation10 + $0x288] sm:$0xff]
    %v1259 = vld [vmem:[#allocation10 + $0x290] sm:$0xff]
    %v1260 = vld [vmem:[#allocation10 + $0x298] sm:$0xff]
    %v1261 = vld [vmem:[#allocation10 + $0x2a0] sm:$0xff]
    %v1262 = vld [vmem:[#allocation10 + $0x2a8] sm:$0xff]
    %v1263 = vld [vmem:[#allocation10 + $0x2b0] sm:$0xff]
    %v1264 = vld [vmem:[#allocation10 + $0x2b8] sm:$0xff]
    %v1265 = vld [vmem:[#allocation10 + $0x2c0] sm:$0xff]
    %v1266 = vld [vmem:[#allocation10 + $0x2c8] sm:$0xff]
    %v1267 = vld [vmem:[#allocation10 + $0x2d0] sm:$0xff]
    %v1268 = vld [vmem:[#allocation10 + $0x2d8] sm:$0xff]
    %v1269 = vld [vmem:[#allocation10 + $0x2e0] sm:$0xff]
    %v1270 = vld [vmem:[#allocation10 + $0x2e8] sm:$0xff]
    %v1271 = vld [vmem:[#allocation10 + $0x2f0] sm:$0xff]
    %v1272 = vld [vmem:[#allocation10 + $0x2f8] sm:$0xff]
    %v1273 = vld [vmem:[#allocation10 + $0x300] sm:$0xff]
    %v1274 = vld [vmem:[#allocation10 + $0x308] sm:$0xff]
    %v1275 = vld [vmem:[#allocation10 + $0x310] sm:$0xff]
    %v1276 = vld [vmem:[#allocation10 + $0x318] sm:$0xff]
    %v1277 = vld [vmem:[#allocation10 + $0x320] sm:$0xff]
    %v1278 = vld [vmem:[#allocation10 + $0x328] sm:$0xff]
    %v1279 = vld [vmem:[#allocation10 + $0x330] sm:$0xff]
    %v1280 = vld [vmem:[#allocation10 + $0x338] sm:$0xff]
    %v1281 = vld [vmem:[#allocation10 + $0x340] sm:$0xff]
    %v1282 = vld [vmem:[#allocation10 + $0x348] sm:$0xff]
    %v1283 = vld [vmem:[#allocation10 + $0x350] sm:$0xff]
    %v1284 = vld [vmem:[#allocation10 + $0x358] sm:$0xff]
    %v1285 = vld [vmem:[#allocation10 + $0x360] sm:$0xff]
    %v1286 = vld [vmem:[#allocation10 + $0x368] sm:$0xff]
    %v1287 = vld [vmem:[#allocation10 + $0x370] sm:$0xff]
    %v1288 = vld [vmem:[#allocation10 + $0x378] sm:$0xff]
    %v1289 = vld [vmem:[#allocation10 + $0x380] sm:$0xff]
    %v1290 = vld [vmem:[#allocation10 + $0x388] sm:$0xff]
    %v1291 = vld [vmem:[#allocation10 + $0x390] sm:$0xff]
    %v1292 = vld [vmem:[#allocation10 + $0x398] sm:$0xff]
    %v1293 = vld [vmem:[#allocation10 + $0x3a0] sm:$0xff]
    %v1294 = vld [vmem:[#allocation10 + $0x3a8] sm:$0xff]
    %v1295 = vld [vmem:[#allocation10 + $0x3b0] sm:$0xff]
    %v1296 = vld [vmem:[#allocation10 + $0x3b8] sm:$0xff]
    %v1297 = vld [vmem:[#allocation10 + $0x3c0] sm:$0xff]
    %v1298 = vld [vmem:[#allocation10 + $0x3c8] sm:$0xff]
    %v1299 = vld [vmem:[#allocation10 + $0x3d0] sm:$0xff]
    %v1300 = vld [vmem:[#allocation10 + $0x3d8] sm:$0xff]
    %v1301 = vld [vmem:[#allocation10 + $0x3e0] sm:$0xff]
    %v1302 = vld [vmem:[#allocation10 + $0x3e8] sm:$0xff]
    %v1303 = vld [vmem:[#allocation10 + $0x3f0] sm:$0xff]
    %v1304 = vld [vmem:[#allocation10 + $0x3f8] sm:$0xff]
    %1305 = vmatpush.msra.mxu0 %v1207
    %1306 = vmatpush.msra.mxu0 %v1205
    %1307 = vmatpush.msra.mxu0 %v1203
    %1308 = vmatpush.msra.mxu0 %v1201
    %1309 = vmatpush.msra.mxu0 %v1199
    %1310 = vmatpush.msra.mxu0 %v1197
    %1311 = vmatpush.msra.mxu0 %v1195
    %1312 = vmatpush.msra.mxu0 %v1193
    %1313 = vmatpush.msra.mxu0 %v1191
    %1314 = vmatpush.msra.mxu0 %v1189
    %1315 = vmatpush.msra.mxu0 %v1187
    %1316 = vmatpush.msra.mxu0 %v1185
    %1317 = vmatpush.msra.mxu0 %v1183
    %1318 = vmatpush.msra.mxu0 %v1181
    %1319 = vmatpush.msra.mxu0 %v1179
    %1320 = vmatpush.msra.mxu0 %v1177
    %1321 = vmatmul.f32.gmra.mxu0 %v1169
    %v1322 = vpop.f32.mrf.mxu0
    %v1323 = vadd.f32 %v509, %v1322
    %1324 = vmatmul.f32.gmra.mxu0 %v1173
    %v1325 = vpop.f32.mrf.mxu0
    %v1326 = vadd.f32 %v511, %v1325
    %1327 = vdwg.mxu0
    %1328 = vmatpush.msra.mxu0 %v1239
    %1329 = vmatpush.msra.mxu0 %v1237
    %1330 = vmatpush.msra.mxu0 %v1235
    %1331 = vmatpush.msra.mxu0 %v1233
    %1332 = vmatpush.msra.mxu0 %v1231
    %1333 = vmatpush.msra.mxu0 %v1229
    %1334 = vmatpush.msra.mxu0 %v1227
    %1335 = vmatpush.msra.mxu0 %v1225
    %1336 = vmatpush.msra.mxu0 %v1223
    %1337 = vmatpush.msra.mxu0 %v1221
    %1338 = vmatpush.msra.mxu0 %v1219
    %1339 = vmatpush.msra.mxu0 %v1217
    %1340 = vmatpush.msra.mxu0 %v1215
    %1341 = vmatpush.msra.mxu0 %v1213
    %1342 = vmatpush.msra.mxu0 %v1211
    %1343 = vmatpush.msra.mxu0 %v1209
    %1344 = vmatmul.f32.gmra.mxu0 %v1170
    %v1345 = vpop.f32.mrf.mxu0
    %v1346 = vadd.f32 %v1323, %v1345
    %1347 = vmatmul.f32.gmra.mxu0 %v1174
    %v1348 = vpop.f32.mrf.mxu0
    %v1349 = vadd.f32 %v1326, %v1348
    %1350 = vdwg.mxu0
    %1351 = vmatpush.msra.mxu0 %v1271
    %1352 = vmatpush.msra.mxu0 %v1269
    %1353 = vmatpush.msra.mxu0 %v1267
    %1354 = vmatpush.msra.mxu0 %v1265
    %1355 = vmatpush.msra.mxu0 %v1263
    %1356 = vmatpush.msra.mxu0 %v1261
    %1357 = vmatpush.msra.mxu0 %v1259
    %1358 = vmatpush.msra.mxu0 %v1257
    %1359 = vmatpush.msra.mxu0 %v1255
    %1360 = vmatpush.msra.mxu0 %v1253
    %1361 = vmatpush.msra.mxu0 %v1251
    %1362 = vmatpush.msra.mxu0 %v1249
    %1363 = vmatpush.msra.mxu0 %v1247
    %1364 = vmatpush.msra.mxu0 %v1245
    %1365 = vmatpush.msra.mxu0 %v1243
    %1366 = vmatpush.msra.mxu0 %v1241
    %1367 = vmatmul.f32.gmra.mxu0 %v1171
    %v1368 = vpop.f32.mrf.mxu0
    %v1369 = vadd.f32 %v1346, %v1368
    %1370 = vmatmul.f32.gmra.mxu0 %v1175
    %v1371 = vpop.f32.mrf.mxu0
    %v1372 = vadd.f32 %v1349, %v1371
    %1373 = vdwg.mxu0
    %1374 = vmatpush.msra.mxu0 %v1303
    %1375 = vmatpush.msra.mxu0 %v1301
    %1376 = vmatpush.msra.mxu0 %v1299
    %1377 = vmatpush.msra.mxu0 %v1297
    %1378 = vmatpush.msra.mxu0 %v1295
    %1379 = vmatpush.msra.mxu0 %v1293
    %1380 = vmatpush.msra.mxu0 %v1291
    %1381 = vmatpush.msra.mxu0 %v1289
    %1382 = vmatpush.msra.mxu0 %v1287
    %1383 = vmatpush.msra.mxu0 %v1285
    %1384 = vmatpush.msra.mxu0 %v1283
    %1385 = vmatpush.msra.mxu0 %v1281
    %1386 = vmatpush.msra.mxu0 %v1279
    %1387 = vmatpush.msra.mxu0 %v1277
    %1388 = vmatpush.msra.mxu0 %v1275
    %1389 = vmatpush.msra.mxu0 %v1273
    %1390 = vmatmul.f32.gmra.mxu0 %v1172
    %v1391 = vpop.f32.mrf.mxu0
    %v1392 = vadd.f32 %v1369, %v1391
    %1393 = vmatmul.f32.gmra.mxu0 %v1176
    %v1394 = vpop.f32.mrf.mxu0
    %v1395 = vadd.f32 %v1372, %v1394
    %1396 = vdwg.mxu0
    %1397 = vmatpush.msra.mxu0 %v1208
    %1398 = vmatpush.msra.mxu0 %v1206
    %1399 = vmatpush.msra.mxu0 %v1204
    %1400 = vmatpush.msra.mxu0 %v1202
    %1401 = vmatpush.msra.mxu0 %v1200
    %1402 = vmatpush.msra.mxu0 %v1198
    %1403 = vmatpush.msra.mxu0 %v1196
    %1404 = vmatpush.msra.mxu0 %v1194
    %1405 = vmatpush.msra.mxu0 %v1192
    %1406 = vmatpush.msra.mxu0 %v1190
    %1407 = vmatpush.msra.mxu0 %v1188
    %1408 = vmatpush.msra.mxu0 %v1186
    %1409 = vmatpush.msra.mxu0 %v1184
    %1410 = vmatpush.msra.mxu0 %v1182
    %1411 = vmatpush.msra.mxu0 %v1180
    %1412 = vmatpush.msra.mxu0 %v1178
    %1413 = vmatmul.f32.gmra.mxu0 %v1169
    %v1414 = vpop.f32.mrf.mxu0
    %v1415 = vadd.f32 %v510, %v1414
    %1416 = vmatmul.f32.gmra.mxu0 %v1173
    %v1417 = vpop.f32.mrf.mxu0
    %v1418 = vadd.f32 %v512, %v1417
    %1419 = vdwg.mxu0
    %1420 = vmatpush.msra.mxu0 %v1240
    %1421 = vmatpush.msra.mxu0 %v1238
    %1422 = vmatpush.msra.mxu0 %v1236
    %1423 = vmatpush.msra.mxu0 %v1234
    %1424 = vmatpush.msra.mxu0 %v1232
    %1425 = vmatpush.msra.mxu0 %v1230
    %1426 = vmatpush.msra.mxu0 %v1228
    %1427 = vmatpush.msra.mxu0 %v1226
    %1428 = vmatpush.msra.mxu0 %v1224
    %1429 = vmatpush.msra.mxu0 %v1222
    %1430 = vmatpush.msra.mxu0 %v1220
    %1431 = vmatpush.msra.mxu0 %v1218
    %1432 = vmatpush.msra.mxu0 %v1216
    %1433 = vmatpush.msra.mxu0 %v1214
    %1434 = vmatpush.msra.mxu0 %v1212
    %1435 = vmatpush.msra.mxu0 %v1210
    %1436 = vmatmul.f32.gmra.mxu0 %v1170
    %v1437 = vpop.f32.mrf.mxu0
    %v1438 = vadd.f32 %v1415, %v1437
    %1439 = vmatmul.f32.gmra.mxu0 %v1174
    %v1440 = vpop.f32.mrf.mxu0
    %v1441 = vadd.f32 %v1418, %v1440
    %1442 = vdwg.mxu0
    %1443 = vmatpush.msra.mxu0 %v1272
    %1444 = vmatpush.msra.mxu0 %v1270
    %1445 = vmatpush.msra.mxu0 %v1268
    %1446 = vmatpush.msra.mxu0 %v1266
    %1447 = vmatpush.msra.mxu0 %v1264
    %1448 = vmatpush.msra.mxu0 %v1262
    %1449 = vmatpush.msra.mxu0 %v1260
    %1450 = vmatpush.msra.mxu0 %v1258
    %1451 = vmatpush.msra.mxu0 %v1256
    %1452 = vmatpush.msra.mxu0 %v1254
    %1453 = vmatpush.msra.mxu0 %v1252
    %1454 = vmatpush.msra.mxu0 %v1250
    %1455 = vmatpush.msra.mxu0 %v1248
    %1456 = vmatpush.msra.mxu0 %v1246
    %1457 = vmatpush.msra.mxu0 %v1244
    %1458 = vmatpush.msra.mxu0 %v1242
    %1459 = vmatmul.f32.gmra.mxu0 %v1171
    %v1460 = vpop.f32.mrf.mxu0
    %v1461 = vadd.f32 %v1438, %v1460
    %1462 = vmatmul.f32.gmra.mxu0 %v1175
    %v1463 = vpop.f32.mrf.mxu0
    %v1464 = vadd.f32 %v1441, %v1463
    %1465 = vdwg.mxu0
    %1466 = vmatpush.msra.mxu0 %v1304
    %1467 = vmatpush.msra.mxu0 %v1302
    %1468 = vmatpush.msra.mxu0 %v1300
    %1469 = vmatpush.msra.mxu0 %v1298
    %1470 = vmatpush.msra.mxu0 %v1296
    %1471 = vmatpush.msra.mxu0 %v1294
    %1472 = vmatpush.msra.mxu0 %v1292
    %1473 = vmatpush.msra.mxu0 %v1290
    %1474 = vmatpush.msra.mxu0 %v1288
    %1475 = vmatpush.msra.mxu0 %v1286
    %1476 = vmatpush.msra.mxu0 %v1284
    %1477 = vmatpush.msra.mxu0 %v1282
    %1478 = vmatpush.msra.mxu0 %v1280
    %1479 = vmatpush.msra.mxu0 %v1278
    %1480 = vmatpush.msra.mxu0 %v1276
    %1481 = vmatpush.msra.mxu0 %v1274
    %1482 = vmatmul.f32.gmra.mxu0 %v1172
    %v1483 = vpop.f32.mrf.mxu0
    %v1484 = vadd.f32 %v1461, %v1483
    %1485 = vmatmul.f32.gmra.mxu0 %v1176
    %v1486 = vpop.f32.mrf.mxu0
    %v1487 = vadd.f32 %v1464, %v1486
    %1488 = vdwg.mxu0
    %v1489 = vld [vmem:[%s5] sm:$0x3]
    %v1490 = vld [vmem:[%s6] sm:$0x3]
    %v1491 = vadd.f32 %v1392, %v1484
    %1492 = vadd.xlane.f32.xlu0 %v1491
    %v1493 = vpop.xlane.xlu0 %1492
    %v1494 = vadd.f32 %v1395, %v1487
    %1495 = vadd.xlane.f32.xlu0 %v1494
    %v1496 = vpop.xlane.xlu0 %1495
    %v1497 = vrcp.pop 256.0
    %v1498 = vmul.f32 256.0, %v1497
    %v1499 = vsub.f32 1.0, %v1498
    %v1500 = vmul.f32 %v1497, %v1499
    %v1501 = vadd.f32 %v1497, %v1500
    %vm1502 = vweird.f32 %v1497
    %v1503 = vsel %vm1502, %v1497, %v1501
    %v1504 = vmul.f32 %v1493, %v1503
    %v1505 = vmul.f32 %v1496, %v1503
    %v1506 = vsub.f32 %v1392, %v1504
    %v1507 = vsub.f32 %v1484, %v1504
    %v1508 = vsub.f32 %v1395, %v1505
    %v1509 = vsub.f32 %v1487, %v1505
    %v1510 = vmul.f32 %v1506, %v1506
    %v1511 = vmul.f32 %v1507, %v1507
    %v1512 = vmul.f32 %v1508, %v1508
    %v1513 = vmul.f32 %v1509, %v1509
    %v1514 = vadd.f32 %v1510, %v1511
    %1515 = vadd.xlane.f32.xlu0 %v1514
    %v1516 = vpop.xlane.xlu0 %1515
    %v1517 = vadd.f32 %v1512, %v1513
    %1518 = vadd.xlane.f32.xlu0 %v1517
    %v1519 = vpop.xlane.xlu0 %1518
    %v1520 = vmul.f32 %v1516, %v1503
    %v1521 = vmul.f32 %v1519, %v1503
    %v1522 = vadd.f32 %v1520, 1e-05
    %v1523 = vadd.f32 %v1521, 1e-05
    %v1524 = vrsqrt.pop %v1522
    %v1525 = vmul.f32 %v1524, %v1522
    %v1526 = vmul.f32 %v1525, %v1524
    %v1527 = vmul.f32 0.5, %v1526
    %v1528 = vsub.f32 1.5, %v1527
    %v1529 = vmul.f32 %v1524, %v1528
    %vm1530 = vweird.f32 %v1522
    %vm1531 = vweird.f32 %v1524
    %vm1532 = vmor %vm1530, %vm1531
    %v1533 = vsel %vm1532, %v1524, %v1529
    %v1534 = vrsqrt.pop %v1523
    %v1535 = vmul.f32 %v1534, %v1523
    %v1536 = vmul.f32 %v1535, %v1534
    %v1537 = vmul.f32 0.5, %v1536
    %v1538 = vsub.f32 1.5, %v1537
    %v1539 = vmul.f32 %v1534, %v1538
    %vm1540 = vweird.f32 %v1523
    %vm1541 = vweird.f32 %v1534
    %vm1542 = vmor %vm1540, %vm1541
    %v1543 = vsel %vm1542, %v1534, %v1539
    %v1544 = vmul.f32 %v1506, %v1533
    %v1545 = vmul.f32 %v1507, %v1533
    %v1546 = vmul.f32 %v1508, %v1543
    %v1547 = vmul.f32 %v1509, %v1543
    %v1549 = vperm.slane %v1489, 0
    %v1550 = vperm.slane %v1489, 1
    %v1553 = vmul.f32 %v1544, %v1549
    %v1554 = vmul.f32 %v1545, %v1550
    %v1555 = vmul.f32 %v1546, %v1549
    %v1556 = vmul.f32 %v1547, %v1550
    %v1558 = vperm.slane %v1490, 0
    %v1559 = vperm.slane %v1490, 1
    %v1562 = vadd.f32 %v1553, %v1558
    %v1563 = vadd.f32 %v1554, %v1559
    %v1564 = vadd.f32 %v1555, %v1558
    %v1565 = vadd.f32 %v1556, %v1559
    %v1566 = vld [vmem:[#allocation11] sm:$0xff]
    %v1567 = vld [vmem:[#allocation11 + $0x8] sm:$0xff]
    %v1568 = vld [vmem:[#allocation11 + $0x10] sm:$0xff]
    %v1569 = vld [vmem:[#allocation11 + $0x18] sm:$0xff]
    %v1570 = vld [vmem:[#allocation11 + $0x20] sm:$0xff]
    %v1571 = vld [vmem:[#allocation11 + $0x28] sm:$0xff]
    %v1572 = vld [vmem:[#allocation11 + $0x30] sm:$0xff]
    %v1573 = vld [vmem:[#allocation11 + $0x38] sm:$0xff]
    %v1574 = vld [vmem:[#allocation11 + $0x40] sm:$0xff]
    %v1575 = vld [vmem:[#allocation11 + $0x48] sm:$0xff]
    %v1576 = vld [vmem:[#allocation11 + $0x50] sm:$0xff]
    %v1577 = vld [vmem:[#allocation11 + $0x58] sm:$0xff]
    %v1578 = vld [vmem:[#allocation11 + $0x60] sm:$0xff]
    %v1579 = vld [vmem:[#allocation11 + $0x68] sm:$0xff]
    %v1580 = vld [vmem:[#allocation11 + $0x70] sm:$0xff]
    %v1581 = vld [vmem:[#allocation11 + $0x78] sm:$0xff]
    %v1582 = vld [vmem:[#allocation11 + $0x80] sm:$0xff]
    %v1583 = vld [vmem:[#allocation11 + $0x88] sm:$0xff]
    %v1584 = vld [vmem:[#allocation11 + $0x90] sm:$0xff]
    %v1585 = vld [vmem:[#allocation11 + $0x98] sm:$0xff]
    %v1586 = vld [vmem:[#allocation11 + $0xa0] sm:$0xff]
    %v1587 = vld [vmem:[#allocation11 + $0xa8] sm:$0xff]
    %v1588 = vld [vmem:[#allocation11 + $0xb0] sm:$0xff]
    %v1589 = vld [vmem:[#allocation11 + $0xb8] sm:$0xff]
    %v1590 = vld [vmem:[#allocation11 + $0xc0] sm:$0xff]
    %v1591 = vld [vmem:[#allocation11 + $0xc8] sm:$0xff]
    %v1592 = vld [vmem:[#allocation11 + $0xd0] sm:$0xff]
    %v1593 = vld [vmem:[#allocation11 + $0xd8] sm:$0xff]
    %v1594 = vld [vmem:[#allocation11 + $0xe0] sm:$0xff]
    %v1595 = vld [vmem:[#allocation11 + $0xe8] sm:$0xff]
    %v1596 = vld [vmem:[#allocation11 + $0xf0] sm:$0xff]
    %v1597 = vld [vmem:[#allocation11 + $0xf8] sm:$0xff]
    %v1598 = vld [vmem:[#allocation11 + $0x100] sm:$0xff]
    %v1599 = vld [vmem:[#allocation11 + $0x108] sm:$0xff]
    %v1600 = vld [vmem:[#allocation11 + $0x110] sm:$0xff]
    %v1601 = vld [vmem:[#allocation11 + $0x118] sm:$0xff]
    %v1602 = vld [vmem:[#allocation11 + $0x120] sm:$0xff]
    %v1603 = vld [vmem:[#allocation11 + $0x128] sm:$0xff]
    %v1604 = vld [vmem:[#allocation11 + $0x130] sm:$0xff]
    %v1605 = vld [vmem:[#allocation11 + $0x138] sm:$0xff]
    %v1606 = vld [vmem:[#allocation11 + $0x140] sm:$0xff]
    %v1607 = vld [vmem:[#allocation11 + $0x148] sm:$0xff]
    %v1608 = vld [vmem:[#allocation11 + $0x150] sm:$0xff]
    %v1609 = vld [vmem:[#allocation11 + $0x158] sm:$0xff]
    %v1610 = vld [vmem:[#allocation11 + $0x160] sm:$0xff]
    %v1611 = vld [vmem:[#allocation11 + $0x168] sm:$0xff]
    %v1612 = vld [vmem:[#allocation11 + $0x170] sm:$0xff]
    %v1613 = vld [vmem:[#allocation11 + $0x178] sm:$0xff]
    %v1614 = vld [vmem:[#allocation11 + $0x180] sm:$0xff]
    %v1615 = vld [vmem:[#allocation11 + $0x188] sm:$0xff]
    %v1616 = vld [vmem:[#allocation11 + $0x190] sm:$0xff]
    %v1617 = vld [vmem:[#allocation11 + $0x198] sm:$0xff]
    %v1618 = vld [vmem:[#allocation11 + $0x1a0] sm:$0xff]
    %v1619 = vld [vmem:[#allocation11 + $0x1a8] sm:$0xff]
    %v1620 = vld [vmem:[#allocation11 + $0x1b0] sm:$0xff]
    %v1621 = vld [vmem:[#allocation11 + $0x1b8] sm:$0xff]
    %v1622 = vld [vmem:[#allocation11 + $0x1c0] sm:$0xff]
    %v1623 = vld [vmem:[#allocation11 + $0x1c8] sm:$0xff]
    %v1624 = vld [vmem:[#allocation11 + $0x1d0] sm:$0xff]
    %v1625 = vld [vmem:[#allocation11 + $0x1d8] sm:$0xff]
    %v1626 = vld [vmem:[#allocation11 + $0x1e0] sm:$0xff]
    %v1627 = vld [vmem:[#allocation11 + $0x1e8] sm:$0xff]
    %v1628 = vld [vmem:[#allocation11 + $0x1f0] sm:$0xff]
    %v1629 = vld [vmem:[#allocation11 + $0x1f8] sm:$0xff]
    %v1630 = vld [vmem:[#allocation11 + $0x200] sm:$0xff]
    %v1631 = vld [vmem:[#allocation11 + $0x208] sm:$0xff]
    %v1632 = vld [vmem:[#allocation11 + $0x210] sm:$0xff]
    %v1633 = vld [vmem:[#allocation11 + $0x218] sm:$0xff]
    %v1634 = vld [vmem:[#allocation11 + $0x220] sm:$0xff]
    %v1635 = vld [vmem:[#allocation11 + $0x228] sm:$0xff]
    %v1636 = vld [vmem:[#allocation11 + $0x230] sm:$0xff]
    %v1637 = vld [vmem:[#allocation11 + $0x238] sm:$0xff]
    %v1638 = vld [vmem:[#allocation11 + $0x240] sm:$0xff]
    %v1639 = vld [vmem:[#allocation11 + $0x248] sm:$0xff]
    %v1640 = vld [vmem:[#allocation11 + $0x250] sm:$0xff]
    %v1641 = vld [vmem:[#allocation11 + $0x258] sm:$0xff]
    %v1642 = vld [vmem:[#allocation11 + $0x260] sm:$0xff]
    %v1643 = vld [vmem:[#allocation11 + $0x268] sm:$0xff]
    %v1644 = vld [vmem:[#allocation11 + $0x270] sm:$0xff]
    %v1645 = vld [vmem:[#allocation11 + $0x278] sm:$0xff]
    %v1646 = vld [vmem:[#allocation11 + $0x280] sm:$0xff]
    %v1647 = vld [vmem:[#allocation11 + $0x288] sm:$0xff]
    %v1648 = vld [vmem:[#allocation11 + $0x290] sm:$0xff]
    %v1649 = vld [vmem:[#allocation11 + $0x298] sm:$0xff]
    %v1650 = vld [vmem:[#allocation11 + $0x2a0] sm:$0xff]
    %v1651 = vld [vmem:[#allocation11 + $0x2a8] sm:$0xff]
    %v1652 = vld [vmem:[#allocation11 + $0x2b0] sm:$0xff]
    %v1653 = vld [vmem:[#allocation11 + $0x2b8] sm:$0xff]
    %v1654 = vld [vmem:[#allocation11 + $0x2c0] sm:$0xff]
    %v1655 = vld [vmem:[#allocation11 + $0x2c8] sm:$0xff]
    %v1656 = vld [vmem:[#allocation11 + $0x2d0] sm:$0xff]
    %v1657 = vld [vmem:[#allocation11 + $0x2d8] sm:$0xff]
    %v1658 = vld [vmem:[#allocation11 + $0x2e0] sm:$0xff]
    %v1659 = vld [vmem:[#allocation11 + $0x2e8] sm:$0xff]
    %v1660 = vld [vmem:[#allocation11 + $0x2f0] sm:$0xff]
    %v1661 = vld [vmem:[#allocation11 + $0x2f8] sm:$0xff]
    %v1662 = vld [vmem:[#allocation11 + $0x300] sm:$0xff]
    %v1663 = vld [vmem:[#allocation11 + $0x308] sm:$0xff]
    %v1664 = vld [vmem:[#allocation11 + $0x310] sm:$0xff]
    %v1665 = vld [vmem:[#allocation11 + $0x318] sm:$0xff]
    %v1666 = vld [vmem:[#allocation11 + $0x320] sm:$0xff]
    %v1667 = vld [vmem:[#allocation11 + $0x328] sm:$0xff]
    %v1668 = vld [vmem:[#allocation11 + $0x330] sm:$0xff]
    %v1669 = vld [vmem:[#allocation11 + $0x338] sm:$0xff]
    %v1670 = vld [vmem:[#allocation11 + $0x340] sm:$0xff]
    %v1671 = vld [vmem:[#allocation11 + $0x348] sm:$0xff]
    %v1672 = vld [vmem:[#allocation11 + $0x350] sm:$0xff]
    %v1673 = vld [vmem:[#allocation11 + $0x358] sm:$0xff]
    %v1674 = vld [vmem:[#allocation11 + $0x360] sm:$0xff]
    %v1675 = vld [vmem:[#allocation11 + $0x368] sm:$0xff]
    %v1676 = vld [vmem:[#allocation11 + $0x370] sm:$0xff]
    %v1677 = vld [vmem:[#allocation11 + $0x378] sm:$0xff]
    %v1678 = vld [vmem:[#allocation11 + $0x380] sm:$0xff]
    %v1679 = vld [vmem:[#allocation11 + $0x388] sm:$0xff]
    %v1680 = vld [vmem:[#allocation11 + $0x390] sm:$0xff]
    %v1681 = vld [vmem:[#allocation11 + $0x398] sm:$0xff]
    %v1682 = vld [vmem:[#allocation11 + $0x3a0] sm:$0xff]
    %v1683 = vld [vmem:[#allocation11 + $0x3a8] sm:$0xff]
    %v1684 = vld [vmem:[#allocation11 + $0x3b0] sm:$0xff]
    %v1685 = vld [vmem:[#allocation11 + $0x3b8] sm:$0xff]
    %v1686 = vld [vmem:[#allocation11 + $0x3c0] sm:$0xff]
    %v1687 = vld [vmem:[#allocation11 + $0x3c8] sm:$0xff]
    %v1688 = vld [vmem:[#allocation11 + $0x3d0] sm:$0xff]
    %v1689 = vld [vmem:[#allocation11 + $0x3d8] sm:$0xff]
    %v1690 = vld [vmem:[#allocation11 + $0x3e0] sm:$0xff]
    %v1691 = vld [vmem:[#allocation11 + $0x3e8] sm:$0xff]
    %v1692 = vld [vmem:[#allocation11 + $0x3f0] sm:$0xff]
    %v1693 = vld [vmem:[#allocation11 + $0x3f8] sm:$0xff]
    %1694 = vmatpush.msra.mxu0 %v1626
    %1695 = vmatpush.msra.mxu0 %v1622
    %1696 = vmatpush.msra.mxu0 %v1618
    %1697 = vmatpush.msra.mxu0 %v1614
    %1698 = vmatpush.msra.mxu0 %v1610
    %1699 = vmatpush.msra.mxu0 %v1606
    %1700 = vmatpush.msra.mxu0 %v1602
    %1701 = vmatpush.msra.mxu0 %v1598
    %1702 = vmatpush.msra.mxu0 %v1594
    %1703 = vmatpush.msra.mxu0 %v1590
    %1704 = vmatpush.msra.mxu0 %v1586
    %1705 = vmatpush.msra.mxu0 %v1582
    %1706 = vmatpush.msra.mxu0 %v1578
    %1707 = vmatpush.msra.mxu0 %v1574
    %1708 = vmatpush.msra.mxu0 %v1570
    %1709 = vmatpush.msra.mxu0 %v1566
    %1710 = vmatmul.f32.gmra.mxu0 %v1562
    %v1711 = vpop.f32.mrf.mxu0
    %v1712 = vadd.f32 0.0, %v1711
    %1713 = vmatmul.f32.gmra.mxu0 %v1564
    %v1714 = vpop.f32.mrf.mxu0
    %v1715 = vadd.f32 0.0, %v1714
    %1716 = vdwg.mxu0
    %1717 = vmatpush.msra.mxu0 %v1690
    %1718 = vmatpush.msra.mxu0 %v1686
    %1719 = vmatpush.msra.mxu0 %v1682
    %1720 = vmatpush.msra.mxu0 %v1678
    %1721 = vmatpush.msra.mxu0 %v1674
    %1722 = vmatpush.msra.mxu0 %v1670
    %1723 = vmatpush.msra.mxu0 %v1666
    %1724 = vmatpush.msra.mxu0 %v1662
    %1725 = vmatpush.msra.mxu0 %v1658
    %1726 = vmatpush.msra.mxu0 %v1654
    %1727 = vmatpush.msra.mxu0 %v1650
    %1728 = vmatpush.msra.mxu0 %v1646
    %1729 = vmatpush.msra.mxu0 %v1642
    %1730 = vmatpush.msra.mxu0 %v1638
    %1731 = vmatpush.msra.mxu0 %v1634
    %1732 = vmatpush.msra.mxu0 %v1630
    %1733 = vmatmul.f32.gmra.mxu0 %v1563
    %v1734 = vpop.f32.mrf.mxu0
    %v1735 = vadd.f32 %v1712, %v1734
    %1736 = vmatmul.f32.gmra.mxu0 %v1565
    %v1737 = vpop.f32.mrf.mxu0
    %v1738 = vadd.f32 %v1715, %v1737
    %1739 = vdwg.mxu0
    %1740 = vmatpush.msra.mxu0 %v1627
    %1741 = vmatpush.msra.mxu0 %v1623
    %1742 = vmatpush.msra.mxu0 %v1619
    %1743 = vmatpush.msra.mxu0 %v1615
    %1744 = vmatpush.msra.mxu0 %v1611
    %1745 = vmatpush.msra.mxu0 %v1607
    %1746 = vmatpush.msra.mxu0 %v1603
    %1747 = vmatpush.msra.mxu0 %v1599
    %1748 = vmatpush.msra.mxu0 %v1595
    %1749 = vmatpush.msra.mxu0 %v1591
    %1750 = vmatpush.msra.mxu0 %v1587
    %1751 = vmatpush.msra.mxu0 %v1583
    %1752 = vmatpush.msra.mxu0 %v1579
    %1753 = vmatpush.msra.mxu0 %v1575
    %1754 = vmatpush.msra.mxu0 %v1571
    %1755 = vmatpush.msra.mxu0 %v1567
    %1756 = vmatmul.f32.gmra.mxu0 %v1562
    %v1757 = vpop.f32.mrf.mxu0
    %v1758 = vadd.f32 0.0, %v1757
    %1759 = vmatmul.f32.gmra.mxu0 %v1564
    %v1760 = vpop.f32.mrf.mxu0
    %v1761 = vadd.f32 0.0, %v1760
    %1762 = vdwg.mxu0
    %1763 = vmatpush.msra.mxu0 %v1691
    %1764 = vmatpush.msra.mxu0 %v1687
    %1765 = vmatpush.msra.mxu0 %v1683
    %1766 = vmatpush.msra.mxu0 %v1679
    %1767 = vmatpush.msra.mxu0 %v1675
    %1768 = vmatpush.msra.mxu0 %v1671
    %1769 = vmatpush.msra.mxu0 %v1667
    %1770 = vmatpush.msra.mxu0 %v1663
    %1771 = vmatpush.msra.mxu0 %v1659
    %1772 = vmatpush.msra.mxu0 %v1655
    %1773 = vmatpush.msra.mxu0 %v1651
    %1774 = vmatpush.msra.mxu0 %v1647
    %1775 = vmatpush.msra.mxu0 %v1643
    %1776 = vmatpush.msra.mxu0 %v1639
    %1777 = vmatpush.msra.mxu0 %v1635
    %1778 = vmatpush.msra.mxu0 %v1631
    %1779 = vmatmul.f32.gmra.mxu0 %v1563
    %v1780 = vpop.f32.mrf.mxu0
    %v1781 = vadd.f32 %v1758, %v1780
    %1782 = vmatmul.f32.gmra.mxu0 %v1565
    %v1783 = vpop.f32.mrf.mxu0
    %v1784 = vadd.f32 %v1761, %v1783
    %1785 = vdwg.mxu0
    %1786 = vmatpush.msra.mxu0 %v1628
    %1787 = vmatpush.msra.mxu0 %v1624
    %1788 = vmatpush.msra.mxu0 %v1620
    %1789 = vmatpush.msra.mxu0 %v1616
    %1790 = vmatpush.msra.mxu0 %v1612
    %1791 = vmatpush.msra.mxu0 %v1608
    %1792 = vmatpush.msra.mxu0 %v1604
    %1793 = vmatpush.msra.mxu0 %v1600
    %1794 = vmatpush.msra.mxu0 %v1596
    %1795 = vmatpush.msra.mxu0 %v1592
    %1796 = vmatpush.msra.mxu0 %v1588
    %1797 = vmatpush.msra.mxu0 %v1584
    %1798 = vmatpush.msra.mxu0 %v1580
    %1799 = vmatpush.msra.mxu0 %v1576
    %1800 = vmatpush.msra.mxu0 %v1572
    %1801 = vmatpush.msra.mxu0 %v1568
    %1802 = vmatmul.f32.gmra.mxu0 %v1562
    %v1803 = vpop.f32.mrf.mxu0
    %v1804 = vadd.f32 0.0, %v1803
    %1805 = vmatmul.f32.gmra.mxu0 %v1564
    %v1806 = vpop.f32.mrf.mxu0
    %v1807 = vadd.f32 0.0, %v1806
    %1808 = vdwg.mxu0
    %1809 = vmatpush.msra.mxu0 %v1692
    %1810 = vmatpush.msra.mxu0 %v1688
    %1811 = vmatpush.msra.mxu0 %v1684
    %1812 = vmatpush.msra.mxu0 %v1680
    %1813 = vmatpush.msra.mxu0 %v1676
    %1814 = vmatpush.msra.mxu0 %v1672
    %1815 = vmatpush.msra.mxu0 %v1668
    %1816 = vmatpush.msra.mxu0 %v1664
    %1817 = vmatpush.msra.mxu0 %v1660
    %1818 = vmatpush.msra.mxu0 %v1656
    %1819 = vmatpush.msra.mxu0 %v1652
    %1820 = vmatpush.msra.mxu0 %v1648
    %1821 = vmatpush.msra.mxu0 %v1644
    %1822 = vmatpush.msra.mxu0 %v1640
    %1823 = vmatpush.msra.mxu0 %v1636
    %1824 = vmatpush.msra.mxu0 %v1632
    %1825 = vmatmul.f32.gmra.mxu0 %v1563
    %v1826 = vpop.f32.mrf.mxu0
    %v1827 = vadd.f32 %v1804, %v1826
    %1828 = vmatmul.f32.gmra.mxu0 %v1565
    %v1829 = vpop.f32.mrf.mxu0
    %v1830 = vadd.f32 %v1807, %v1829
    %1831 = vdwg.mxu0
    %1832 = vmatpush.msra.mxu0 %v1629
    %1833 = vmatpush.msra.mxu0 %v1625
    %1834 = vmatpush.msra.mxu0 %v1621
    %1835 = vmatpush.msra.mxu0 %v1617
    %1836 = vmatpush.msra.mxu0 %v1613
    %1837 = vmatpush.msra.mxu0 %v1609
    %1838 = vmatpush.msra.mxu0 %v1605
    %1839 = vmatpush.msra.mxu0 %v1601
    %1840 = vmatpush.msra.mxu0 %v1597
    %1841 = vmatpush.msra.mxu0 %v1593
    %1842 = vmatpush.msra.mxu0 %v1589
    %1843 = vmatpush.msra.mxu0 %v1585
    %1844 = vmatpush.msra.mxu0 %v1581
    %1845 = vmatpush.msra.mxu0 %v1577
    %1846 = vmatpush.msra.mxu0 %v1573
    %1847 = vmatpush.msra.mxu0 %v1569
    %1848 = vmatmul.f32.gmra.mxu0 %v1562
    %v1849 = vpop.f32.mrf.mxu0
    %v1850 = vadd.f32 0.0, %v1849
    %1851 = vmatmul.f32.gmra.mxu0 %v1564
    %v1852 = vpop.f32.mrf.mxu0
    %v1853 = vadd.f32 0.0, %v1852
    %1854 = vdwg.mxu0
    %1855 = vmatpush.msra.mxu0 %v1693
    %1856 = vmatpush.msra.mxu0 %v1689
    %1857 = vmatpush.msra.mxu0 %v1685
    %1858 = vmatpush.msra.mxu0 %v1681
    %1859 = vmatpush.msra.mxu0 %v1677
    %1860 = vmatpush.msra.mxu0 %v1673
    %1861 = vmatpush.msra.mxu0 %v1669
    %1862 = vmatpush.msra.mxu0 %v1665
    %1863 = vmatpush.msra.mxu0 %v1661
    %1864 = vmatpush.msra.mxu0 %v1657
    %1865 = vmatpush.msra.mxu0 %v1653
    %1866 = vmatpush.msra.mxu0 %v1649
    %1867 = vmatpush.msra.mxu0 %v1645
    %1868 = vmatpush.msra.mxu0 %v1641
    %1869 = vmatpush.msra.mxu0 %v1637
    %1870 = vmatpush.msra.mxu0 %v1633
    %1871 = vmatmul.f32.gmra.mxu0 %v1563
    %v1872 = vpop.f32.mrf.mxu0
    %v1873 = vadd.f32 %v1850, %v1872
    %1874 = vmatmul.f32.gmra.mxu0 %v1565
    %v1875 = vpop.f32.mrf.mxu0
    %v1876 = vadd.f32 %v1853, %v1875
    %1877 = vdwg.mxu0
    %v1878 = vmul.f32 %v1735, 0.5
    %v1879 = vmul.f32 %v1781, 0.5
    %v1880 = vmul.f32 %v1827, 0.5
    %v1881 = vmul.f32 %v1873, 0.5
    %v1882 = vmul.f32 %v1738, 0.5
    %v1883 = vmul.f32 %v1784, 0.5
    %v1884 = vmul.f32 %v1830, 0.5
    %v1885 = vmul.f32 %v1876, 0.5
    %v1886 = vmul.f32 %v1735, 0.70710677
    %v1887 = vmul.f32 %v1781, 0.70710677
    %v1888 = vmul.f32 %v1827, 0.70710677
    %v1889 = vmul.f32 %v1873, 0.70710677
    %v1890 = vmul.f32 %v1738, 0.70710677
    %v1891 = vmul.f32 %v1784, 0.70710677
    %v1892 = vmul.f32 %v1830, 0.70710677
    %v1893 = vmul.f32 %v1876, 0.70710677
    %v1894 = vmul.f32 %v1886, %v1886
    %v1895 = vmin.f32 16.0, %v1894
    %v1896 = vmul.f32 %v1895, 2.1237322e-06
    %v1897 = vadd.f32 %v1896, 0.00028619796
    %v1898 = vmul.f32 %v1895, %v1897
    %v1899 = vadd.f32 %v1898, 0.0036580483
    %v1900 = vmul.f32 %v1895, %v1899
    %v1901 = vadd.f32 %v1900, 0.05243302
    %v1902 = vmul.f32 %v1895, %v1901
    %v1903 = vadd.f32 %v1902, 0.18741608
    %v1904 = vmul.f32 %v1895, %v1903
    %v1905 = vadd.f32 %v1904, 1.1283791
    %v1906 = vmul.f32 %v1886, %v1905
    %v1907 = vmul.f32 %v1895, 3.8918573e-05
    %v1908 = vadd.f32 %v1907, 0.001143296
    %v1909 = vmul.f32 %v1895, %v1908
    %v1910 = vadd.f32 %v1909, 0.014752088
    %v1911 = vmul.f32 %v1895, %v1910
    %v1912 = vadd.f32 %v1911, 0.112945676
    %v1913 = vmul.f32 %v1895, %v1912
    %v1914 = vadd.f32 %v1913, 0.4994258
    %v1915 = vmul.f32 %v1895, %v1914
    %v1916 = vadd.f32 %v1915, 1.0
    %v1917 = vrcp.pop %v1916
    %v1918 = vmul.f32 %v1916, %v1917
    %v1919 = vsub.f32 1.0, %v1918
    %v1920 = vmul.f32 %v1917, %v1919
    %v1921 = vadd.f32 %v1917, %v1920
    %vm1922 = vweird.f32 %v1916
    %vm1923 = vweird.f32 %v1917
    %vm1924 = vmor %vm1922, %vm1923
    %v1925 = vsel %vm1924, %v1917, %v1921
    %v1926 = vand.u32 2147483647, %v1916
    %vm1927 = vcmp.eq.f32.partialorder %v1926, 8.507059e+37
    %v1928 = vand.u32 %v1916, 2147483648
    %v1929 = vor.u32 1.1754944e-38, %v1928
    %v1930 = vsel %vm1927, %v1929, %v1925
    %v1931 = vmul.f32 %v1906, %v1930
    %v1932 = vmin.f32 %v1931, 1.0
    %v1933 = vmax.f32 %v1932, -1.0
    %v1934 = vmul.f32 %v1887, %v1887
    %v1935 = vmin.f32 16.0, %v1934
    %v1936 = vmul.f32 %v1935, 2.1237322e-06
    %v1937 = vadd.f32 %v1936, 0.00028619796
    %v1938 = vmul.f32 %v1935, %v1937
    %v1939 = vadd.f32 %v1938, 0.0036580483
    %v1940 = vmul.f32 %v1935, %v1939
    %v1941 = vadd.f32 %v1940, 0.05243302
    %v1942 = vmul.f32 %v1935, %v1941
    %v1943 = vadd.f32 %v1942, 0.18741608
    %v1944 = vmul.f32 %v1935, %v1943
    %v1945 = vadd.f32 %v1944, 1.1283791
    %v1946 = vmul.f32 %v1887, %v1945
    %v1947 = vmul.f32 %v1935, 3.8918573e-05
    %v1948 = vadd.f32 %v1947, 0.001143296
    %v1949 = vmul.f32 %v1935, %v1948
    %v1950 = vadd.f32 %v1949, 0.014752088
    %v1951 = vmul.f32 %v1935, %v1950
    %v1952 = vadd.f32 %v1951, 0.112945676
    %v1953 = vmul.f32 %v1935, %v1952
    %v1954 = vadd.f32 %v1953, 0.4994258
    %v1955 = vmul.f32 %v1935, %v1954
    %v1956 = vadd.f32 %v1955, 1.0
    %v1957 = vrcp.pop %v1956
    %v1958 = vmul.f32 %v1956, %v1957
    %v1959 = vsub.f32 1.0, %v1958
    %v1960 = vmul.f32 %v1957, %v1959
    %v1961 = vadd.f32 %v1957, %v1960
    %vm1962 = vweird.f32 %v1956
    %vm1963 = vweird.f32 %v1957
    %vm1964 = vmor %vm1962, %vm1963
    %v1965 = vsel %vm1964, %v1957, %v1961
    %v1966 = vand.u32 2147483647, %v1956
    %vm1967 = vcmp.eq.f32.partialorder %v1966, 8.507059e+37
    %v1968 = vand.u32 %v1956, 2147483648
    %v1969 = vor.u32 1.1754944e-38, %v1968
    %v1970 = vsel %vm1967, %v1969, %v1965
    %v1971 = vmul.f32 %v1946, %v1970
    %v1972 = vmin.f32 %v1971, 1.0
    %v1973 = vmax.f32 %v1972, -1.0
    %v1974 = vmul.f32 %v1888, %v1888
    %v1975 = vmin.f32 16.0, %v1974
    %v1976 = vmul.f32 %v1975, 2.1237322e-06
    %v1977 = vadd.f32 %v1976, 0.00028619796
    %v1978 = vmul.f32 %v1975, %v1977
    %v1979 = vadd.f32 %v1978, 0.0036580483
    %v1980 = vmul.f32 %v1975, %v1979
    %v1981 = vadd.f32 %v1980, 0.05243302
    %v1982 = vmul.f32 %v1975, %v1981
    %v1983 = vadd.f32 %v1982, 0.18741608
    %v1984 = vmul.f32 %v1975, %v1983
    %v1985 = vadd.f32 %v1984, 1.1283791
    %v1986 = vmul.f32 %v1888, %v1985
    %v1987 = vmul.f32 %v1975, 3.8918573e-05
    %v1988 = vadd.f32 %v1987, 0.001143296
    %v1989 = vmul.f32 %v1975, %v1988
    %v1990 = vadd.f32 %v1989, 0.014752088
    %v1991 = vmul.f32 %v1975, %v1990
    %v1992 = vadd.f32 %v1991, 0.112945676
    %v1993 = vmul.f32 %v1975, %v1992
    %v1994 = vadd.f32 %v1993, 0.4994258
    %v1995 = vmul.f32 %v1975, %v1994
    %v1996 = vadd.f32 %v1995, 1.0
    %v1997 = vrcp.pop %v1996
    %v1998 = vmul.f32 %v1996, %v1997
    %v1999 = vsub.f32 1.0, %v1998
    %v2000 = vmul.f32 %v1997, %v1999
    %v2001 = vadd.f32 %v1997, %v2000
    %vm2002 = vweird.f32 %v1996
    %vm2003 = vweird.f32 %v1997
    %vm2004 = vmor %vm2002, %vm2003
    %v2005 = vsel %vm2004, %v1997, %v2001
    %v2006 = vand.u32 2147483647, %v1996
    %vm2007 = vcmp.eq.f32.partialorder %v2006, 8.507059e+37
    %v2008 = vand.u32 %v1996, 2147483648
    %v2009 = vor.u32 1.1754944e-38, %v2008
    %v2010 = vsel %vm2007, %v2009, %v2005
    %v2011 = vmul.f32 %v1986, %v2010
    %v2012 = vmin.f32 %v2011, 1.0
    %v2013 = vmax.f32 %v2012, -1.0
    %v2014 = vmul.f32 %v1889, %v1889
    %v2015 = vmin.f32 16.0, %v2014
    %v2016 = vmul.f32 %v2015, 2.1237322e-06
    %v2017 = vadd.f32 %v2016, 0.00028619796
    %v2018 = vmul.f32 %v2015, %v2017
    %v2019 = vadd.f32 %v2018, 0.0036580483
    %v2020 = vmul.f32 %v2015, %v2019
    %v2021 = vadd.f32 %v2020, 0.05243302
    %v2022 = vmul.f32 %v2015, %v2021
    %v2023 = vadd.f32 %v2022, 0.18741608
    %v2024 = vmul.f32 %v2015, %v2023
    %v2025 = vadd.f32 %v2024, 1.1283791
    %v2026 = vmul.f32 %v1889, %v2025
    %v2027 = vmul.f32 %v2015, 3.8918573e-05
    %v2028 = vadd.f32 %v2027, 0.001143296
    %v2029 = vmul.f32 %v2015, %v2028
    %v2030 = vadd.f32 %v2029, 0.014752088
    %v2031 = vmul.f32 %v2015, %v2030
    %v2032 = vadd.f32 %v2031, 0.112945676
    %v2033 = vmul.f32 %v2015, %v2032
    %v2034 = vadd.f32 %v2033, 0.4994258
    %v2035 = vmul.f32 %v2015, %v2034
    %v2036 = vadd.f32 %v2035, 1.0
    %v2037 = vrcp.pop %v2036
    %v2038 = vmul.f32 %v2036, %v2037
    %v2039 = vsub.f32 1.0, %v2038
    %v2040 = vmul.f32 %v2037, %v2039
    %v2041 = vadd.f32 %v2037, %v2040
    %vm2042 = vweird.f32 %v2036
    %vm2043 = vweird.f32 %v2037
    %vm2044 = vmor %vm2042, %vm2043
    %v2045 = vsel %vm2044, %v2037, %v2041
    %v2046 = vand.u32 2147483647, %v2036
    %vm2047 = vcmp.eq.f32.partialorder %v2046, 8.507059e+37
    %v2048 = vand.u32 %v2036, 2147483648
    %v2049 = vor.u32 1.1754944e-38, %v2048
    %v2050 = vsel %vm2047, %v2049, %v2045
    %v2051 = vmul.f32 %v2026, %v2050
    %v2052 = vmin.f32 %v2051, 1.0
    %v2053 = vmax.f32 %v2052, -1.0
    %v2054 = vmul.f32 %v1890, %v1890
    %v2055 = vmin.f32 16.0, %v2054
    %v2056 = vmul.f32 %v2055, 2.1237322e-06
    %v2057 = vadd.f32 %v2056, 0.00028619796
    %v2058 = vmul.f32 %v2055, %v2057
    %v2059 = vadd.f32 %v2058, 0.0036580483
    %v2060 = vmul.f32 %v2055, %v2059
    %v2061 = vadd.f32 %v2060, 0.05243302
    %v2062 = vmul.f32 %v2055, %v2061
    %v2063 = vadd.f32 %v2062, 0.18741608
    %v2064 = vmul.f32 %v2055, %v2063
    %v2065 = vadd.f32 %v2064, 1.1283791
    %v2066 = vmul.f32 %v1890, %v2065
    %v2067 = vmul.f32 %v2055, 3.8918573e-05
    %v2068 = vadd.f32 %v2067, 0.001143296
    %v2069 = vmul.f32 %v2055, %v2068
    %v2070 = vadd.f32 %v2069, 0.014752088
    %v2071 = vmul.f32 %v2055, %v2070
    %v2072 = vadd.f32 %v2071, 0.112945676
    %v2073 = vmul.f32 %v2055, %v2072
    %v2074 = vadd.f32 %v2073, 0.4994258
    %v2075 = vmul.f32 %v2055, %v2074
    %v2076 = vadd.f32 %v2075, 1.0
    %v2077 = vrcp.pop %v2076
    %v2078 = vmul.f32 %v2076, %v2077
    %v2079 = vsub.f32 1.0, %v2078
    %v2080 = vmul.f32 %v2077, %v2079
    %v2081 = vadd.f32 %v2077, %v2080
    %vm2082 = vweird.f32 %v2076
    %vm2083 = vweird.f32 %v2077
    %vm2084 = vmor %vm2082, %vm2083
    %v2085 = vsel %vm2084, %v2077, %v2081
    %v2086 = vand.u32 2147483647, %v2076
    %vm2087 = vcmp.eq.f32.partialorder %v2086, 8.507059e+37
    %v2088 = vand.u32 %v2076, 2147483648
    %v2089 = vor.u32 1.1754944e-38, %v2088
    %v2090 = vsel %vm2087, %v2089, %v2085
    %v2091 = vmul.f32 %v2066, %v2090
    %v2092 = vmin.f32 %v2091, 1.0
    %v2093 = vmax.f32 %v2092, -1.0
    %v2094 = vmul.f32 %v1891, %v1891
    %v2095 = vmin.f32 16.0, %v2094
    %v2096 = vmul.f32 %v2095, 2.1237322e-06
    %v2097 = vadd.f32 %v2096, 0.00028619796
    %v2098 = vmul.f32 %v2095, %v2097
    %v2099 = vadd.f32 %v2098, 0.0036580483
    %v2100 = vmul.f32 %v2095, %v2099
    %v2101 = vadd.f32 %v2100, 0.05243302
    %v2102 = vmul.f32 %v2095, %v2101
    %v2103 = vadd.f32 %v2102, 0.18741608
    %v2104 = vmul.f32 %v2095, %v2103
    %v2105 = vadd.f32 %v2104, 1.1283791
    %v2106 = vmul.f32 %v1891, %v2105
    %v2107 = vmul.f32 %v2095, 3.8918573e-05
    %v2108 = vadd.f32 %v2107, 0.001143296
    %v2109 = vmul.f32 %v2095, %v2108
    %v2110 = vadd.f32 %v2109, 0.014752088
    %v2111 = vmul.f32 %v2095, %v2110
    %v2112 = vadd.f32 %v2111, 0.112945676
    %v2113 = vmul.f32 %v2095, %v2112
    %v2114 = vadd.f32 %v2113, 0.4994258
    %v2115 = vmul.f32 %v2095, %v2114
    %v2116 = vadd.f32 %v2115, 1.0
    %v2117 = vrcp.pop %v2116
    %v2118 = vmul.f32 %v2116, %v2117
    %v2119 = vsub.f32 1.0, %v2118
    %v2120 = vmul.f32 %v2117, %v2119
    %v2121 = vadd.f32 %v2117, %v2120
    %vm2122 = vweird.f32 %v2116
    %vm2123 = vweird.f32 %v2117
    %vm2124 = vmor %vm2122, %vm2123
    %v2125 = vsel %vm2124, %v2117, %v2121
    %v2126 = vand.u32 2147483647, %v2116
    %vm2127 = vcmp.eq.f32.partialorder %v2126, 8.507059e+37
    %v2128 = vand.u32 %v2116, 2147483648
    %v2129 = vor.u32 1.1754944e-38, %v2128
    %v2130 = vsel %vm2127, %v2129, %v2125
    %v2131 = vmul.f32 %v2106, %v2130
    %v2132 = vmin.f32 %v2131, 1.0
    %v2133 = vmax.f32 %v2132, -1.0
    %v2134 = vmul.f32 %v1892, %v1892
    %v2135 = vmin.f32 16.0, %v2134
    %v2136 = vmul.f32 %v2135, 2.1237322e-06
    %v2137 = vadd.f32 %v2136, 0.00028619796
    %v2138 = vmul.f32 %v2135, %v2137
    %v2139 = vadd.f32 %v2138, 0.0036580483
    %v2140 = vmul.f32 %v2135, %v2139
    %v2141 = vadd.f32 %v2140, 0.05243302
    %v2142 = vmul.f32 %v2135, %v2141
    %v2143 = vadd.f32 %v2142, 0.18741608
    %v2144 = vmul.f32 %v2135, %v2143
    %v2145 = vadd.f32 %v2144, 1.1283791
    %v2146 = vmul.f32 %v1892, %v2145
    %v2147 = vmul.f32 %v2135, 3.8918573e-05
    %v2148 = vadd.f32 %v2147, 0.001143296
    %v2149 = vmul.f32 %v2135, %v2148
    %v2150 = vadd.f32 %v2149, 0.014752088
    %v2151 = vmul.f32 %v2135, %v2150
    %v2152 = vadd.f32 %v2151, 0.112945676
    %v2153 = vmul.f32 %v2135, %v2152
    %v2154 = vadd.f32 %v2153, 0.4994258
    %v2155 = vmul.f32 %v2135, %v2154
    %v2156 = vadd.f32 %v2155, 1.0
    %v2157 = vrcp.pop %v2156
    %v2158 = vmul.f32 %v2156, %v2157
    %v2159 = vsub.f32 1.0, %v2158
    %v2160 = vmul.f32 %v2157, %v2159
    %v2161 = vadd.f32 %v2157, %v2160
    %vm2162 = vweird.f32 %v2156
    %vm2163 = vweird.f32 %v2157
    %vm2164 = vmor %vm2162, %vm2163
    %v2165 = vsel %vm2164, %v2157, %v2161
    %v2166 = vand.u32 2147483647, %v2156
    %vm2167 = vcmp.eq.f32.partialorder %v2166, 8.507059e+37
    %v2168 = vand.u32 %v2156, 2147483648
    %v2169 = vor.u32 1.1754944e-38, %v2168
    %v2170 = vsel %vm2167, %v2169, %v2165
    %v2171 = vmul.f32 %v2146, %v2170
    %v2172 = vmin.f32 %v2171, 1.0
    %v2173 = vmax.f32 %v2172, -1.0
    %v2174 = vmul.f32 %v1893, %v1893
    %v2175 = vmin.f32 16.0, %v2174
    %v2176 = vmul.f32 %v2175, 2.1237322e-06
    %v2177 = vadd.f32 %v2176, 0.00028619796
    %v2178 = vmul.f32 %v2175, %v2177
    %v2179 = vadd.f32 %v2178, 0.0036580483
    %v2180 = vmul.f32 %v2175, %v2179
    %v2181 = vadd.f32 %v2180, 0.05243302
    %v2182 = vmul.f32 %v2175, %v2181
    %v2183 = vadd.f32 %v2182, 0.18741608
    %v2184 = vmul.f32 %v2175, %v2183
    %v2185 = vadd.f32 %v2184, 1.1283791
    %v2186 = vmul.f32 %v1893, %v2185
    %v2187 = vmul.f32 %v2175, 3.8918573e-05
    %v2188 = vadd.f32 %v2187, 0.001143296
    %v2189 = vmul.f32 %v2175, %v2188
    %v2190 = vadd.f32 %v2189, 0.014752088
    %v2191 = vmul.f32 %v2175, %v2190
    %v2192 = vadd.f32 %v2191, 0.112945676
    %v2193 = vmul.f32 %v2175, %v2192
    %v2194 = vadd.f32 %v2193, 0.4994258
    %v2195 = vmul.f32 %v2175, %v2194
    %v2196 = vadd.f32 %v2195, 1.0
    %v2197 = vrcp.pop %v2196
    %v2198 = vmul.f32 %v2196, %v2197
    %v2199 = vsub.f32 1.0, %v2198
    %v2200 = vmul.f32 %v2197, %v2199
    %v2201 = vadd.f32 %v2197, %v2200
    %vm2202 = vweird.f32 %v2196
    %vm2203 = vweird.f32 %v2197
    %vm2204 = vmor %vm2202, %vm2203
    %v2205 = vsel %vm2204, %v2197, %v2201
    %v2206 = vand.u32 2147483647, %v2196
    %vm2207 = vcmp.eq.f32.partialorder %v2206, 8.507059e+37
    %v2208 = vand.u32 %v2196, 2147483648
    %v2209 = vor.u32 1.1754944e-38, %v2208
    %v2210 = vsel %vm2207, %v2209, %v2205
    %v2211 = vmul.f32 %v2186, %v2210
    %v2212 = vmin.f32 %v2211, 1.0
    %v2213 = vmax.f32 %v2212, -1.0
    %v2214 = vadd.f32 %v1933, 1.0
    %v2215 = vadd.f32 %v1973, 1.0
    %v2216 = vadd.f32 %v2013, 1.0
    %v2217 = vadd.f32 %v2053, 1.0
    %v2218 = vadd.f32 %v2093, 1.0
    %v2219 = vadd.f32 %v2133, 1.0
    %v2220 = vadd.f32 %v2173, 1.0
    %v2221 = vadd.f32 %v2213, 1.0
    %v2222 = vmul.f32 %v1878, %v2214
    %v2223 = vmul.f32 %v1879, %v2215
    %v2224 = vmul.f32 %v1880, %v2216
    %v2225 = vmul.f32 %v1881, %v2217
    %v2226 = vmul.f32 %v1882, %v2218
    %v2227 = vmul.f32 %v1883, %v2219
    %v2228 = vmul.f32 %v1884, %v2220
    %v2229 = vmul.f32 %v1885, %v2221
    %v2230 = vld [vmem:[#allocation13] sm:$0xff]
    %v2231 = vld [vmem:[#allocation13 + $0x8] sm:$0xff]
    %v2232 = vld [vmem:[#allocation13 + $0x10] sm:$0xff]
    %v2233 = vld [vmem:[#allocation13 + $0x18] sm:$0xff]
    %v2234 = vld [vmem:[#allocation13 + $0x20] sm:$0xff]
    %v2235 = vld [vmem:[#allocation13 + $0x28] sm:$0xff]
    %v2236 = vld [vmem:[#allocation13 + $0x30] sm:$0xff]
    %v2237 = vld [vmem:[#allocation13 + $0x38] sm:$0xff]
    %v2238 = vld [vmem:[#allocation13 + $0x40] sm:$0xff]
    %v2239 = vld [vmem:[#allocation13 + $0x48] sm:$0xff]
    %v2240 = vld [vmem:[#allocation13 + $0x50] sm:$0xff]
    %v2241 = vld [vmem:[#allocation13 + $0x58] sm:$0xff]
    %v2242 = vld [vmem:[#allocation13 + $0x60] sm:$0xff]
    %v2243 = vld [vmem:[#allocation13 + $0x68] sm:$0xff]
    %v2244 = vld [vmem:[#allocation13 + $0x70] sm:$0xff]
    %v2245 = vld [vmem:[#allocation13 + $0x78] sm:$0xff]
    %v2246 = vld [vmem:[#allocation13 + $0x80] sm:$0xff]
    %v2247 = vld [vmem:[#allocation13 + $0x88] sm:$0xff]
    %v2248 = vld [vmem:[#allocation13 + $0x90] sm:$0xff]
    %v2249 = vld [vmem:[#allocation13 + $0x98] sm:$0xff]
    %v2250 = vld [vmem:[#allocation13 + $0xa0] sm:$0xff]
    %v2251 = vld [vmem:[#allocation13 + $0xa8] sm:$0xff]
    %v2252 = vld [vmem:[#allocation13 + $0xb0] sm:$0xff]
    %v2253 = vld [vmem:[#allocation13 + $0xb8] sm:$0xff]
    %v2254 = vld [vmem:[#allocation13 + $0xc0] sm:$0xff]
    %v2255 = vld [vmem:[#allocation13 + $0xc8] sm:$0xff]
    %v2256 = vld [vmem:[#allocation13 + $0xd0] sm:$0xff]
    %v2257 = vld [vmem:[#allocation13 + $0xd8] sm:$0xff]
    %v2258 = vld [vmem:[#allocation13 + $0xe0] sm:$0xff]
    %v2259 = vld [vmem:[#allocation13 + $0xe8] sm:$0xff]
    %v2260 = vld [vmem:[#allocation13 + $0xf0] sm:$0xff]
    %v2261 = vld [vmem:[#allocation13 + $0xf8] sm:$0xff]
    %v2262 = vld [vmem:[#allocation13 + $0x100] sm:$0xff]
    %v2263 = vld [vmem:[#allocation13 + $0x108] sm:$0xff]
    %v2264 = vld [vmem:[#allocation13 + $0x110] sm:$0xff]
    %v2265 = vld [vmem:[#allocation13 + $0x118] sm:$0xff]
    %v2266 = vld [vmem:[#allocation13 + $0x120] sm:$0xff]
    %v2267 = vld [vmem:[#allocation13 + $0x128] sm:$0xff]
    %v2268 = vld [vmem:[#allocation13 + $0x130] sm:$0xff]
    %v2269 = vld [vmem:[#allocation13 + $0x138] sm:$0xff]
    %v2270 = vld [vmem:[#allocation13 + $0x140] sm:$0xff]
    %v2271 = vld [vmem:[#allocation13 + $0x148] sm:$0xff]
    %v2272 = vld [vmem:[#allocation13 + $0x150] sm:$0xff]
    %v2273 = vld [vmem:[#allocation13 + $0x158] sm:$0xff]
    %v2274 = vld [vmem:[#allocation13 + $0x160] sm:$0xff]
    %v2275 = vld [vmem:[#allocation13 + $0x168] sm:$0xff]
    %v2276 = vld [vmem:[#allocation13 + $0x170] sm:$0xff]
    %v2277 = vld [vmem:[#allocation13 + $0x178] sm:$0xff]
    %v2278 = vld [vmem:[#allocation13 + $0x180] sm:$0xff]
    %v2279 = vld [vmem:[#allocation13 + $0x188] sm:$0xff]
    %v2280 = vld [vmem:[#allocation13 + $0x190] sm:$0xff]
    %v2281 = vld [vmem:[#allocation13 + $0x198] sm:$0xff]
    %v2282 = vld [vmem:[#allocation13 + $0x1a0] sm:$0xff]
    %v2283 = vld [vmem:[#allocation13 + $0x1a8] sm:$0xff]
    %v2284 = vld [vmem:[#allocation13 + $0x1b0] sm:$0xff]
    %v2285 = vld [vmem:[#allocation13 + $0x1b8] sm:$0xff]
    %v2286 = vld [vmem:[#allocation13 + $0x1c0] sm:$0xff]
    %v2287 = vld [vmem:[#allocation13 + $0x1c8] sm:$0xff]
    %v2288 = vld [vmem:[#allocation13 + $0x1d0] sm:$0xff]
    %v2289 = vld [vmem:[#allocation13 + $0x1d8] sm:$0xff]
    %v2290 = vld [vmem:[#allocation13 + $0x1e0] sm:$0xff]
    %v2291 = vld [vmem:[#allocation13 + $0x1e8] sm:$0xff]
    %v2292 = vld [vmem:[#allocation13 + $0x1f0] sm:$0xff]
    %v2293 = vld [vmem:[#allocation13 + $0x1f8] sm:$0xff]
    %v2294 = vld [vmem:[#allocation13 + $0x200] sm:$0xff]
    %v2295 = vld [vmem:[#allocation13 + $0x208] sm:$0xff]
    %v2296 = vld [vmem:[#allocation13 + $0x210] sm:$0xff]
    %v2297 = vld [vmem:[#allocation13 + $0x218] sm:$0xff]
    %v2298 = vld [vmem:[#allocation13 + $0x220] sm:$0xff]
    %v2299 = vld [vmem:[#allocation13 + $0x228] sm:$0xff]
    %v2300 = vld [vmem:[#allocation13 + $0x230] sm:$0xff]
    %v2301 = vld [vmem:[#allocation13 + $0x238] sm:$0xff]
    %v2302 = vld [vmem:[#allocation13 + $0x240] sm:$0xff]
    %v2303 = vld [vmem:[#allocation13 + $0x248] sm:$0xff]
    %v2304 = vld [vmem:[#allocation13 + $0x250] sm:$0xff]
    %v2305 = vld [vmem:[#allocation13 + $0x258] sm:$0xff]
    %v2306 = vld [vmem:[#allocation13 + $0x260] sm:$0xff]
    %v2307 = vld [vmem:[#allocation13 + $0x268] sm:$0xff]
    %v2308 = vld [vmem:[#allocation13 + $0x270] sm:$0xff]
    %v2309 = vld [vmem:[#allocation13 + $0x278] sm:$0xff]
    %v2310 = vld [vmem:[#allocation13 + $0x280] sm:$0xff]
    %v2311 = vld [vmem:[#allocation13 + $0x288] sm:$0xff]
    %v2312 = vld [vmem:[#allocation13 + $0x290] sm:$0xff]
    %v2313 = vld [vmem:[#allocation13 + $0x298] sm:$0xff]
    %v2314 = vld [vmem:[#allocation13 + $0x2a0] sm:$0xff]
    %v2315 = vld [vmem:[#allocation13 + $0x2a8] sm:$0xff]
    %v2316 = vld [vmem:[#allocation13 + $0x2b0] sm:$0xff]
    %v2317 = vld [vmem:[#allocation13 + $0x2b8] sm:$0xff]
    %v2318 = vld [vmem:[#allocation13 + $0x2c0] sm:$0xff]
    %v2319 = vld [vmem:[#allocation13 + $0x2c8] sm:$0xff]
    %v2320 = vld [vmem:[#allocation13 + $0x2d0] sm:$0xff]
    %v2321 = vld [vmem:[#allocation13 + $0x2d8] sm:$0xff]
    %v2322 = vld [vmem:[#allocation13 + $0x2e0] sm:$0xff]
    %v2323 = vld [vmem:[#allocation13 + $0x2e8] sm:$0xff]
    %v2324 = vld [vmem:[#allocation13 + $0x2f0] sm:$0xff]
    %v2325 = vld [vmem:[#allocation13 + $0x2f8] sm:$0xff]
    %v2326 = vld [vmem:[#allocation13 + $0x300] sm:$0xff]
    %v2327 = vld [vmem:[#allocation13 + $0x308] sm:$0xff]
    %v2328 = vld [vmem:[#allocation13 + $0x310] sm:$0xff]
    %v2329 = vld [vmem:[#allocation13 + $0x318] sm:$0xff]
    %v2330 = vld [vmem:[#allocation13 + $0x320] sm:$0xff]
    %v2331 = vld [vmem:[#allocation13 + $0x328] sm:$0xff]
    %v2332 = vld [vmem:[#allocation13 + $0x330] sm:$0xff]
    %v2333 = vld [vmem:[#allocation13 + $0x338] sm:$0xff]
    %v2334 = vld [vmem:[#allocation13 + $0x340] sm:$0xff]
    %v2335 = vld [vmem:[#allocation13 + $0x348] sm:$0xff]
    %v2336 = vld [vmem:[#allocation13 + $0x350] sm:$0xff]
    %v2337 = vld [vmem:[#allocation13 + $0x358] sm:$0xff]
    %v2338 = vld [vmem:[#allocation13 + $0x360] sm:$0xff]
    %v2339 = vld [vmem:[#allocation13 + $0x368] sm:$0xff]
    %v2340 = vld [vmem:[#allocation13 + $0x370] sm:$0xff]
    %v2341 = vld [vmem:[#allocation13 + $0x378] sm:$0xff]
    %v2342 = vld [vmem:[#allocation13 + $0x380] sm:$0xff]
    %v2343 = vld [vmem:[#allocation13 + $0x388] sm:$0xff]
    %v2344 = vld [vmem:[#allocation13 + $0x390] sm:$0xff]
    %v2345 = vld [vmem:[#allocation13 + $0x398] sm:$0xff]
    %v2346 = vld [vmem:[#allocation13 + $0x3a0] sm:$0xff]
    %v2347 = vld [vmem:[#allocation13 + $0x3a8] sm:$0xff]
    %v2348 = vld [vmem:[#allocation13 + $0x3b0] sm:$0xff]
    %v2349 = vld [vmem:[#allocation13 + $0x3b8] sm:$0xff]
    %v2350 = vld [vmem:[#allocation13 + $0x3c0] sm:$0xff]
    %v2351 = vld [vmem:[#allocation13 + $0x3c8] sm:$0xff]
    %v2352 = vld [vmem:[#allocation13 + $0x3d0] sm:$0xff]
    %v2353 = vld [vmem:[#allocation13 + $0x3d8] sm:$0xff]
    %v2354 = vld [vmem:[#allocation13 + $0x3e0] sm:$0xff]
    %v2355 = vld [vmem:[#allocation13 + $0x3e8] sm:$0xff]
    %v2356 = vld [vmem:[#allocation13 + $0x3f0] sm:$0xff]
    %v2357 = vld [vmem:[#allocation13 + $0x3f8] sm:$0xff]
    %2358 = vmatpush.msra.mxu0 %v2260
    %2359 = vmatpush.msra.mxu0 %v2258
    %2360 = vmatpush.msra.mxu0 %v2256
    %2361 = vmatpush.msra.mxu0 %v2254
    %2362 = vmatpush.msra.mxu0 %v2252
    %2363 = vmatpush.msra.mxu0 %v2250
    %2364 = vmatpush.msra.mxu0 %v2248
    %2365 = vmatpush.msra.mxu0 %v2246
    %2366 = vmatpush.msra.mxu0 %v2244
    %2367 = vmatpush.msra.mxu0 %v2242
    %2368 = vmatpush.msra.mxu0 %v2240
    %2369 = vmatpush.msra.mxu0 %v2238
    %2370 = vmatpush.msra.mxu0 %v2236
    %2371 = vmatpush.msra.mxu0 %v2234
    %2372 = vmatpush.msra.mxu0 %v2232
    %2373 = vmatpush.msra.mxu0 %v2230
    %2374 = vmatmul.f32.gmra.mxu0 %v2222
    %v2375 = vpop.f32.mrf.mxu0
    %v2376 = vadd.f32 %v1562, %v2375
    %2377 = vmatmul.f32.gmra.mxu0 %v2226
    %v2378 = vpop.f32.mrf.mxu0
    %v2379 = vadd.f32 %v1564, %v2378
    %2380 = vdwg.mxu0
    %2381 = vmatpush.msra.mxu0 %v2292
    %2382 = vmatpush.msra.mxu0 %v2290
    %2383 = vmatpush.msra.mxu0 %v2288
    %2384 = vmatpush.msra.mxu0 %v2286
    %2385 = vmatpush.msra.mxu0 %v2284
    %2386 = vmatpush.msra.mxu0 %v2282
    %2387 = vmatpush.msra.mxu0 %v2280
    %2388 = vmatpush.msra.mxu0 %v2278
    %2389 = vmatpush.msra.mxu0 %v2276
    %2390 = vmatpush.msra.mxu0 %v2274
    %2391 = vmatpush.msra.mxu0 %v2272
    %2392 = vmatpush.msra.mxu0 %v2270
    %2393 = vmatpush.msra.mxu0 %v2268
    %2394 = vmatpush.msra.mxu0 %v2266
    %2395 = vmatpush.msra.mxu0 %v2264
    %2396 = vmatpush.msra.mxu0 %v2262
    %2397 = vmatmul.f32.gmra.mxu0 %v2223
    %v2398 = vpop.f32.mrf.mxu0
    %v2399 = vadd.f32 %v2376, %v2398
    %2400 = vmatmul.f32.gmra.mxu0 %v2227
    %v2401 = vpop.f32.mrf.mxu0
    %v2402 = vadd.f32 %v2379, %v2401
    %2403 = vdwg.mxu0
    %2404 = vmatpush.msra.mxu0 %v2324
    %2405 = vmatpush.msra.mxu0 %v2322
    %2406 = vmatpush.msra.mxu0 %v2320
    %2407 = vmatpush.msra.mxu0 %v2318
    %2408 = vmatpush.msra.mxu0 %v2316
    %2409 = vmatpush.msra.mxu0 %v2314
    %2410 = vmatpush.msra.mxu0 %v2312
    %2411 = vmatpush.msra.mxu0 %v2310
    %2412 = vmatpush.msra.mxu0 %v2308
    %2413 = vmatpush.msra.mxu0 %v2306
    %2414 = vmatpush.msra.mxu0 %v2304
    %2415 = vmatpush.msra.mxu0 %v2302
    %2416 = vmatpush.msra.mxu0 %v2300
    %2417 = vmatpush.msra.mxu0 %v2298
    %2418 = vmatpush.msra.mxu0 %v2296
    %2419 = vmatpush.msra.mxu0 %v2294
    %2420 = vmatmul.f32.gmra.mxu0 %v2224
    %v2421 = vpop.f32.mrf.mxu0
    %v2422 = vadd.f32 %v2399, %v2421
    %2423 = vmatmul.f32.gmra.mxu0 %v2228
    %v2424 = vpop.f32.mrf.mxu0
    %v2425 = vadd.f32 %v2402, %v2424
    %2426 = vdwg.mxu0
    %2427 = vmatpush.msra.mxu0 %v2356
    %2428 = vmatpush.msra.mxu0 %v2354
    %2429 = vmatpush.msra.mxu0 %v2352
    %2430 = vmatpush.msra.mxu0 %v2350
    %2431 = vmatpush.msra.mxu0 %v2348
    %2432 = vmatpush.msra.mxu0 %v2346
    %2433 = vmatpush.msra.mxu0 %v2344
    %2434 = vmatpush.msra.mxu0 %v2342
    %2435 = vmatpush.msra.mxu0 %v2340
    %2436 = vmatpush.msra.mxu0 %v2338
    %2437 = vmatpush.msra.mxu0 %v2336
    %2438 = vmatpush.msra.mxu0 %v2334
    %2439 = vmatpush.msra.mxu0 %v2332
    %2440 = vmatpush.msra.mxu0 %v2330
    %2441 = vmatpush.msra.mxu0 %v2328
    %2442 = vmatpush.msra.mxu0 %v2326
    %2443 = vmatmul.f32.gmra.mxu0 %v2225
    %v2444 = vpop.f32.mrf.mxu0
    %v2445 = vadd.f32 %v2422, %v2444
    %2446 = vmatmul.f32.gmra.mxu0 %v2229
    %v2447 = vpop.f32.mrf.mxu0
    %v2448 = vadd.f32 %v2425, %v2447
    %2449 = vdwg.mxu0
    %2450 = vmatpush.msra.mxu0 %v2261
    %2451 = vmatpush.msra.mxu0 %v2259
    %2452 = vmatpush.msra.mxu0 %v2257
    %2453 = vmatpush.msra.mxu0 %v2255
    %2454 = vmatpush.msra.mxu0 %v2253
    %2455 = vmatpush.msra.mxu0 %v2251
    %2456 = vmatpush.msra.mxu0 %v2249
    %2457 = vmatpush.msra.mxu0 %v2247
    %2458 = vmatpush.msra.mxu0 %v2245
    %2459 = vmatpush.msra.mxu0 %v2243
    %2460 = vmatpush.msra.mxu0 %v2241
    %2461 = vmatpush.msra.mxu0 %v2239
    %2462 = vmatpush.msra.mxu0 %v2237
    %2463 = vmatpush.msra.mxu0 %v2235
    %2464 = vmatpush.msra.mxu0 %v2233
    %2465 = vmatpush.msra.mxu0 %v2231
    %2466 = vmatmul.f32.gmra.mxu0 %v2222
    %v2467 = vpop.f32.mrf.mxu0
    %v2468 = vadd.f32 %v1563, %v2467
    %2469 = vmatmul.f32.gmra.mxu0 %v2226
    %v2470 = vpop.f32.mrf.mxu0
    %v2471 = vadd.f32 %v1565, %v2470
    %2472 = vdwg.mxu0
    %2473 = vmatpush.msra.mxu0 %v2293
    %2474 = vmatpush.msra.mxu0 %v2291
    %2475 = vmatpush.msra.mxu0 %v2289
    %2476 = vmatpush.msra.mxu0 %v2287
    %2477 = vmatpush.msra.mxu0 %v2285
    %2478 = vmatpush.msra.mxu0 %v2283
    %2479 = vmatpush.msra.mxu0 %v2281
    %2480 = vmatpush.msra.mxu0 %v2279
    %2481 = vmatpush.msra.mxu0 %v2277
    %2482 = vmatpush.msra.mxu0 %v2275
    %2483 = vmatpush.msra.mxu0 %v2273
    %2484 = vmatpush.msra.mxu0 %v2271
    %2485 = vmatpush.msra.mxu0 %v2269
    %2486 = vmatpush.msra.mxu0 %v2267
    %2487 = vmatpush.msra.mxu0 %v2265
    %2488 = vmatpush.msra.mxu0 %v2263
    %2489 = vmatmul.f32.gmra.mxu0 %v2223
    %v2490 = vpop.f32.mrf.mxu0
    %v2491 = vadd.f32 %v2468, %v2490
    %2492 = vmatmul.f32.gmra.mxu0 %v2227
    %v2493 = vpop.f32.mrf.mxu0
    %v2494 = vadd.f32 %v2471, %v2493
    %2495 = vdwg.mxu0
    %2496 = vmatpush.msra.mxu0 %v2325
    %2497 = vmatpush.msra.mxu0 %v2323
    %2498 = vmatpush.msra.mxu0 %v2321
    %2499 = vmatpush.msra.mxu0 %v2319
    %2500 = vmatpush.msra.mxu0 %v2317
    %2501 = vmatpush.msra.mxu0 %v2315
    %2502 = vmatpush.msra.mxu0 %v2313
    %2503 = vmatpush.msra.mxu0 %v2311
    %2504 = vmatpush.msra.mxu0 %v2309
    %2505 = vmatpush.msra.mxu0 %v2307
    %2506 = vmatpush.msra.mxu0 %v2305
    %2507 = vmatpush.msra.mxu0 %v2303
    %2508 = vmatpush.msra.mxu0 %v2301
    %2509 = vmatpush.msra.mxu0 %v2299
    %2510 = vmatpush.msra.mxu0 %v2297
    %2511 = vmatpush.msra.mxu0 %v2295
    %2512 = vmatmul.f32.gmra.mxu0 %v2224
    %v2513 = vpop.f32.mrf.mxu0
    %v2514 = vadd.f32 %v2491, %v2513
    %2515 = vmatmul.f32.gmra.mxu0 %v2228
    %v2516 = vpop.f32.mrf.mxu0
    %v2517 = vadd.f32 %v2494, %v2516
    %2518 = vdwg.mxu0
    %2519 = vmatpush.msra.mxu0 %v2357
    %2520 = vmatpush.msra.mxu0 %v2355
    %2521 = vmatpush.msra.mxu0 %v2353
    %2522 = vmatpush.msra.mxu0 %v2351
    %2523 = vmatpush.msra.mxu0 %v2349
    %2524 = vmatpush.msra.mxu0 %v2347
    %2525 = vmatpush.msra.mxu0 %v2345
    %2526 = vmatpush.msra.mxu0 %v2343
    %2527 = vmatpush.msra.mxu0 %v2341
    %2528 = vmatpush.msra.mxu0 %v2339
    %2529 = vmatpush.msra.mxu0 %v2337
    %2530 = vmatpush.msra.mxu0 %v2335
    %2531 = vmatpush.msra.mxu0 %v2333
    %2532 = vmatpush.msra.mxu0 %v2331
    %2533 = vmatpush.msra.mxu0 %v2329
    %2534 = vmatpush.msra.mxu0 %v2327
    %2535 = vmatmul.f32.gmra.mxu0 %v2225
    %v2536 = vpop.f32.mrf.mxu0
    %v2537 = vadd.f32 %v2514, %v2536
    %2538 = vmatmul.f32.gmra.mxu0 %v2229
    %v2539 = vpop.f32.mrf.mxu0
    %v2540 = vadd.f32 %v2517, %v2539
    %2541 = vdwg.mxu0
    %v2542 = vld [vmem:[%s9] sm:$0x3]
    %v2543 = vld [vmem:[%s10] sm:$0x3]
    %v2544 = vadd.f32 %v2445, %v2537
    %2545 = vadd.xlane.f32.xlu0 %v2544
    %v2546 = vpop.xlane.xlu0 %2545
    %v2547 = vadd.f32 %v2448, %v2540
    %2548 = vadd.xlane.f32.xlu0 %v2547
    %v2549 = vpop.xlane.xlu0 %2548
    %v2550 = vmul.f32 %v2546, %v1503
    %v2551 = vmul.f32 %v2549, %v1503
    %v2552 = vsub.f32 %v2445, %v2550
    %v2553 = vsub.f32 %v2537, %v2550
    %v2554 = vsub.f32 %v2448, %v2551
    %v2555 = vsub.f32 %v2540, %v2551
    %v2556 = vmul.f32 %v2552, %v2552
    %v2557 = vmul.f32 %v2553, %v2553
    %v2558 = vmul.f32 %v2554, %v2554
    %v2559 = vmul.f32 %v2555, %v2555
    %v2560 = vadd.f32 %v2556, %v2557
    %2561 = vadd.xlane.f32.xlu0 %v2560
    %v2562 = vpop.xlane.xlu0 %2561
    %v2563 = vadd.f32 %v2558, %v2559
    %2564 = vadd.xlane.f32.xlu0 %v2563
    %v2565 = vpop.xlane.xlu0 %2564
    %v2566 = vmul.f32 %v2562, %v1503
    %v2567 = vmul.f32 %v2565, %v1503
    %v2568 = vadd.f32 %v2566, 1e-05
    %v2569 = vadd.f32 %v2567, 1e-05
    %v2570 = vrsqrt.pop %v2568
    %v2571 = vmul.f32 %v2570, %v2568
    %v2572 = vmul.f32 %v2571, %v2570
    %v2573 = vmul.f32 0.5, %v2572
    %v2574 = vsub.f32 1.5, %v2573
    %v2575 = vmul.f32 %v2570, %v2574
    %vm2576 = vweird.f32 %v2568
    %vm2577 = vweird.f32 %v2570
    %vm2578 = vmor %vm2576, %vm2577
    %v2579 = vsel %vm2578, %v2570, %v2575
    %v2580 = vrsqrt.pop %v2569
    %v2581 = vmul.f32 %v2580, %v2569
    %v2582 = vmul.f32 %v2581, %v2580
    %v2583 = vmul.f32 0.5, %v2582
    %v2584 = vsub.f32 1.5, %v2583
    %v2585 = vmul.f32 %v2580, %v2584
    %vm2586 = vweird.f32 %v2569
    %vm2587 = vweird.f32 %v2580
    %vm2588 = vmor %vm2586, %vm2587
    %v2589 = vsel %vm2588, %v2580, %v2585
    %v2590 = vmul.f32 %v2552, %v2579
    %v2591 = vmul.f32 %v2553, %v2579
    %v2592 = vmul.f32 %v2554, %v2589
    %v2593 = vmul.f32 %v2555, %v2589
    %v2595 = vperm.slane %v2542, 0
    %v2596 = vperm.slane %v2542, 1
    %v2599 = vmul.f32 %v2590, %v2595
    %v2600 = vmul.f32 %v2591, %v2596
    %v2601 = vmul.f32 %v2592, %v2595
    %v2602 = vmul.f32 %v2593, %v2596
    %v2604 = vperm.slane %v2543, 0
    %v2605 = vperm.slane %v2543, 1
    %v2608 = vadd.f32 %v2599, %v2604
    %v2609 = vadd.f32 %v2600, %v2605
    %v2610 = vadd.f32 %v2601, %v2604
    %v2611 = vadd.f32 %v2602, %v2605
    %v2612 = vld [vmem:[#allocation14] sm:$0xff]
    %v2613 = vld [vmem:[#allocation14 + $0x8] sm:$0xff]
    %v2614 = vld [vmem:[#allocation14 + $0x10] sm:$0xff]
    %v2615 = vld [vmem:[#allocation14 + $0x18] sm:$0xff]
    %v2616 = vld [vmem:[#allocation14 + $0x20] sm:$0xff]
    %v2617 = vld [vmem:[#allocation14 + $0x28] sm:$0xff]
    %v2618 = vld [vmem:[#allocation14 + $0x30] sm:$0xff]
    %v2619 = vld [vmem:[#allocation14 + $0x38] sm:$0xff]
    %v2620 = vld [vmem:[#allocation14 + $0x40] sm:$0xff]
    %v2621 = vld [vmem:[#allocation14 + $0x48] sm:$0xff]
    %v2622 = vld [vmem:[#allocation14 + $0x50] sm:$0xff]
    %v2623 = vld [vmem:[#allocation14 + $0x58] sm:$0xff]
    %v2624 = vld [vmem:[#allocation14 + $0x60] sm:$0xff]
    %v2625 = vld [vmem:[#allocation14 + $0x68] sm:$0xff]
    %v2626 = vld [vmem:[#allocation14 + $0x70] sm:$0xff]
    %v2627 = vld [vmem:[#allocation14 + $0x78] sm:$0xff]
    %v2628 = vld [vmem:[#allocation14 + $0x80] sm:$0xff]
    %v2629 = vld [vmem:[#allocation14 + $0x88] sm:$0xff]
    %v2630 = vld [vmem:[#allocation14 + $0x90] sm:$0xff]
    %v2631 = vld [vmem:[#allocation14 + $0x98] sm:$0xff]
    %v2632 = vld [vmem:[#allocation14 + $0xa0] sm:$0xff]
    %v2633 = vld [vmem:[#allocation14 + $0xa8] sm:$0xff]
    %v2634 = vld [vmem:[#allocation14 + $0xb0] sm:$0xff]
    %v2635 = vld [vmem:[#allocation14 + $0xb8] sm:$0xff]
    %v2636 = vld [vmem:[#allocation14 + $0xc0] sm:$0xff]
    %v2637 = vld [vmem:[#allocation14 + $0xc8] sm:$0xff]
    %v2638 = vld [vmem:[#allocation14 + $0xd0] sm:$0xff]
    %v2639 = vld [vmem:[#allocation14 + $0xd8] sm:$0xff]
    %v2640 = vld [vmem:[#allocation14 + $0xe0] sm:$0xff]
    %v2641 = vld [vmem:[#allocation14 + $0xe8] sm:$0xff]
    %v2642 = vld [vmem:[#allocation14 + $0xf0] sm:$0xff]
    %v2643 = vld [vmem:[#allocation14 + $0xf8] sm:$0xff]
    %v2644 = vld [vmem:[%s12] sm:$0x3]
    %v2646 = vperm.slane %v2644, 0
    %v2647 = vperm.slane %v2644, 1
    %2650 = vmatpush.msra.mxu0 %v2642
    %2651 = vmatpush.msra.mxu0 %v2640
    %2652 = vmatpush.msra.mxu0 %v2638
    %2653 = vmatpush.msra.mxu0 %v2636
    %2654 = vmatpush.msra.mxu0 %v2634
    %2655 = vmatpush.msra.mxu0 %v2632
    %2656 = vmatpush.msra.mxu0 %v2630
    %2657 = vmatpush.msra.mxu0 %v2628
    %2658 = vmatpush.msra.mxu0 %v2626
    %2659 = vmatpush.msra.mxu0 %v2624
    %2660 = vmatpush.msra.mxu0 %v2622
    %2661 = vmatpush.msra.mxu0 %v2620
    %2662 = vmatpush.msra.mxu0 %v2618
    %2663 = vmatpush.msra.mxu0 %v2616
    %2664 = vmatpush.msra.mxu0 %v2614
    %2665 = vmatpush.msra.mxu0 %v2612
    %2666 = vmatmul.f32.gmra.mxu0 %v251
    %v2667 = vpop.f32.mrf.mxu0
    %v2668 = vadd.f32 %v2646, %v2667
    %2669 = vmatmul.f32.gmra.mxu0 %v252
    %v2670 = vpop.f32.mrf.mxu0
    %v2671 = vadd.f32 %v2646, %v2670
    %2672 = vdwg.mxu0
    %2673 = vmatpush.msra.mxu0 %v2643
    %2674 = vmatpush.msra.mxu0 %v2641
    %2675 = vmatpush.msra.mxu0 %v2639
    %2676 = vmatpush.msra.mxu0 %v2637
    %2677 = vmatpush.msra.mxu0 %v2635
    %2678 = vmatpush.msra.mxu0 %v2633
    %2679 = vmatpush.msra.mxu0 %v2631
    %2680 = vmatpush.msra.mxu0 %v2629
    %2681 = vmatpush.msra.mxu0 %v2627
    %2682 = vmatpush.msra.mxu0 %v2625
    %2683 = vmatpush.msra.mxu0 %v2623
    %2684 = vmatpush.msra.mxu0 %v2621
    %2685 = vmatpush.msra.mxu0 %v2619
    %2686 = vmatpush.msra.mxu0 %v2617
    %2687 = vmatpush.msra.mxu0 %v2615
    %2688 = vmatpush.msra.mxu0 %v2613
    %2689 = vmatmul.f32.gmra.mxu0 %v251
    %v2690 = vpop.f32.mrf.mxu0
    %v2691 = vadd.f32 %v2647, %v2690
    %2692 = vmatmul.f32.gmra.mxu0 %v252
    %v2693 = vpop.f32.mrf.mxu0
    %v2694 = vadd.f32 %v2647, %v2693
    %2695 = vdwg.mxu0
    %v2696 = vmul.f32 %v2668, 0.5
    %v2697 = vmul.f32 %v2691, 0.5
    %v2698 = vmul.f32 %v2671, 0.5
    %v2699 = vmul.f32 %v2694, 0.5
    %v2700 = vmul.f32 %v2668, 0.70710677
    %v2701 = vmul.f32 %v2691, 0.70710677
    %v2702 = vmul.f32 %v2671, 0.70710677
    %v2703 = vmul.f32 %v2694, 0.70710677
    %v2704 = vmul.f32 %v2700, %v2700
    %v2705 = vmin.f32 16.0, %v2704
    %v2706 = vmul.f32 %v2705, 2.1237322e-06
    %v2707 = vadd.f32 %v2706, 0.00028619796
    %v2708 = vmul.f32 %v2705, %v2707
    %v2709 = vadd.f32 %v2708, 0.0036580483
    %v2710 = vmul.f32 %v2705, %v2709
    %v2711 = vadd.f32 %v2710, 0.05243302
    %v2712 = vmul.f32 %v2705, %v2711
    %v2713 = vadd.f32 %v2712, 0.18741608
    %v2714 = vmul.f32 %v2705, %v2713
    %v2715 = vadd.f32 %v2714, 1.1283791
    %v2716 = vmul.f32 %v2700, %v2715
    %v2717 = vmul.f32 %v2705, 3.8918573e-05
    %v2718 = vadd.f32 %v2717, 0.001143296
    %v2719 = vmul.f32 %v2705, %v2718
    %v2720 = vadd.f32 %v2719, 0.014752088
    %v2721 = vmul.f32 %v2705, %v2720
    %v2722 = vadd.f32 %v2721, 0.112945676
    %v2723 = vmul.f32 %v2705, %v2722
    %v2724 = vadd.f32 %v2723, 0.4994258
    %v2725 = vmul.f32 %v2705, %v2724
    %v2726 = vadd.f32 %v2725, 1.0
    %v2727 = vrcp.pop %v2726
    %v2728 = vmul.f32 %v2726, %v2727
    %v2729 = vsub.f32 1.0, %v2728
    %v2730 = vmul.f32 %v2727, %v2729
    %v2731 = vadd.f32 %v2727, %v2730
    %vm2732 = vweird.f32 %v2726
    %vm2733 = vweird.f32 %v2727
    %vm2734 = vmor %vm2732, %vm2733
    %v2735 = vsel %vm2734, %v2727, %v2731
    %v2736 = vand.u32 2147483647, %v2726
    %vm2737 = vcmp.eq.f32.partialorder %v2736, 8.507059e+37
    %v2738 = vand.u32 %v2726, 2147483648
    %v2739 = vor.u32 1.1754944e-38, %v2738
    %v2740 = vsel %vm2737, %v2739, %v2735
    %v2741 = vmul.f32 %v2716, %v2740
    %v2742 = vmin.f32 %v2741, 1.0
    %v2743 = vmax.f32 %v2742, -1.0
    %v2744 = vmul.f32 %v2701, %v2701
    %v2745 = vmin.f32 16.0, %v2744
    %v2746 = vmul.f32 %v2745, 2.1237322e-06
    %v2747 = vadd.f32 %v2746, 0.00028619796
    %v2748 = vmul.f32 %v2745, %v2747
    %v2749 = vadd.f32 %v2748, 0.0036580483
    %v2750 = vmul.f32 %v2745, %v2749
    %v2751 = vadd.f32 %v2750, 0.05243302
    %v2752 = vmul.f32 %v2745, %v2751
    %v2753 = vadd.f32 %v2752, 0.18741608
    %v2754 = vmul.f32 %v2745, %v2753
    %v2755 = vadd.f32 %v2754, 1.1283791
    %v2756 = vmul.f32 %v2701, %v2755
    %v2757 = vmul.f32 %v2745, 3.8918573e-05
    %v2758 = vadd.f32 %v2757, 0.001143296
    %v2759 = vmul.f32 %v2745, %v2758
    %v2760 = vadd.f32 %v2759, 0.014752088
    %v2761 = vmul.f32 %v2745, %v2760
    %v2762 = vadd.f32 %v2761, 0.112945676
    %v2763 = vmul.f32 %v2745, %v2762
    %v2764 = vadd.f32 %v2763, 0.4994258
    %v2765 = vmul.f32 %v2745, %v2764
    %v2766 = vadd.f32 %v2765, 1.0
    %v2767 = vrcp.pop %v2766
    %v2768 = vmul.f32 %v2766, %v2767
    %v2769 = vsub.f32 1.0, %v2768
    %v2770 = vmul.f32 %v2767, %v2769
    %v2771 = vadd.f32 %v2767, %v2770
    %vm2772 = vweird.f32 %v2766
    %vm2773 = vweird.f32 %v2767
    %vm2774 = vmor %vm2772, %vm2773
    %v2775 = vsel %vm2774, %v2767, %v2771
    %v2776 = vand.u32 2147483647, %v2766
    %vm2777 = vcmp.eq.f32.partialorder %v2776, 8.507059e+37
    %v2778 = vand.u32 %v2766, 2147483648
    %v2779 = vor.u32 1.1754944e-38, %v2778
    %v2780 = vsel %vm2777, %v2779, %v2775
    %v2781 = vmul.f32 %v2756, %v2780
    %v2782 = vmin.f32 %v2781, 1.0
    %v2783 = vmax.f32 %v2782, -1.0
    %v2784 = vmul.f32 %v2702, %v2702
    %v2785 = vmin.f32 16.0, %v2784
    %v2786 = vmul.f32 %v2785, 2.1237322e-06
    %v2787 = vadd.f32 %v2786, 0.00028619796
    %v2788 = vmul.f32 %v2785, %v2787
    %v2789 = vadd.f32 %v2788, 0.0036580483
    %v2790 = vmul.f32 %v2785, %v2789
    %v2791 = vadd.f32 %v2790, 0.05243302
    %v2792 = vmul.f32 %v2785, %v2791
    %v2793 = vadd.f32 %v2792, 0.18741608
    %v2794 = vmul.f32 %v2785, %v2793
    %v2795 = vadd.f32 %v2794, 1.1283791
    %v2796 = vmul.f32 %v2702, %v2795
    %v2797 = vmul.f32 %v2785, 3.8918573e-05
    %v2798 = vadd.f32 %v2797, 0.001143296
    %v2799 = vmul.f32 %v2785, %v2798
    %v2800 = vadd.f32 %v2799, 0.014752088
    %v2801 = vmul.f32 %v2785, %v2800
    %v2802 = vadd.f32 %v2801, 0.112945676
    %v2803 = vmul.f32 %v2785, %v2802
    %v2804 = vadd.f32 %v2803, 0.4994258
    %v2805 = vmul.f32 %v2785, %v2804
    %v2806 = vadd.f32 %v2805, 1.0
    %v2807 = vrcp.pop %v2806
    %v2808 = vmul.f32 %v2806, %v2807
    %v2809 = vsub.f32 1.0, %v2808
    %v2810 = vmul.f32 %v2807, %v2809
    %v2811 = vadd.f32 %v2807, %v2810
    %vm2812 = vweird.f32 %v2806
    %vm2813 = vweird.f32 %v2807
    %vm2814 = vmor %vm2812, %vm2813
    %v2815 = vsel %vm2814, %v2807, %v2811
    %v2816 = vand.u32 2147483647, %v2806
    %vm2817 = vcmp.eq.f32.partialorder %v2816, 8.507059e+37
    %v2818 = vand.u32 %v2806, 2147483648
    %v2819 = vor.u32 1.1754944e-38, %v2818
    %v2820 = vsel %vm2817, %v2819, %v2815
    %v2821 = vmul.f32 %v2796, %v2820
    %v2822 = vmin.f32 %v2821, 1.0
    %v2823 = vmax.f32 %v2822, -1.0
    %v2824 = vmul.f32 %v2703, %v2703
    %v2825 = vmin.f32 16.0, %v2824
    %v2826 = vmul.f32 %v2825, 2.1237322e-06
    %v2827 = vadd.f32 %v2826, 0.00028619796
    %v2828 = vmul.f32 %v2825, %v2827
    %v2829 = vadd.f32 %v2828, 0.0036580483
    %v2830 = vmul.f32 %v2825, %v2829
    %v2831 = vadd.f32 %v2830, 0.05243302
    %v2832 = vmul.f32 %v2825, %v2831
    %v2833 = vadd.f32 %v2832, 0.18741608
    %v2834 = vmul.f32 %v2825, %v2833
    %v2835 = vadd.f32 %v2834, 1.1283791
    %v2836 = vmul.f32 %v2703, %v2835
    %v2837 = vmul.f32 %v2825, 3.8918573e-05
    %v2838 = vadd.f32 %v2837, 0.001143296
    %v2839 = vmul.f32 %v2825, %v2838
    %v2840 = vadd.f32 %v2839, 0.014752088
    %v2841 = vmul.f32 %v2825, %v2840
    %v2842 = vadd.f32 %v2841, 0.112945676
    %v2843 = vmul.f32 %v2825, %v2842
    %v2844 = vadd.f32 %v2843, 0.4994258
    %v2845 = vmul.f32 %v2825, %v2844
    %v2846 = vadd.f32 %v2845, 1.0
    %v2847 = vrcp.pop %v2846
    %v2848 = vmul.f32 %v2846, %v2847
    %v2849 = vsub.f32 1.0, %v2848
    %v2850 = vmul.f32 %v2847, %v2849
    %v2851 = vadd.f32 %v2847, %v2850
    %vm2852 = vweird.f32 %v2846
    %vm2853 = vweird.f32 %v2847
    %vm2854 = vmor %vm2852, %vm2853
    %v2855 = vsel %vm2854, %v2847, %v2851
    %v2856 = vand.u32 2147483647, %v2846
    %vm2857 = vcmp.eq.f32.partialorder %v2856, 8.507059e+37
    %v2858 = vand.u32 %v2846, 2147483648
    %v2859 = vor.u32 1.1754944e-38, %v2858
    %v2860 = vsel %vm2857, %v2859, %v2855
    %v2861 = vmul.f32 %v2836, %v2860
    %v2862 = vmin.f32 %v2861, 1.0
    %v2863 = vmax.f32 %v2862, -1.0
    %v2864 = vadd.f32 %v2743, 1.0
    %v2865 = vadd.f32 %v2783, 1.0
    %v2866 = vadd.f32 %v2823, 1.0
    %v2867 = vadd.f32 %v2863, 1.0
    %v2868 = vmul.f32 %v2696, %v2864
    %v2869 = vmul.f32 %v2697, %v2865
    %v2870 = vmul.f32 %v2698, %v2866
    %v2871 = vmul.f32 %v2699, %v2867
    %v2872 = vld [vmem:[#allocation16] sm:$0xff]
    %v2873 = vld [vmem:[#allocation16 + $0x8] sm:$0xff]
    %v2874 = vld [vmem:[#allocation16 + $0x10] sm:$0xff]
    %v2875 = vld [vmem:[#allocation16 + $0x18] sm:$0xff]
    %v2876 = vld [vmem:[#allocation16 + $0x20] sm:$0xff]
    %v2877 = vld [vmem:[#allocation16 + $0x28] sm:$0xff]
    %v2878 = vld [vmem:[#allocation16 + $0x30] sm:$0xff]
    %v2879 = vld [vmem:[#allocation16 + $0x38] sm:$0xff]
    %v2880 = vld [vmem:[#allocation16 + $0x40] sm:$0xff]
    %v2881 = vld [vmem:[#allocation16 + $0x48] sm:$0xff]
    %v2882 = vld [vmem:[#allocation16 + $0x50] sm:$0xff]
    %v2883 = vld [vmem:[#allocation16 + $0x58] sm:$0xff]
    %v2884 = vld [vmem:[#allocation16 + $0x60] sm:$0xff]
    %v2885 = vld [vmem:[#allocation16 + $0x68] sm:$0xff]
    %v2886 = vld [vmem:[#allocation16 + $0x70] sm:$0xff]
    %v2887 = vld [vmem:[#allocation16 + $0x78] sm:$0xff]
    %v2888 = vld [vmem:[#allocation16 + $0x80] sm:$0xff]
    %v2889 = vld [vmem:[#allocation16 + $0x88] sm:$0xff]
    %v2890 = vld [vmem:[#allocation16 + $0x90] sm:$0xff]
    %v2891 = vld [vmem:[#allocation16 + $0x98] sm:$0xff]
    %v2892 = vld [vmem:[#allocation16 + $0xa0] sm:$0xff]
    %v2893 = vld [vmem:[#allocation16 + $0xa8] sm:$0xff]
    %v2894 = vld [vmem:[#allocation16 + $0xb0] sm:$0xff]
    %v2895 = vld [vmem:[#allocation16 + $0xb8] sm:$0xff]
    %v2896 = vld [vmem:[#allocation16 + $0xc0] sm:$0xff]
    %v2897 = vld [vmem:[#allocation16 + $0xc8] sm:$0xff]
    %v2898 = vld [vmem:[#allocation16 + $0xd0] sm:$0xff]
    %v2899 = vld [vmem:[#allocation16 + $0xd8] sm:$0xff]
    %v2900 = vld [vmem:[#allocation16 + $0xe0] sm:$0xff]
    %v2901 = vld [vmem:[#allocation16 + $0xe8] sm:$0xff]
    %v2902 = vld [vmem:[#allocation16 + $0xf0] sm:$0xff]
    %v2903 = vld [vmem:[#allocation16 + $0xf8] sm:$0xff]
    %v2904 = vld [vmem:[#allocation16 + $0x100] sm:$0xff]
    %v2905 = vld [vmem:[#allocation16 + $0x108] sm:$0xff]
    %v2906 = vld [vmem:[#allocation16 + $0x110] sm:$0xff]
    %v2907 = vld [vmem:[#allocation16 + $0x118] sm:$0xff]
    %v2908 = vld [vmem:[#allocation16 + $0x120] sm:$0xff]
    %v2909 = vld [vmem:[#allocation16 + $0x128] sm:$0xff]
    %v2910 = vld [vmem:[#allocation16 + $0x130] sm:$0xff]
    %v2911 = vld [vmem:[#allocation16 + $0x138] sm:$0xff]
    %v2912 = vld [vmem:[#allocation16 + $0x140] sm:$0xff]
    %v2913 = vld [vmem:[#allocation16 + $0x148] sm:$0xff]
    %v2914 = vld [vmem:[#allocation16 + $0x150] sm:$0xff]
    %v2915 = vld [vmem:[#allocation16 + $0x158] sm:$0xff]
    %v2916 = vld [vmem:[#allocation16 + $0x160] sm:$0xff]
    %v2917 = vld [vmem:[#allocation16 + $0x168] sm:$0xff]
    %v2918 = vld [vmem:[#allocation16 + $0x170] sm:$0xff]
    %v2919 = vld [vmem:[#allocation16 + $0x178] sm:$0xff]
    %v2920 = vld [vmem:[#allocation16 + $0x180] sm:$0xff]
    %v2921 = vld [vmem:[#allocation16 + $0x188] sm:$0xff]
    %v2922 = vld [vmem:[#allocation16 + $0x190] sm:$0xff]
    %v2923 = vld [vmem:[#allocation16 + $0x198] sm:$0xff]
    %v2924 = vld [vmem:[#allocation16 + $0x1a0] sm:$0xff]
    %v2925 = vld [vmem:[#allocation16 + $0x1a8] sm:$0xff]
    %v2926 = vld [vmem:[#allocation16 + $0x1b0] sm:$0xff]
    %v2927 = vld [vmem:[#allocation16 + $0x1b8] sm:$0xff]
    %v2928 = vld [vmem:[#allocation16 + $0x1c0] sm:$0xff]
    %v2929 = vld [vmem:[#allocation16 + $0x1c8] sm:$0xff]
    %v2930 = vld [vmem:[#allocation16 + $0x1d0] sm:$0xff]
    %v2931 = vld [vmem:[#allocation16 + $0x1d8] sm:$0xff]
    %v2932 = vld [vmem:[#allocation16 + $0x1e0] sm:$0xff]
    %v2933 = vld [vmem:[#allocation16 + $0x1e8] sm:$0xff]
    %v2934 = vld [vmem:[#allocation16 + $0x1f0] sm:$0xff]
    %v2935 = vld [vmem:[#allocation16 + $0x1f8] sm:$0xff]
    %v2936 = vld [vmem:[%s14] sm:$0x3]
    %v2938 = vperm.slane %v2936, 0
    %v2939 = vperm.slane %v2936, 1
    %2942 = vmatpush.msra.mxu0 %v2902
    %2943 = vmatpush.msra.mxu0 %v2900
    %2944 = vmatpush.msra.mxu0 %v2898
    %2945 = vmatpush.msra.mxu0 %v2896
    %2946 = vmatpush.msra.mxu0 %v2894
    %2947 = vmatpush.msra.mxu0 %v2892
    %2948 = vmatpush.msra.mxu0 %v2890
    %2949 = vmatpush.msra.mxu0 %v2888
    %2950 = vmatpush.msra.mxu0 %v2886
    %2951 = vmatpush.msra.mxu0 %v2884
    %2952 = vmatpush.msra.mxu0 %v2882
    %2953 = vmatpush.msra.mxu0 %v2880
    %2954 = vmatpush.msra.mxu0 %v2878
    %2955 = vmatpush.msra.mxu0 %v2876
    %2956 = vmatpush.msra.mxu0 %v2874
    %2957 = vmatpush.msra.mxu0 %v2872
    %2958 = vmatmul.f32.gmra.mxu0 %v2868
    %v2959 = vpop.f32.mrf.mxu0
    %v2960 = vadd.f32 %v2938, %v2959
    %2961 = vmatmul.f32.gmra.mxu0 %v2870
    %v2962 = vpop.f32.mrf.mxu0
    %v2963 = vadd.f32 %v2938, %v2962
    %2964 = vdwg.mxu0
    %2965 = vmatpush.msra.mxu0 %v2934
    %2966 = vmatpush.msra.mxu0 %v2932
    %2967 = vmatpush.msra.mxu0 %v2930
    %2968 = vmatpush.msra.mxu0 %v2928
    %2969 = vmatpush.msra.mxu0 %v2926
    %2970 = vmatpush.msra.mxu0 %v2924
    %2971 = vmatpush.msra.mxu0 %v2922
    %2972 = vmatpush.msra.mxu0 %v2920
    %2973 = vmatpush.msra.mxu0 %v2918
    %2974 = vmatpush.msra.mxu0 %v2916
    %2975 = vmatpush.msra.mxu0 %v2914
    %2976 = vmatpush.msra.mxu0 %v2912
    %2977 = vmatpush.msra.mxu0 %v2910
    %2978 = vmatpush.msra.mxu0 %v2908
    %2979 = vmatpush.msra.mxu0 %v2906
    %2980 = vmatpush.msra.mxu0 %v2904
    %2981 = vmatmul.f32.gmra.mxu0 %v2869
    %v2982 = vpop.f32.mrf.mxu0
    %v2983 = vadd.f32 %v2960, %v2982
    %2984 = vmatmul.f32.gmra.mxu0 %v2871
    %v2985 = vpop.f32.mrf.mxu0
    %v2986 = vadd.f32 %v2963, %v2985
    %2987 = vdwg.mxu0
    %2988 = vmatpush.msra.mxu0 %v2903
    %2989 = vmatpush.msra.mxu0 %v2901
    %2990 = vmatpush.msra.mxu0 %v2899
    %2991 = vmatpush.msra.mxu0 %v2897
    %2992 = vmatpush.msra.mxu0 %v2895
    %2993 = vmatpush.msra.mxu0 %v2893
    %2994 = vmatpush.msra.mxu0 %v2891
    %2995 = vmatpush.msra.mxu0 %v2889
    %2996 = vmatpush.msra.mxu0 %v2887
    %2997 = vmatpush.msra.mxu0 %v2885
    %2998 = vmatpush.msra.mxu0 %v2883
    %2999 = vmatpush.msra.mxu0 %v2881
    %3000 = vmatpush.msra.mxu0 %v2879
    %3001 = vmatpush.msra.mxu0 %v2877
    %3002 = vmatpush.msra.mxu0 %v2875
    %3003 = vmatpush.msra.mxu0 %v2873
    %3004 = vmatmul.f32.gmra.mxu0 %v2868
    %v3005 = vpop.f32.mrf.mxu0
    %v3006 = vadd.f32 %v2939, %v3005
    %3007 = vmatmul.f32.gmra.mxu0 %v2870
    %v3008 = vpop.f32.mrf.mxu0
    %v3009 = vadd.f32 %v2939, %v3008
    %3010 = vdwg.mxu0
    %3011 = vmatpush.msra.mxu0 %v2935
    %3012 = vmatpush.msra.mxu0 %v2933
    %3013 = vmatpush.msra.mxu0 %v2931
    %3014 = vmatpush.msra.mxu0 %v2929
    %3015 = vmatpush.msra.mxu0 %v2927
    %3016 = vmatpush.msra.mxu0 %v2925
    %3017 = vmatpush.msra.mxu0 %v2923
    %3018 = vmatpush.msra.mxu0 %v2921
    %3019 = vmatpush.msra.mxu0 %v2919
    %3020 = vmatpush.msra.mxu0 %v2917
    %3021 = vmatpush.msra.mxu0 %v2915
    %3022 = vmatpush.msra.mxu0 %v2913
    %3023 = vmatpush.msra.mxu0 %v2911
    %3024 = vmatpush.msra.mxu0 %v2909
    %3025 = vmatpush.msra.mxu0 %v2907
    %3026 = vmatpush.msra.mxu0 %v2905
    %3027 = vmatmul.f32.gmra.mxu0 %v2869
    %v3028 = vpop.f32.mrf.mxu0
    %v3029 = vadd.f32 %v3006, %v3028
    %3030 = vmatmul.f32.gmra.mxu0 %v2871
    %v3031 = vpop.f32.mrf.mxu0
    %v3032 = vadd.f32 %v3009, %v3031
    %3033 = vdwg.mxu0
    %v3034 = vmul.f32 %v2983, 0.5
    %v3035 = vmul.f32 %v3029, 0.5
    %v3036 = vmul.f32 %v2986, 0.5
    %v3037 = vmul.f32 %v3032, 0.5
    %v3038 = vmul.f32 %v2983, 0.70710677
    %v3039 = vmul.f32 %v3029, 0.70710677
    %v3040 = vmul.f32 %v2986, 0.70710677
    %v3041 = vmul.f32 %v3032, 0.70710677
    %v3042 = vmul.f32 %v3038, %v3038
    %v3043 = vmin.f32 16.0, %v3042
    %v3044 = vmul.f32 %v3043, 2.1237322e-06
    %v3045 = vadd.f32 %v3044, 0.00028619796
    %v3046 = vmul.f32 %v3043, %v3045
    %v3047 = vadd.f32 %v3046, 0.0036580483
    %v3048 = vmul.f32 %v3043, %v3047
    %v3049 = vadd.f32 %v3048, 0.05243302
    %v3050 = vmul.f32 %v3043, %v3049
    %v3051 = vadd.f32 %v3050, 0.18741608
    %v3052 = vmul.f32 %v3043, %v3051
    %v3053 = vadd.f32 %v3052, 1.1283791
    %v3054 = vmul.f32 %v3038, %v3053
    %v3055 = vmul.f32 %v3043, 3.8918573e-05
    %v3056 = vadd.f32 %v3055, 0.001143296
    %v3057 = vmul.f32 %v3043, %v3056
    %v3058 = vadd.f32 %v3057, 0.014752088
    %v3059 = vmul.f32 %v3043, %v3058
    %v3060 = vadd.f32 %v3059, 0.112945676
    %v3061 = vmul.f32 %v3043, %v3060
    %v3062 = vadd.f32 %v3061, 0.4994258
    %v3063 = vmul.f32 %v3043, %v3062
    %v3064 = vadd.f32 %v3063, 1.0
    %v3065 = vrcp.pop %v3064
    %v3066 = vmul.f32 %v3064, %v3065
    %v3067 = vsub.f32 1.0, %v3066
    %v3068 = vmul.f32 %v3065, %v3067
    %v3069 = vadd.f32 %v3065, %v3068
    %vm3070 = vweird.f32 %v3064
    %vm3071 = vweird.f32 %v3065
    %vm3072 = vmor %vm3070, %vm3071
    %v3073 = vsel %vm3072, %v3065, %v3069
    %v3074 = vand.u32 2147483647, %v3064
    %vm3075 = vcmp.eq.f32.partialorder %v3074, 8.507059e+37
    %v3076 = vand.u32 %v3064, 2147483648
    %v3077 = vor.u32 1.1754944e-38, %v3076
    %v3078 = vsel %vm3075, %v3077, %v3073
    %v3079 = vmul.f32 %v3054, %v3078
    %v3080 = vmin.f32 %v3079, 1.0
    %v3081 = vmax.f32 %v3080, -1.0
    %v3082 = vmul.f32 %v3039, %v3039
    %v3083 = vmin.f32 16.0, %v3082
    %v3084 = vmul.f32 %v3083, 2.1237322e-06
    %v3085 = vadd.f32 %v3084, 0.00028619796
    %v3086 = vmul.f32 %v3083, %v3085
    %v3087 = vadd.f32 %v3086, 0.0036580483
    %v3088 = vmul.f32 %v3083, %v3087
    %v3089 = vadd.f32 %v3088, 0.05243302
    %v3090 = vmul.f32 %v3083, %v3089
    %v3091 = vadd.f32 %v3090, 0.18741608
    %v3092 = vmul.f32 %v3083, %v3091
    %v3093 = vadd.f32 %v3092, 1.1283791
    %v3094 = vmul.f32 %v3039, %v3093
    %v3095 = vmul.f32 %v3083, 3.8918573e-05
    %v3096 = vadd.f32 %v3095, 0.001143296
    %v3097 = vmul.f32 %v3083, %v3096
    %v3098 = vadd.f32 %v3097, 0.014752088
    %v3099 = vmul.f32 %v3083, %v3098
    %v3100 = vadd.f32 %v3099, 0.112945676
    %v3101 = vmul.f32 %v3083, %v3100
    %v3102 = vadd.f32 %v3101, 0.4994258
    %v3103 = vmul.f32 %v3083, %v3102
    %v3104 = vadd.f32 %v3103, 1.0
    %v3105 = vrcp.pop %v3104
    %v3106 = vmul.f32 %v3104, %v3105
    %v3107 = vsub.f32 1.0, %v3106
    %v3108 = vmul.f32 %v3105, %v3107
    %v3109 = vadd.f32 %v3105, %v3108
    %vm3110 = vweird.f32 %v3104
    %vm3111 = vweird.f32 %v3105
    %vm3112 = vmor %vm3110, %vm3111
    %v3113 = vsel %vm3112, %v3105, %v3109
    %v3114 = vand.u32 2147483647, %v3104
    %vm3115 = vcmp.eq.f32.partialorder %v3114, 8.507059e+37
    %v3116 = vand.u32 %v3104, 2147483648
    %v3117 = vor.u32 1.1754944e-38, %v3116
    %v3118 = vsel %vm3115, %v3117, %v3113
    %v3119 = vmul.f32 %v3094, %v3118
    %v3120 = vmin.f32 %v3119, 1.0
    %v3121 = vmax.f32 %v3120, -1.0
    %v3122 = vmul.f32 %v3040, %v3040
    %v3123 = vmin.f32 16.0, %v3122
    %v3124 = vmul.f32 %v3123, 2.1237322e-06
    %v3125 = vadd.f32 %v3124, 0.00028619796
    %v3126 = vmul.f32 %v3123, %v3125
    %v3127 = vadd.f32 %v3126, 0.0036580483
    %v3128 = vmul.f32 %v3123, %v3127
    %v3129 = vadd.f32 %v3128, 0.05243302
    %v3130 = vmul.f32 %v3123, %v3129
    %v3131 = vadd.f32 %v3130, 0.18741608
    %v3132 = vmul.f32 %v3123, %v3131
    %v3133 = vadd.f32 %v3132, 1.1283791
    %v3134 = vmul.f32 %v3040, %v3133
    %v3135 = vmul.f32 %v3123, 3.8918573e-05
    %v3136 = vadd.f32 %v3135, 0.001143296
    %v3137 = vmul.f32 %v3123, %v3136
    %v3138 = vadd.f32 %v3137, 0.014752088
    %v3139 = vmul.f32 %v3123, %v3138
    %v3140 = vadd.f32 %v3139, 0.112945676
    %v3141 = vmul.f32 %v3123, %v3140
    %v3142 = vadd.f32 %v3141, 0.4994258
    %v3143 = vmul.f32 %v3123, %v3142
    %v3144 = vadd.f32 %v3143, 1.0
    %v3145 = vrcp.pop %v3144
    %v3146 = vmul.f32 %v3144, %v3145
    %v3147 = vsub.f32 1.0, %v3146
    %v3148 = vmul.f32 %v3145, %v3147
    %v3149 = vadd.f32 %v3145, %v3148
    %vm3150 = vweird.f32 %v3144
    %vm3151 = vweird.f32 %v3145
    %vm3152 = vmor %vm3150, %vm3151
    %v3153 = vsel %vm3152, %v3145, %v3149
    %v3154 = vand.u32 2147483647, %v3144
    %vm3155 = vcmp.eq.f32.partialorder %v3154, 8.507059e+37
    %v3156 = vand.u32 %v3144, 2147483648
    %v3157 = vor.u32 1.1754944e-38, %v3156
    %v3158 = vsel %vm3155, %v3157, %v3153
    %v3159 = vmul.f32 %v3134, %v3158
    %v3160 = vmin.f32 %v3159, 1.0
    %v3161 = vmax.f32 %v3160, -1.0
    %v3162 = vmul.f32 %v3041, %v3041
    %v3163 = vmin.f32 16.0, %v3162
    %v3164 = vmul.f32 %v3163, 2.1237322e-06
    %v3165 = vadd.f32 %v3164, 0.00028619796
    %v3166 = vmul.f32 %v3163, %v3165
    %v3167 = vadd.f32 %v3166, 0.0036580483
    %v3168 = vmul.f32 %v3163, %v3167
    %v3169 = vadd.f32 %v3168, 0.05243302
    %v3170 = vmul.f32 %v3163, %v3169
    %v3171 = vadd.f32 %v3170, 0.18741608
    %v3172 = vmul.f32 %v3163, %v3171
    %v3173 = vadd.f32 %v3172, 1.1283791
    %v3174 = vmul.f32 %v3041, %v3173
    %v3175 = vmul.f32 %v3163, 3.8918573e-05
    %v3176 = vadd.f32 %v3175, 0.001143296
    %v3177 = vmul.f32 %v3163, %v3176
    %v3178 = vadd.f32 %v3177, 0.014752088
    %v3179 = vmul.f32 %v3163, %v3178
    %v3180 = vadd.f32 %v3179, 0.112945676
    %v3181 = vmul.f32 %v3163, %v3180
    %v3182 = vadd.f32 %v3181, 0.4994258
    %v3183 = vmul.f32 %v3163, %v3182
    %v3184 = vadd.f32 %v3183, 1.0
    %v3185 = vrcp.pop %v3184
    %v3186 = vmul.f32 %v3184, %v3185
    %v3187 = vsub.f32 1.0, %v3186
    %v3188 = vmul.f32 %v3185, %v3187
    %v3189 = vadd.f32 %v3185, %v3188
    %vm3190 = vweird.f32 %v3184
    %vm3191 = vweird.f32 %v3185
    %vm3192 = vmor %vm3190, %vm3191
    %v3193 = vsel %vm3192, %v3185, %v3189
    %v3194 = vand.u32 2147483647, %v3184
    %vm3195 = vcmp.eq.f32.partialorder %v3194, 8.507059e+37
    %v3196 = vand.u32 %v3184, 2147483648
    %v3197 = vor.u32 1.1754944e-38, %v3196
    %v3198 = vsel %vm3195, %v3197, %v3193
    %v3199 = vmul.f32 %v3174, %v3198
    %v3200 = vmin.f32 %v3199, 1.0
    %v3201 = vmax.f32 %v3200, -1.0
    %v3202 = vadd.f32 %v3081, 1.0
    %v3203 = vadd.f32 %v3121, 1.0
    %v3204 = vadd.f32 %v3161, 1.0
    %v3205 = vadd.f32 %v3201, 1.0
    %v3206 = vmul.f32 %v3034, %v3202
    %v3207 = vmul.f32 %v3035, %v3203
    %v3208 = vmul.f32 %v3036, %v3204
    %v3209 = vmul.f32 %v3037, %v3205
    %v3210 = vld [vmem:[#allocation17] sm:$0xff]
    %v3211 = vld [vmem:[#allocation17 + $0x8] sm:$0xff]
    %v3212 = vld [vmem:[#allocation17 + $0x10] sm:$0xff]
    %v3213 = vld [vmem:[#allocation17 + $0x18] sm:$0xff]
    %v3214 = vld [vmem:[#allocation17 + $0x20] sm:$0xff]
    %v3215 = vld [vmem:[#allocation17 + $0x28] sm:$0xff]
    %v3216 = vld [vmem:[#allocation17 + $0x30] sm:$0xff]
    %v3217 = vld [vmem:[#allocation17 + $0x38] sm:$0xff]
    %v3218 = vld [vmem:[#allocation17 + $0x40] sm:$0xff]
    %v3219 = vld [vmem:[#allocation17 + $0x48] sm:$0xff]
    %v3220 = vld [vmem:[#allocation17 + $0x50] sm:$0xff]
    %v3221 = vld [vmem:[#allocation17 + $0x58] sm:$0xff]
    %v3222 = vld [vmem:[#allocation17 + $0x60] sm:$0xff]
    %v3223 = vld [vmem:[#allocation17 + $0x68] sm:$0xff]
    %v3224 = vld [vmem:[#allocation17 + $0x70] sm:$0xff]
    %v3225 = vld [vmem:[#allocation17 + $0x78] sm:$0xff]
    %v3226 = vld [vmem:[#allocation17 + $0x80] sm:$0xff]
    %v3227 = vld [vmem:[#allocation17 + $0x88] sm:$0xff]
    %v3228 = vld [vmem:[#allocation17 + $0x90] sm:$0xff]
    %v3229 = vld [vmem:[#allocation17 + $0x98] sm:$0xff]
    %v3230 = vld [vmem:[#allocation17 + $0xa0] sm:$0xff]
    %v3231 = vld [vmem:[#allocation17 + $0xa8] sm:$0xff]
    %v3232 = vld [vmem:[#allocation17 + $0xb0] sm:$0xff]
    %v3233 = vld [vmem:[#allocation17 + $0xb8] sm:$0xff]
    %v3234 = vld [vmem:[#allocation17 + $0xc0] sm:$0xff]
    %v3235 = vld [vmem:[#allocation17 + $0xc8] sm:$0xff]
    %v3236 = vld [vmem:[#allocation17 + $0xd0] sm:$0xff]
    %v3237 = vld [vmem:[#allocation17 + $0xd8] sm:$0xff]
    %v3238 = vld [vmem:[#allocation17 + $0xe0] sm:$0xff]
    %v3239 = vld [vmem:[#allocation17 + $0xe8] sm:$0xff]
    %v3240 = vld [vmem:[#allocation17 + $0xf0] sm:$0xff]
    %v3241 = vld [vmem:[#allocation17 + $0xf8] sm:$0xff]
    %v3242 = vld [vmem:[#allocation17 + $0x100] sm:$0xff]
    %v3243 = vld [vmem:[#allocation17 + $0x108] sm:$0xff]
    %v3244 = vld [vmem:[#allocation17 + $0x110] sm:$0xff]
    %v3245 = vld [vmem:[#allocation17 + $0x118] sm:$0xff]
    %v3246 = vld [vmem:[#allocation17 + $0x120] sm:$0xff]
    %v3247 = vld [vmem:[#allocation17 + $0x128] sm:$0xff]
    %v3248 = vld [vmem:[#allocation17 + $0x130] sm:$0xff]
    %v3249 = vld [vmem:[#allocation17 + $0x138] sm:$0xff]
    %v3250 = vld [vmem:[#allocation17 + $0x140] sm:$0xff]
    %v3251 = vld [vmem:[#allocation17 + $0x148] sm:$0xff]
    %v3252 = vld [vmem:[#allocation17 + $0x150] sm:$0xff]
    %v3253 = vld [vmem:[#allocation17 + $0x158] sm:$0xff]
    %v3254 = vld [vmem:[#allocation17 + $0x160] sm:$0xff]
    %v3255 = vld [vmem:[#allocation17 + $0x168] sm:$0xff]
    %v3256 = vld [vmem:[#allocation17 + $0x170] sm:$0xff]
    %v3257 = vld [vmem:[#allocation17 + $0x178] sm:$0xff]
    %v3258 = vld [vmem:[#allocation17 + $0x180] sm:$0xff]
    %v3259 = vld [vmem:[#allocation17 + $0x188] sm:$0xff]
    %v3260 = vld [vmem:[#allocation17 + $0x190] sm:$0xff]
    %v3261 = vld [vmem:[#allocation17 + $0x198] sm:$0xff]
    %v3262 = vld [vmem:[#allocation17 + $0x1a0] sm:$0xff]
    %v3263 = vld [vmem:[#allocation17 + $0x1a8] sm:$0xff]
    %v3264 = vld [vmem:[#allocation17 + $0x1b0] sm:$0xff]
    %v3265 = vld [vmem:[#allocation17 + $0x1b8] sm:$0xff]
    %v3266 = vld [vmem:[#allocation17 + $0x1c0] sm:$0xff]
    %v3267 = vld [vmem:[#allocation17 + $0x1c8] sm:$0xff]
    %v3268 = vld [vmem:[#allocation17 + $0x1d0] sm:$0xff]
    %v3269 = vld [vmem:[#allocation17 + $0x1d8] sm:$0xff]
    %v3270 = vld [vmem:[#allocation17 + $0x1e0] sm:$0xff]
    %v3271 = vld [vmem:[#allocation17 + $0x1e8] sm:$0xff]
    %v3272 = vld [vmem:[#allocation17 + $0x1f0] sm:$0xff]
    %v3273 = vld [vmem:[#allocation17 + $0x1f8] sm:$0xff]
    %v3274 = vld [vmem:[#allocation19] sm:$0xff]
    %v3275 = vld [vmem:[#allocation19 + $0x8] sm:$0xff]
    %v3276 = vld [vmem:[#allocation19 + $0x10] sm:$0xff]
    %v3277 = vld [vmem:[#allocation19 + $0x18] sm:$0xff]
    %v3278 = vld [vmem:[#allocation19 + $0x20] sm:$0xff]
    %v3279 = vld [vmem:[#allocation19 + $0x28] sm:$0xff]
    %v3280 = vld [vmem:[#allocation19 + $0x30] sm:$0xff]
    %v3281 = vld [vmem:[#allocation19 + $0x38] sm:$0xff]
    %v3282 = vld [vmem:[#allocation19 + $0x40] sm:$0xff]
    %v3283 = vld [vmem:[#allocation19 + $0x48] sm:$0xff]
    %v3284 = vld [vmem:[#allocation19 + $0x50] sm:$0xff]
    %v3285 = vld [vmem:[#allocation19 + $0x58] sm:$0xff]
    %v3286 = vld [vmem:[#allocation19 + $0x60] sm:$0xff]
    %v3287 = vld [vmem:[#allocation19 + $0x68] sm:$0xff]
    %v3288 = vld [vmem:[#allocation19 + $0x70] sm:$0xff]
    %v3289 = vld [vmem:[#allocation19 + $0x78] sm:$0xff]
    %v3290 = vld [vmem:[#allocation19 + $0x80] sm:$0xff]
    %v3291 = vld [vmem:[#allocation19 + $0x88] sm:$0xff]
    %v3292 = vld [vmem:[#allocation19 + $0x90] sm:$0xff]
    %v3293 = vld [vmem:[#allocation19 + $0x98] sm:$0xff]
    %v3294 = vld [vmem:[#allocation19 + $0xa0] sm:$0xff]
    %v3295 = vld [vmem:[#allocation19 + $0xa8] sm:$0xff]
    %v3296 = vld [vmem:[#allocation19 + $0xb0] sm:$0xff]
    %v3297 = vld [vmem:[#allocation19 + $0xb8] sm:$0xff]
    %v3298 = vld [vmem:[#allocation19 + $0xc0] sm:$0xff]
    %v3299 = vld [vmem:[#allocation19 + $0xc8] sm:$0xff]
    %v3300 = vld [vmem:[#allocation19 + $0xd0] sm:$0xff]
    %v3301 = vld [vmem:[#allocation19 + $0xd8] sm:$0xff]
    %v3302 = vld [vmem:[#allocation19 + $0xe0] sm:$0xff]
    %v3303 = vld [vmem:[#allocation19 + $0xe8] sm:$0xff]
    %v3304 = vld [vmem:[#allocation19 + $0xf0] sm:$0xff]
    %v3305 = vld [vmem:[#allocation19 + $0xf8] sm:$0xff]
    %v3306 = vld [vmem:[#allocation19 + $0x100] sm:$0xff]
    %v3307 = vld [vmem:[#allocation19 + $0x108] sm:$0xff]
    %v3308 = vld [vmem:[#allocation19 + $0x110] sm:$0xff]
    %v3309 = vld [vmem:[#allocation19 + $0x118] sm:$0xff]
    %v3310 = vld [vmem:[#allocation19 + $0x120] sm:$0xff]
    %v3311 = vld [vmem:[#allocation19 + $0x128] sm:$0xff]
    %v3312 = vld [vmem:[#allocation19 + $0x130] sm:$0xff]
    %v3313 = vld [vmem:[#allocation19 + $0x138] sm:$0xff]
    %v3314 = vld [vmem:[#allocation19 + $0x140] sm:$0xff]
    %v3315 = vld [vmem:[#allocation19 + $0x148] sm:$0xff]
    %v3316 = vld [vmem:[#allocation19 + $0x150] sm:$0xff]
    %v3317 = vld [vmem:[#allocation19 + $0x158] sm:$0xff]
    %v3318 = vld [vmem:[#allocation19 + $0x160] sm:$0xff]
    %v3319 = vld [vmem:[#allocation19 + $0x168] sm:$0xff]
    %v3320 = vld [vmem:[#allocation19 + $0x170] sm:$0xff]
    %v3321 = vld [vmem:[#allocation19 + $0x178] sm:$0xff]
    %v3322 = vld [vmem:[#allocation19 + $0x180] sm:$0xff]
    %v3323 = vld [vmem:[#allocation19 + $0x188] sm:$0xff]
    %v3324 = vld [vmem:[#allocation19 + $0x190] sm:$0xff]
    %v3325 = vld [vmem:[#allocation19 + $0x198] sm:$0xff]
    %v3326 = vld [vmem:[#allocation19 + $0x1a0] sm:$0xff]
    %v3327 = vld [vmem:[#allocation19 + $0x1a8] sm:$0xff]
    %v3328 = vld [vmem:[#allocation19 + $0x1b0] sm:$0xff]
    %v3329 = vld [vmem:[#allocation19 + $0x1b8] sm:$0xff]
    %v3330 = vld [vmem:[#allocation19 + $0x1c0] sm:$0xff]
    %v3331 = vld [vmem:[#allocation19 + $0x1c8] sm:$0xff]
    %v3332 = vld [vmem:[#allocation19 + $0x1d0] sm:$0xff]
    %v3333 = vld [vmem:[#allocation19 + $0x1d8] sm:$0xff]
    %v3334 = vld [vmem:[#allocation19 + $0x1e0] sm:$0xff]
    %v3335 = vld [vmem:[#allocation19 + $0x1e8] sm:$0xff]
    %v3336 = vld [vmem:[#allocation19 + $0x1f0] sm:$0xff]
    %v3337 = vld [vmem:[#allocation19 + $0x1f8] sm:$0xff]
    %3338 = vmatpush.msra.mxu0 %v3304
    %3339 = vmatpush.msra.mxu0 %v3302
    %3340 = vmatpush.msra.mxu0 %v3300
    %3341 = vmatpush.msra.mxu0 %v3298
    %3342 = vmatpush.msra.mxu0 %v3296
    %3343 = vmatpush.msra.mxu0 %v3294
    %3344 = vmatpush.msra.mxu0 %v3292
    %3345 = vmatpush.msra.mxu0 %v3290
    %3346 = vmatpush.msra.mxu0 %v3288
    %3347 = vmatpush.msra.mxu0 %v3286
    %3348 = vmatpush.msra.mxu0 %v3284
    %3349 = vmatpush.msra.mxu0 %v3282
    %3350 = vmatpush.msra.mxu0 %v3280
    %3351 = vmatpush.msra.mxu0 %v3278
    %3352 = vmatpush.msra.mxu0 %v3276
    %3353 = vmatpush.msra.mxu0 %v3274
    %3354 = vmatmul.f32.gmra.mxu0 %v3206
    %v3355 = vpop.f32.mrf.mxu0
    %v3356 = vadd.f32 0.0, %v3355
    %3357 = vmatmul.f32.gmra.mxu0 %v3208
    %v3358 = vpop.f32.mrf.mxu0
    %v3359 = vadd.f32 0.0, %v3358
    %3360 = vdwg.mxu0
    %3361 = vmatpush.msra.mxu0 %v3336
    %3362 = vmatpush.msra.mxu0 %v3334
    %3363 = vmatpush.msra.mxu0 %v3332
    %3364 = vmatpush.msra.mxu0 %v3330
    %3365 = vmatpush.msra.mxu0 %v3328
    %3366 = vmatpush.msra.mxu0 %v3326
    %3367 = vmatpush.msra.mxu0 %v3324
    %3368 = vmatpush.msra.mxu0 %v3322
    %3369 = vmatpush.msra.mxu0 %v3320
    %3370 = vmatpush.msra.mxu0 %v3318
    %3371 = vmatpush.msra.mxu0 %v3316
    %3372 = vmatpush.msra.mxu0 %v3314
    %3373 = vmatpush.msra.mxu0 %v3312
    %3374 = vmatpush.msra.mxu0 %v3310
    %3375 = vmatpush.msra.mxu0 %v3308
    %3376 = vmatpush.msra.mxu0 %v3306
    %3377 = vmatmul.f32.gmra.mxu0 %v3207
    %v3378 = vpop.f32.mrf.mxu0
    %v3379 = vadd.f32 %v3356, %v3378
    %3380 = vmatmul.f32.gmra.mxu0 %v3209
    %v3381 = vpop.f32.mrf.mxu0
    %v3382 = vadd.f32 %v3359, %v3381
    %3383 = vdwg.mxu0
    %3384 = vmatpush.msra.mxu0 %v3305
    %3385 = vmatpush.msra.mxu0 %v3303
    %3386 = vmatpush.msra.mxu0 %v3301
    %3387 = vmatpush.msra.mxu0 %v3299
    %3388 = vmatpush.msra.mxu0 %v3297
    %3389 = vmatpush.msra.mxu0 %v3295
    %3390 = vmatpush.msra.mxu0 %v3293
    %3391 = vmatpush.msra.mxu0 %v3291
    %3392 = vmatpush.msra.mxu0 %v3289
    %3393 = vmatpush.msra.mxu0 %v3287
    %3394 = vmatpush.msra.mxu0 %v3285
    %3395 = vmatpush.msra.mxu0 %v3283
    %3396 = vmatpush.msra.mxu0 %v3281
    %3397 = vmatpush.msra.mxu0 %v3279
    %3398 = vmatpush.msra.mxu0 %v3277
    %3399 = vmatpush.msra.mxu0 %v3275
    %3400 = vmatmul.f32.gmra.mxu0 %v3206
    %v3401 = vpop.f32.mrf.mxu0
    %v3402 = vadd.f32 0.0, %v3401
    %3403 = vmatmul.f32.gmra.mxu0 %v3208
    %v3404 = vpop.f32.mrf.mxu0
    %v3405 = vadd.f32 0.0, %v3404
    %3406 = vdwg.mxu0
    %3407 = vmatpush.msra.mxu0 %v3337
    %3408 = vmatpush.msra.mxu0 %v3335
    %3409 = vmatpush.msra.mxu0 %v3333
    %3410 = vmatpush.msra.mxu0 %v3331
    %3411 = vmatpush.msra.mxu0 %v3329
    %3412 = vmatpush.msra.mxu0 %v3327
    %3413 = vmatpush.msra.mxu0 %v3325
    %3414 = vmatpush.msra.mxu0 %v3323
    %3415 = vmatpush.msra.mxu0 %v3321
    %3416 = vmatpush.msra.mxu0 %v3319
    %3417 = vmatpush.msra.mxu0 %v3317
    %3418 = vmatpush.msra.mxu0 %v3315
    %3419 = vmatpush.msra.mxu0 %v3313
    %3420 = vmatpush.msra.mxu0 %v3311
    %3421 = vmatpush.msra.mxu0 %v3309
    %3422 = vmatpush.msra.mxu0 %v3307
    %3423 = vmatmul.f32.gmra.mxu0 %v3207
    %v3424 = vpop.f32.mrf.mxu0
    %v3425 = vadd.f32 %v3402, %v3424
    %3426 = vmatmul.f32.gmra.mxu0 %v3209
    %v3427 = vpop.f32.mrf.mxu0
    %v3428 = vadd.f32 %v3405, %v3427
    %3429 = vdwg.mxu0
    %3430 = vmatpush.msra.mxu0 %v3240
    %3431 = vmatpush.msra.mxu0 %v3238
    %3432 = vmatpush.msra.mxu0 %v3236
    %3433 = vmatpush.msra.mxu0 %v3234
    %3434 = vmatpush.msra.mxu0 %v3232
    %3435 = vmatpush.msra.mxu0 %v3230
    %3436 = vmatpush.msra.mxu0 %v3228
    %3437 = vmatpush.msra.mxu0 %v3226
    %3438 = vmatpush.msra.mxu0 %v3224
    %3439 = vmatpush.msra.mxu0 %v3222
    %3440 = vmatpush.msra.mxu0 %v3220
    %3441 = vmatpush.msra.mxu0 %v3218
    %3442 = vmatpush.msra.mxu0 %v3216
    %3443 = vmatpush.msra.mxu0 %v3214
    %3444 = vmatpush.msra.mxu0 %v3212
    %3445 = vmatpush.msra.mxu0 %v3210
    %3446 = vmatmul.f32.gmra.mxu0 %v2608
    %v3447 = vpop.f32.mrf.mxu0
    %v3448 = vadd.f32 %v3379, %v3447
    %3449 = vmatmul.f32.gmra.mxu0 %v2610
    %v3450 = vpop.f32.mrf.mxu0
    %v3451 = vadd.f32 %v3382, %v3450
    %3452 = vdwg.mxu0
    %3453 = vmatpush.msra.mxu0 %v3272
    %3454 = vmatpush.msra.mxu0 %v3270
    %3455 = vmatpush.msra.mxu0 %v3268
    %3456 = vmatpush.msra.mxu0 %v3266
    %3457 = vmatpush.msra.mxu0 %v3264
    %3458 = vmatpush.msra.mxu0 %v3262
    %3459 = vmatpush.msra.mxu0 %v3260
    %3460 = vmatpush.msra.mxu0 %v3258
    %3461 = vmatpush.msra.mxu0 %v3256
    %3462 = vmatpush.msra.mxu0 %v3254
    %3463 = vmatpush.msra.mxu0 %v3252
    %3464 = vmatpush.msra.mxu0 %v3250
    %3465 = vmatpush.msra.mxu0 %v3248
    %3466 = vmatpush.msra.mxu0 %v3246
    %3467 = vmatpush.msra.mxu0 %v3244
    %3468 = vmatpush.msra.mxu0 %v3242
    %3469 = vmatmul.f32.gmra.mxu0 %v2609
    %v3470 = vpop.f32.mrf.mxu0
    %v3471 = vadd.f32 %v3448, %v3470
    %3472 = vmatmul.f32.gmra.mxu0 %v2611
    %v3473 = vpop.f32.mrf.mxu0
    %v3474 = vadd.f32 %v3451, %v3473
    %3475 = vdwg.mxu0
    %3476 = vmatpush.msra.mxu0 %v3241
    %3477 = vmatpush.msra.mxu0 %v3239
    %3478 = vmatpush.msra.mxu0 %v3237
    %3479 = vmatpush.msra.mxu0 %v3235
    %3480 = vmatpush.msra.mxu0 %v3233
    %3481 = vmatpush.msra.mxu0 %v3231
    %3482 = vmatpush.msra.mxu0 %v3229
    %3483 = vmatpush.msra.mxu0 %v3227
    %3484 = vmatpush.msra.mxu0 %v3225
    %3485 = vmatpush.msra.mxu0 %v3223
    %3486 = vmatpush.msra.mxu0 %v3221
    %3487 = vmatpush.msra.mxu0 %v3219
    %3488 = vmatpush.msra.mxu0 %v3217
    %3489 = vmatpush.msra.mxu0 %v3215
    %3490 = vmatpush.msra.mxu0 %v3213
    %3491 = vmatpush.msra.mxu0 %v3211
    %3492 = vmatmul.f32.gmra.mxu0 %v2608
    %v3493 = vpop.f32.mrf.mxu0
    %v3494 = vadd.f32 %v3425, %v3493
    %3495 = vmatmul.f32.gmra.mxu0 %v2610
    %v3496 = vpop.f32.mrf.mxu0
    %v3497 = vadd.f32 %v3428, %v3496
    %3498 = vdwg.mxu0
    %3499 = vmatpush.msra.mxu0 %v3273
    %3500 = vmatpush.msra.mxu0 %v3271
    %3501 = vmatpush.msra.mxu0 %v3269
    %3502 = vmatpush.msra.mxu0 %v3267
    %3503 = vmatpush.msra.mxu0 %v3265
    %3504 = vmatpush.msra.mxu0 %v3263
    %3505 = vmatpush.msra.mxu0 %v3261
    %3506 = vmatpush.msra.mxu0 %v3259
    %3507 = vmatpush.msra.mxu0 %v3257
    %3508 = vmatpush.msra.mxu0 %v3255
    %3509 = vmatpush.msra.mxu0 %v3253
    %3510 = vmatpush.msra.mxu0 %v3251
    %3511 = vmatpush.msra.mxu0 %v3249
    %3512 = vmatpush.msra.mxu0 %v3247
    %3513 = vmatpush.msra.mxu0 %v3245
    %3514 = vmatpush.msra.mxu0 %v3243
    %3515 = vmatmul.f32.gmra.mxu0 %v2609
    %v3516 = vpop.f32.mrf.mxu0
    %v3517 = vadd.f32 %v3494, %v3516
    %3518 = vmatmul.f32.gmra.mxu0 %v2611
    %v3519 = vpop.f32.mrf.mxu0
    %v3520 = vadd.f32 %v3497, %v3519
    %3521 = vdwg.mxu0
    %v3522 = vld [vmem:[%s17] sm:$0x3]
    %v3524 = vperm.slane %v3522, 0
    %v3525 = vperm.slane %v3522, 1
    %v3528 = vadd.f32 %v3471, %v3524
    %v3529 = vadd.f32 %v3517, %v3525
    %v3530 = vadd.f32 %v3474, %v3524
    %v3531 = vadd.f32 %v3520, %v3525
    %v3532 = vmul.f32 %v3528, 0.5
    %v3533 = vmul.f32 %v3529, 0.5
    %v3534 = vmul.f32 %v3530, 0.5
    %v3535 = vmul.f32 %v3531, 0.5
    %v3536 = vmul.f32 %v3528, 0.70710677
    %v3537 = vmul.f32 %v3529, 0.70710677
    %v3538 = vmul.f32 %v3530, 0.70710677
    %v3539 = vmul.f32 %v3531, 0.70710677
    %v3540 = vmul.f32 %v3536, %v3536
    %v3541 = vmin.f32 16.0, %v3540
    %v3542 = vmul.f32 %v3541, 2.1237322e-06
    %v3543 = vadd.f32 %v3542, 0.00028619796
    %v3544 = vmul.f32 %v3541, %v3543
    %v3545 = vadd.f32 %v3544, 0.0036580483
    %v3546 = vmul.f32 %v3541, %v3545
    %v3547 = vadd.f32 %v3546, 0.05243302
    %v3548 = vmul.f32 %v3541, %v3547
    %v3549 = vadd.f32 %v3548, 0.18741608
    %v3550 = vmul.f32 %v3541, %v3549
    %v3551 = vadd.f32 %v3550, 1.1283791
    %v3552 = vmul.f32 %v3536, %v3551
    %v3553 = vmul.f32 %v3541, 3.8918573e-05
    %v3554 = vadd.f32 %v3553, 0.001143296
    %v3555 = vmul.f32 %v3541, %v3554
    %v3556 = vadd.f32 %v3555, 0.014752088
    %v3557 = vmul.f32 %v3541, %v3556
    %v3558 = vadd.f32 %v3557, 0.112945676
    %v3559 = vmul.f32 %v3541, %v3558
    %v3560 = vadd.f32 %v3559, 0.4994258
    %v3561 = vmul.f32 %v3541, %v3560
    %v3562 = vadd.f32 %v3561, 1.0
    %v3563 = vrcp.pop %v3562
    %v3564 = vmul.f32 %v3562, %v3563
    %v3565 = vsub.f32 1.0, %v3564
    %v3566 = vmul.f32 %v3563, %v3565
    %v3567 = vadd.f32 %v3563, %v3566
    %vm3568 = vweird.f32 %v3562
    %vm3569 = vweird.f32 %v3563
    %vm3570 = vmor %vm3568, %vm3569
    %v3571 = vsel %vm3570, %v3563, %v3567
    %v3572 = vand.u32 2147483647, %v3562
    %vm3573 = vcmp.eq.f32.partialorder %v3572, 8.507059e+37
    %v3574 = vand.u32 %v3562, 2147483648
    %v3575 = vor.u32 1.1754944e-38, %v3574
    %v3576 = vsel %vm3573, %v3575, %v3571
    %v3577 = vmul.f32 %v3552, %v3576
    %v3578 = vmin.f32 %v3577, 1.0
    %v3579 = vmax.f32 %v3578, -1.0
    %v3580 = vmul.f32 %v3537, %v3537
    %v3581 = vmin.f32 16.0, %v3580
    %v3582 = vmul.f32 %v3581, 2.1237322e-06
    %v3583 = vadd.f32 %v3582, 0.00028619796
    %v3584 = vmul.f32 %v3581, %v3583
    %v3585 = vadd.f32 %v3584, 0.0036580483
    %v3586 = vmul.f32 %v3581, %v3585
    %v3587 = vadd.f32 %v3586, 0.05243302
    %v3588 = vmul.f32 %v3581, %v3587
    %v3589 = vadd.f32 %v3588, 0.18741608
    %v3590 = vmul.f32 %v3581, %v3589
    %v3591 = vadd.f32 %v3590, 1.1283791
    %v3592 = vmul.f32 %v3537, %v3591
    %v3593 = vmul.f32 %v3581, 3.8918573e-05
    %v3594 = vadd.f32 %v3593, 0.001143296
    %v3595 = vmul.f32 %v3581, %v3594
    %v3596 = vadd.f32 %v3595, 0.014752088
    %v3597 = vmul.f32 %v3581, %v3596
    %v3598 = vadd.f32 %v3597, 0.112945676
    %v3599 = vmul.f32 %v3581, %v3598
    %v3600 = vadd.f32 %v3599, 0.4994258
    %v3601 = vmul.f32 %v3581, %v3600
    %v3602 = vadd.f32 %v3601, 1.0
    %v3603 = vrcp.pop %v3602
    %v3604 = vmul.f32 %v3602, %v3603
    %v3605 = vsub.f32 1.0, %v3604
    %v3606 = vmul.f32 %v3603, %v3605
    %v3607 = vadd.f32 %v3603, %v3606
    %vm3608 = vweird.f32 %v3602
    %vm3609 = vweird.f32 %v3603
    %vm3610 = vmor %vm3608, %vm3609
    %v3611 = vsel %vm3610, %v3603, %v3607
    %v3612 = vand.u32 2147483647, %v3602
    %vm3613 = vcmp.eq.f32.partialorder %v3612, 8.507059e+37
    %v3614 = vand.u32 %v3602, 2147483648
    %v3615 = vor.u32 1.1754944e-38, %v3614
    %v3616 = vsel %vm3613, %v3615, %v3611
    %v3617 = vmul.f32 %v3592, %v3616
    %v3618 = vmin.f32 %v3617, 1.0
    %v3619 = vmax.f32 %v3618, -1.0
    %v3620 = vmul.f32 %v3538, %v3538
    %v3621 = vmin.f32 16.0, %v3620
    %v3622 = vmul.f32 %v3621, 2.1237322e-06
    %v3623 = vadd.f32 %v3622, 0.00028619796
    %v3624 = vmul.f32 %v3621, %v3623
    %v3625 = vadd.f32 %v3624, 0.0036580483
    %v3626 = vmul.f32 %v3621, %v3625
    %v3627 = vadd.f32 %v3626, 0.05243302
    %v3628 = vmul.f32 %v3621, %v3627
    %v3629 = vadd.f32 %v3628, 0.18741608
    %v3630 = vmul.f32 %v3621, %v3629
    %v3631 = vadd.f32 %v3630, 1.1283791
    %v3632 = vmul.f32 %v3538, %v3631
    %v3633 = vmul.f32 %v3621, 3.8918573e-05
    %v3634 = vadd.f32 %v3633, 0.001143296
    %v3635 = vmul.f32 %v3621, %v3634
    %v3636 = vadd.f32 %v3635, 0.014752088
    %v3637 = vmul.f32 %v3621, %v3636
    %v3638 = vadd.f32 %v3637, 0.112945676
    %v3639 = vmul.f32 %v3621, %v3638
    %v3640 = vadd.f32 %v3639, 0.4994258
    %v3641 = vmul.f32 %v3621, %v3640
    %v3642 = vadd.f32 %v3641, 1.0
    %v3643 = vrcp.pop %v3642
    %v3644 = vmul.f32 %v3642, %v3643
    %v3645 = vsub.f32 1.0, %v3644
    %v3646 = vmul.f32 %v3643, %v3645
    %v3647 = vadd.f32 %v3643, %v3646
    %vm3648 = vweird.f32 %v3642
    %vm3649 = vweird.f32 %v3643
    %vm3650 = vmor %vm3648, %vm3649
    %v3651 = vsel %vm3650, %v3643, %v3647
    %v3652 = vand.u32 2147483647, %v3642
    %vm3653 = vcmp.eq.f32.partialorder %v3652, 8.507059e+37
    %v3654 = vand.u32 %v3642, 2147483648
    %v3655 = vor.u32 1.1754944e-38, %v3654
    %v3656 = vsel %vm3653, %v3655, %v3651
    %v3657 = vmul.f32 %v3632, %v3656
    %v3658 = vmin.f32 %v3657, 1.0
    %v3659 = vmax.f32 %v3658, -1.0
    %v3660 = vmul.f32 %v3539, %v3539
    %v3661 = vmin.f32 16.0, %v3660
    %v3662 = vmul.f32 %v3661, 2.1237322e-06
    %v3663 = vadd.f32 %v3662, 0.00028619796
    %v3664 = vmul.f32 %v3661, %v3663
    %v3665 = vadd.f32 %v3664, 0.0036580483
    %v3666 = vmul.f32 %v3661, %v3665
    %v3667 = vadd.f32 %v3666, 0.05243302
    %v3668 = vmul.f32 %v3661, %v3667
    %v3669 = vadd.f32 %v3668, 0.18741608
    %v3670 = vmul.f32 %v3661, %v3669
    %v3671 = vadd.f32 %v3670, 1.1283791
    %v3672 = vmul.f32 %v3539, %v3671
    %v3673 = vmul.f32 %v3661, 3.8918573e-05
    %v3674 = vadd.f32 %v3673, 0.001143296
    %v3675 = vmul.f32 %v3661, %v3674
    %v3676 = vadd.f32 %v3675, 0.014752088
    %v3677 = vmul.f32 %v3661, %v3676
    %v3678 = vadd.f32 %v3677, 0.112945676
    %v3679 = vmul.f32 %v3661, %v3678
    %v3680 = vadd.f32 %v3679, 0.4994258
    %v3681 = vmul.f32 %v3661, %v3680
    %v3682 = vadd.f32 %v3681, 1.0
    %v3683 = vrcp.pop %v3682
    %v3684 = vmul.f32 %v3682, %v3683
    %v3685 = vsub.f32 1.0, %v3684
    %v3686 = vmul.f32 %v3683, %v3685
    %v3687 = vadd.f32 %v3683, %v3686
    %vm3688 = vweird.f32 %v3682
    %vm3689 = vweird.f32 %v3683
    %vm3690 = vmor %vm3688, %vm3689
    %v3691 = vsel %vm3690, %v3683, %v3687
    %v3692 = vand.u32 2147483647, %v3682
    %vm3693 = vcmp.eq.f32.partialorder %v3692, 8.507059e+37
    %v3694 = vand.u32 %v3682, 2147483648
    %v3695 = vor.u32 1.1754944e-38, %v3694
    %v3696 = vsel %vm3693, %v3695, %v3691
    %v3697 = vmul.f32 %v3672, %v3696
    %v3698 = vmin.f32 %v3697, 1.0
    %v3699 = vmax.f32 %v3698, -1.0
    %v3700 = vadd.f32 %v3579, 1.0
    %v3701 = vadd.f32 %v3619, 1.0
    %v3702 = vadd.f32 %v3659, 1.0
    %v3703 = vadd.f32 %v3699, 1.0
    %v3704 = vmul.f32 %v3532, %v3700
    %v3705 = vmul.f32 %v3533, %v3701
    %v3706 = vmul.f32 %v3534, %v3702
    %v3707 = vmul.f32 %v3535, %v3703
    %v3708 = vld [vmem:[#allocation20] sm:$0xff]
    %v3709 = vld [vmem:[#allocation20 + $0x8] sm:$0xff]
    %v3710 = vld [vmem:[#allocation20 + $0x10] sm:$0xff]
    %v3711 = vld [vmem:[#allocation20 + $0x18] sm:$0xff]
    %v3712 = vld [vmem:[#allocation20 + $0x20] sm:$0xff]
    %v3713 = vld [vmem:[#allocation20 + $0x28] sm:$0xff]
    %v3714 = vld [vmem:[#allocation20 + $0x30] sm:$0xff]
    %v3715 = vld [vmem:[#allocation20 + $0x38] sm:$0xff]
    %v3716 = vld [vmem:[#allocation20 + $0x40] sm:$0xff]
    %v3717 = vld [vmem:[#allocation20 + $0x48] sm:$0xff]
    %v3718 = vld [vmem:[#allocation20 + $0x50] sm:$0xff]
    %v3719 = vld [vmem:[#allocation20 + $0x58] sm:$0xff]
    %v3720 = vld [vmem:[#allocation20 + $0x60] sm:$0xff]
    %v3721 = vld [vmem:[#allocation20 + $0x68] sm:$0xff]
    %v3722 = vld [vmem:[#allocation20 + $0x70] sm:$0xff]
    %v3723 = vld [vmem:[#allocation20 + $0x78] sm:$0xff]
    %v3724 = vld [vmem:[#allocation20 + $0x80] sm:$0xff]
    %v3725 = vld [vmem:[#allocation20 + $0x88] sm:$0xff]
    %v3726 = vld [vmem:[#allocation20 + $0x90] sm:$0xff]
    %v3727 = vld [vmem:[#allocation20 + $0x98] sm:$0xff]
    %v3728 = vld [vmem:[#allocation20 + $0xa0] sm:$0xff]
    %v3729 = vld [vmem:[#allocation20 + $0xa8] sm:$0xff]
    %v3730 = vld [vmem:[#allocation20 + $0xb0] sm:$0xff]
    %v3731 = vld [vmem:[#allocation20 + $0xb8] sm:$0xff]
    %v3732 = vld [vmem:[#allocation20 + $0xc0] sm:$0xff]
    %v3733 = vld [vmem:[#allocation20 + $0xc8] sm:$0xff]
    %v3734 = vld [vmem:[#allocation20 + $0xd0] sm:$0xff]
    %v3735 = vld [vmem:[#allocation20 + $0xd8] sm:$0xff]
    %v3736 = vld [vmem:[#allocation20 + $0xe0] sm:$0xff]
    %v3737 = vld [vmem:[#allocation20 + $0xe8] sm:$0xff]
    %v3738 = vld [vmem:[#allocation20 + $0xf0] sm:$0xff]
    %v3739 = vld [vmem:[#allocation20 + $0xf8] sm:$0xff]
    %v3740 = vld [vmem:[%s19] sm:$0x1]
    %v3742 = vperm.slane %v3740, 0
    %3744 = vmatpush.msra.mxu0 %v3723
    %3745 = vmatpush.msra.mxu0 %v3722
    %3746 = vmatpush.msra.mxu0 %v3721
    %3747 = vmatpush.msra.mxu0 %v3720
    %3748 = vmatpush.msra.mxu0 %v3719
    %3749 = vmatpush.msra.mxu0 %v3718
    %3750 = vmatpush.msra.mxu0 %v3717
    %3751 = vmatpush.msra.mxu0 %v3716
    %3752 = vmatpush.msra.mxu0 %v3715
    %3753 = vmatpush.msra.mxu0 %v3714
    %3754 = vmatpush.msra.mxu0 %v3713
    %3755 = vmatpush.msra.mxu0 %v3712
    %3756 = vmatpush.msra.mxu0 %v3711
    %3757 = vmatpush.msra.mxu0 %v3710
    %3758 = vmatpush.msra.mxu0 %v3709
    %3759 = vmatpush.msra.mxu0 %v3708
    %3760 = vmatmul.f32.gmra.mxu0 %v3704
    %v3761 = vpop.f32.mrf.mxu0
    %v3762 = vadd.f32 %v3742, %v3761
    %3763 = vmatmul.f32.gmra.mxu0 %v3706
    %v3764 = vpop.f32.mrf.mxu0
    %v3765 = vadd.f32 %v3742, %v3764
    %3766 = vdwg.mxu0
    %3767 = vmatpush.msra.mxu0 %v3739
    %3768 = vmatpush.msra.mxu0 %v3738
    %3769 = vmatpush.msra.mxu0 %v3737
    %3770 = vmatpush.msra.mxu0 %v3736
    %3771 = vmatpush.msra.mxu0 %v3735
    %3772 = vmatpush.msra.mxu0 %v3734
    %3773 = vmatpush.msra.mxu0 %v3733
    %3774 = vmatpush.msra.mxu0 %v3732
    %3775 = vmatpush.msra.mxu0 %v3731
    %3776 = vmatpush.msra.mxu0 %v3730
    %3777 = vmatpush.msra.mxu0 %v3729
    %3778 = vmatpush.msra.mxu0 %v3728
    %3779 = vmatpush.msra.mxu0 %v3727
    %3780 = vmatpush.msra.mxu0 %v3726
    %3781 = vmatpush.msra.mxu0 %v3725
    %3782 = vmatpush.msra.mxu0 %v3724
    %3783 = vmatmul.f32.gmra.mxu0 %v3705
    %v3784 = vpop.f32.mrf.mxu0
    %v3785 = vadd.f32 %v3762, %v3784
    %3786 = vmatmul.f32.gmra.mxu0 %v3707
    %v3787 = vpop.f32.mrf.mxu0
    %v3788 = vadd.f32 %v3765, %v3787
    %3789 = vdwg.mxu0
    %3790 = vst [vmem:[#allocation22] sm:$0xff] %v3785
    %3791 = vst [vmem:[#allocation22 + $0x8] sm:$0xff] %v3788
    // Predicated region
    $region130: #{tpu_custom_call.1} parent=1 // pred_check
      _
    $region131: #{tpu_custom_call.1} parent=1 // pred_check_branch
      %3793 = sbr.rel (0) target = $region133
    $region132: #{tpu_custom_call.1} parent=1 // pred_region
      %3795 = vsyncadd [#allocation4], 0
      %s3796 = sshll.u32 [#allocation22], 4
      %s3797 = int_to_ptr.vmem [resolvable:$true] %s3796
      %s3798 = sshll.u32 %s20, 4
      %s3799 = int_to_ptr.hbm [resolvable:$true] %s3798
      %3804 = dma.vmem_to_hbm [thread:$0]  %s3797, 256, %s3799, [#allocation4], 128, 128, 8
    $region133: #{tpu_custom_call.1} parent=1 // pred_fallthru
      _
    // Predicated region
    $region134: #{tpu_custom_call.1} parent=1 // pred_check
      _
    $region135: #{tpu_custom_call.1} parent=1 // pred_check_branch
      %3806 = sbr.rel (0) target = $region137
    $region136: #{tpu_custom_call.1} parent=1 // pred_region
      %3808 = dma.done [#allocation4], 256
    $region137: #{tpu_custom_call.1} parent=1 // pred_fallthru
      _
    %3809 = vsyncpa [#allocation3], 1
    %3810 = vsyncpa [#allocation6], 1
    %3811 = vsyncpa [#allocation9], 1
    %3812 = vsyncpa [#allocation12], 1
    %3813 = vsyncpa [#allocation15], 1
    %3814 = vsyncpa [#allocation18], 1
    %3815 = vsyncpa [#allocation21], 1
    %3816 = vsyncpa [#allocation4], 1

</llo_original>
